<compile_context>
chip_gen: v7x
topology: tpu7x:2x2x1
jax: 0.10.0
libtpu: 0.0.40
codegen_flags: <defaults>
</compile_context>

<pallas_src>
import functools

import jax
import jax.numpy as jnp
from jax.experimental import pallas as pl
from jax.experimental.pallas import tpu as pltpu


# ----------------------------------------------------------------------------
# In-kernel helpers
# ----------------------------------------------------------------------------
def _fill_zero_halo(pad_ref, H, W):
    """Zero only the 1-pixel halo strips of the (H+2, W+2, C) scratch.

    The interior is fully overwritten every step, so there is no full-buffer
    memset (O((H+W)*C) fill instead of O(H*W*C))."""
    C = pad_ref.shape[-1]
    zrow = jnp.zeros((1, W + 2, C), pad_ref.dtype)
    pad_ref[pl.ds(0, 1), :, :] = zrow
    pad_ref[pl.ds(H + 1, 1), :, :] = zrow
    zcol = jnp.zeros((H, 1, C), pad_ref.dtype)
    pad_ref[pl.ds(1, H), pl.ds(0, 1), :] = zcol
    pad_ref[pl.ds(1, H), pl.ds(W + 1, 1), :] = zcol


def _conv3x3_im2col(xpad_ref, w_bf16, bias_f32, H, W, C):
    """3x3 'same' conv over the zero-padded (H+2, W+2, C) scratch as ONE MXU
    matmul.

    The nine taps are concatenated into a (H*W, 9*C) patch value (no explicit
    scratch, no narrow column stores), cast to bf16 and contracted with the
    (9*C, F) bf16 weight with f32 accumulation.  Returns (H*W, F) f32 + bias."""
    taps = [
        xpad_ref[pl.ds(ky, H), pl.ds(kx, W), :].reshape(H * W, C)
        for ky in range(3) for kx in range(3)
    ]
    patches = jnp.concatenate(taps, axis=-1).astype(jnp.bfloat16)   # (H*W, 9C)
    out = jnp.dot(patches, w_bf16, preferred_element_type=jnp.float32)
    return out + bias_f32                                           # (H*W, F)


# ----------------------------------------------------------------------------
# Fused whole-stack kernel
# ----------------------------------------------------------------------------
def _resnet_stack_kernel(*refs, H, W, cin, F, num_blocks, max_pooling):
    it = iter(refs)
    x_ref = next(it)                       # (1, H, W, cin) f32
    w0_ref = next(it)                      # (9*cin, F) bf16
    b0_ref = next(it)                      # (1, F) f32
    wb_ref = next(it) if num_blocks else None   # (2*nb, 9F, F) bf16
    bb_ref = next(it) if num_blocks else None   # (2*nb, 1, F)  f32
    o_ref = next(it)                       # (1, H2, W2, F) f32
    xpad_ref = next(it)                    # (H+2, W+2, cin) f32 scratch
    if max_pooling:
        cpad_ref = next(it)                # (H+1, W, F) f32 scratch (-inf row 0)
        rpad_ref = next(it)                # (H2, W+1, F) f32 scratch (-inf col 0)
    bpad_ref = next(it) if num_blocks else None   # (H2+2, W2+2, F) f32 scratch

    H2, W2 = (H // 2, W // 2) if max_pooling else (H, W)

    # ---- initial 3x3 'same' conv (zero halo built in VMEM) -------------------
    _fill_zero_halo(xpad_ref, H, W)
    xpad_ref[pl.ds(1, H), pl.ds(1, W), :] = x_ref[0]
    conv0 = _conv3x3_im2col(xpad_ref, w0_ref[...], b0_ref[...], H, W, cin)

    # ---- optional 3x3 / stride-2 / pad-1 max pool (-inf halos) ---------------
    if max_pooling:
        neg_inf = jnp.float32(-jnp.inf)
        # rows: only pad row 0 is ever read -> fill just that strip.
        cpad_ref[pl.ds(0, 1), :, :] = jnp.full((1, W, F), neg_inf, jnp.float32)
        cpad_ref[pl.ds(1, H), :, :] = conv0.reshape(H, W, F)
        rmax = jnp.maximum(
            jnp.maximum(cpad_ref[pl.ds(0, H2, 2), :, :],
                        cpad_ref[pl.ds(1, H2, 2), :, :]),
            cpad_ref[pl.ds(2, H2, 2), :, :])                        # (H2, W, F)
        # cols: only pad col 0 is ever read.
        rpad_ref[:, pl.ds(0, 1), :] = jnp.full((H2, 1, F), neg_inf, jnp.float32)
        rpad_ref[:, pl.ds(1, W), :] = rmax
        pooled = jnp.maximum(
            jnp.maximum(rpad_ref[:, pl.ds(0, W2, 2), :],
                        rpad_ref[:, pl.ds(1, W2, 2), :]),
            rpad_ref[:, pl.ds(2, W2, 2), :])                        # (H2, W2, F)
        act = pooled.reshape(H2 * W2, F)
    else:
        act = conv0                                                 # (H*W, F)

    # ---- residual blocks: relu -> conv1 -> relu -> conv2 -> + residual -------
    if num_blocks:
        _fill_zero_halo(bpad_ref, H2, W2)   # halo stays zero for every conv below
        for blk in range(num_blocks):
            w1 = wb_ref[2 * blk]            # (9F, F) bf16
            b1 = bb_ref[2 * blk]            # (1, F)  f32
            w2 = wb_ref[2 * blk + 1]
            b2 = bb_ref[2 * blk + 1]

            bpad_ref[pl.ds(1, H2), pl.ds(1, W2), :] = (
                jnp.maximum(act, 0.0).reshape(H2, W2, F))
            h = _conv3x3_im2col(bpad_ref, w1, b1, H2, W2, F)        # (H2*W2, F)

            bpad_ref[pl.ds(1, H2), pl.ds(1, W2), :] = (
                jnp.maximum(h, 0.0).reshape(H2, W2, F))
            act = _conv3x3_im2col(bpad_ref, w2, b2, H2, W2, F) + act

    o_ref[0] = act.reshape(H2, W2, F)


# ----------------------------------------------------------------------------
# Wrapper (pallas_call plumbing)
# ----------------------------------------------------------------------------
def resnet_stack_forward(params, x_nchw, *, max_pooling=True):
    """ResnetStack.forward: NCHW in, NCHW out. One fused pallas_call."""
    x = jnp.transpose(x_nchw, (0, 2, 3, 1)).astype(jnp.float32)   # NCHW -> NHWC
    N, H, W, cin = x.shape
    F = params["init_w"].shape[-1]
    num_blocks = len(params["blocks"])

    if max_pooling:
        assert H % 2 == 0 and W % 2 == 0, "even spatial dims required with pooling"
        H2, W2 = H // 2, W // 2
    else:
        H2, W2 = H, W

    # (3,3,Cin,Cout) HWIO -> (9*Cin, Cout), tap-major rows; bf16 MXU operands.
    w0 = params["init_w"].reshape(9 * cin, F).astype(jnp.bfloat16)
    b0 = params["init_b"].reshape(1, F).astype(jnp.float32)

    args = [x, w0, b0]
    in_specs = [
        pl.BlockSpec((1, H, W, cin), lambda n: (n, 0, 0, 0)),
        pl.BlockSpec((9 * cin, F), lambda n: (0, 0)),
        pl.BlockSpec((1, F), lambda n: (0, 0)),
    ]
    if num_blocks:
        wb = jnp.stack(
            [w.reshape(9 * F, F) for (w1, _, w2, _) in params["blocks"]
             for w in (w1, w2)], axis=0).astype(jnp.bfloat16)       # (2nb, 9F, F)
        bb = jnp.stack(
            [b.reshape(1, F) for (_, b1, _, b2) in params["blocks"]
             for b in (b1, b2)], axis=0).astype(jnp.float32)        # (2nb, 1, F)
        args += [wb, bb]
        in_specs += [
            pl.BlockSpec((2 * num_blocks, 9 * F, F), lambda n: (0, 0, 0)),
            pl.BlockSpec((2 * num_blocks, 1, F), lambda n: (0, 0, 0)),
        ]

    scratch = [pltpu.VMEM((H + 2, W + 2, cin), jnp.float32)]        # init conv pad
    if max_pooling:
        scratch += [pltpu.VMEM((H + 1, W, F), jnp.float32),         # pool row pad
                    pltpu.VMEM((H2, W + 1, F), jnp.float32)]        # pool col pad
    if num_blocks:
        scratch += [pltpu.VMEM((H2 + 2, W2 + 2, F), jnp.float32)]   # block conv pad

    kern = functools.partial(_resnet_stack_kernel, H=H, W=W, cin=cin, F=F,
                             num_blocks=num_blocks, max_pooling=max_pooling)
    out_nhwc = pl.pallas_call(
        kern,
        out_shape=jax.ShapeDtypeStruct((N, H2, W2, F), jnp.float32),
        grid=(N,),
        in_specs=in_specs,
        out_specs=pl.BlockSpec((1, H2, W2, F), lambda n: (n, 0, 0, 0)),
        scratch_shapes=scratch,
        compiler_params=pltpu.CompilerParams(
            dimension_semantics=("parallel",),        # batch -> both v7x TCs
            vmem_limit_bytes=64 * 1024 * 1024),       # v5e default is 16 MiB
    )(*args)
    return jnp.transpose(out_nhwc, (0, 3, 1, 2))                    # NHWC -> NCHW


# ----------------------------------------------------------------------------
# Parameter init (mirrors nn.Conv2d shapes + xavier_uniform_)
# ----------------------------------------------------------------------------
def _xavier_conv(key, cin, cout):
    fan_in, fan_out = cin * 9, cout * 9
    bound = (6.0 / (fan_in + fan_out)) ** 0.5
    return jax.random.uniform(key, (3, 3, cin, cout), jnp.float32, -bound, bound)


def _conv_bias(key, cin, cout):
    bound = 1.0 / (cin * 9) ** 0.5          # PyTorch default Conv2d bias init
    return jax.random.uniform(key, (cout,), jnp.float32, -bound, bound)


def init_resnet_stack_params(key, num_features, num_blocks):
    keys = jax.random.split(key, 2 + 4 * num_blocks)
    params = {
        "init_w": _xavier_conv(keys[0], 3, num_features),
        "init_b": _conv_bias(keys[1], 3, num_features),
        "blocks": [],
    }
    for i in range(num_blocks):
        k0, k1, k2, k3 = keys[2 + 4 * i: 6 + 4 * i]
        params["blocks"].append((
            _xavier_conv(k0, num_features, num_features),
            _conv_bias(k1, num_features, num_features),
            _xavier_conv(k2, num_features, num_features),
            _conv_bias(k3, num_features, num_features),
        ))
    return params


# ----------------------------------------------------------------------------
# Pure-JAX f32 reference (for a loose numerical check of the bf16 kernel)
# ----------------------------------------------------------------------------
def _reference_forward(params, x_nchw, *, max_pooling=True):
    x = jnp.transpose(x_nchw, (0, 2, 3, 1))
    def conv(h, w, b):
        return jax.lax.conv_general_dilated(
            h, w, window_strides=(1, 1), padding="SAME",
            dimension_numbers=("NHWC", "HWIO", "NHWC")) + b
    h = conv(x, params["init_w"], params["init_b"])
    if max_pooling:
        h = jax.lax.reduce_window(
            h, -jnp.inf, jax.lax.max, (1, 3, 3, 1), (1, 2, 2, 1),
            padding=((0, 0), (1, 1), (1, 1), (0, 0)))
    for (w1, b1, w2, b2) in params["blocks"]:
        r = h
        h = conv(jax.nn.relu(h), w1, b1)
        h = conv(jax.nn.relu(h), w2, b2)
        h = h + r
    return jnp.transpose(h, (0, 3, 1, 2))


if __name__ == "__main__":
    key = jax.random.PRNGKey(0)
    k_x, k_p = jax.random.split(key)

    num_features, num_blocks = 8, 2
    x = jax.random.normal(k_x, (2, 3, 16, 16), jnp.float32)   # NCHW like PyTorch
    params = init_resnet_stack_params(k_p, num_features, num_blocks)

    fwd = jax.jit(functools.partial(resnet_stack_forward, max_pooling=True))
    out = jax.block_until_ready(fwd(params, x))

    assert out.shape == (2, num_features, 8, 8), out.shape
    assert bool(jnp.all(jnp.isfinite(out)))

    ref = _reference_forward(params, x, max_pooling=True)
    max_err = float(jnp.max(jnp.abs(out - ref)))
    assert max_err < 5e-2, f"max abs error vs f32 reference: {max_err}"

    print("KERNEL_OK")
</pallas_src>

<mosaic_0001>
module attributes {stable_mosaic.version = 11 : i64} {
  func.func @_resnet_stack_kernel(%arg0: i32, %arg1: memref<1x16x16x3xf32, #tpu.memory_space<vmem>>, %arg2: memref<27x8xbf16, #tpu.memory_space<vmem>>, %arg3: memref<1x8xf32, #tpu.memory_space<vmem>>, %arg4: memref<4x72x8xbf16, #tpu.memory_space<vmem>>, %arg5: memref<4x1x8xf32, #tpu.memory_space<vmem>>, %arg6: memref<1x8x8x8xf32, #tpu.memory_space<vmem>>, %arg7: memref<18x18x3xf32, #tpu.memory_space<vmem>>, %arg8: memref<17x16x8xf32, #tpu.memory_space<vmem>>, %arg9: memref<8x17x8xf32, #tpu.memory_space<vmem>>, %arg10: memref<10x10x8xf32, #tpu.memory_space<vmem>>) attributes {dimension_semantics = [#tpu.dimension_semantics<parallel>], iteration_bounds = array<i64: 2>, scalar_prefetch = 0 : i64, scratch_operands = 4 : i64, tpu.core_type = #tpu.core_type<tc>, window_params = [{transform_indices = @transform_0, window_bounds = array<i64: 1, 16, 16, 3>}, {pipeline_mode = #tpu.pipeline_mode<synchronous>, transform_indices = @transform_1, window_bounds = array<i64: 27, 8>}, {pipeline_mode = #tpu.pipeline_mode<synchronous>, transform_indices = @transform_2, window_bounds = array<i64: 1, 8>}, {pipeline_mode = #tpu.pipeline_mode<synchronous>, transform_indices = @transform_3, window_bounds = array<i64: 4, 72, 8>}, {pipeline_mode = #tpu.pipeline_mode<synchronous>, transform_indices = @transform_4, window_bounds = array<i64: 4, 1, 8>}, {transform_indices = @transform_5, window_bounds = array<i64: 1, 8, 8, 8>}]} {
    %cst = arith.constant 0.000000e+00 : f32
    %0 = vector.broadcast %cst : f32 to vector<1x18x3xf32>
    %c0 = arith.constant 0 : index
    %c0_0 = arith.constant 0 : index
    %c0_1 = arith.constant 0 : index
    %1 = vector.load %arg7[%c0, %c0_0, %c0_1] : memref<18x18x3xf32, #tpu.memory_space<vmem>>, vector<1x18x3xf32>
    tpu.vector_store %arg7[%c0, %c0_0, %c0_1], %0 {strides = array<i32>} : memref<18x18x3xf32, #tpu.memory_space<vmem>>, vector<1x18x3xf32>,
    %c17 = arith.constant 17 : index
    %c0_2 = arith.constant 0 : index
    %c0_3 = arith.constant 0 : index
    %2 = vector.load %arg7[%c17, %c0_2, %c0_3] : memref<18x18x3xf32, #tpu.memory_space<vmem>>, vector<1x18x3xf32>
    tpu.vector_store %arg7[%c17, %c0_2, %c0_3], %0 {strides = array<i32>} : memref<18x18x3xf32, #tpu.memory_space<vmem>>, vector<1x18x3xf32>,
    %cst_4 = arith.constant 0.000000e+00 : f32
    %3 = vector.broadcast %cst_4 : f32 to vector<16x1x3xf32>
    %c1 = arith.constant 1 : index
    %c0_5 = arith.constant 0 : index
    %c0_6 = arith.constant 0 : index
    %4 = vector.load %arg7[%c1, %c0_5, %c0_6] : memref<18x18x3xf32, #tpu.memory_space<vmem>>, vector<16x1x3xf32>
    tpu.vector_store %arg7[%c1, %c0_5, %c0_6], %3 {strides = array<i32>} : memref<18x18x3xf32, #tpu.memory_space<vmem>>, vector<16x1x3xf32>,
    %c1_7 = arith.constant 1 : index
    %c17_8 = arith.constant 17 : index
    %c0_9 = arith.constant 0 : index
    %5 = vector.load %arg7[%c1_7, %c17_8, %c0_9] : memref<18x18x3xf32, #tpu.memory_space<vmem>>, vector<16x1x3xf32>
    tpu.vector_store %arg7[%c1_7, %c17_8, %c0_9], %3 {strides = array<i32>} : memref<18x18x3xf32, #tpu.memory_space<vmem>>, vector<16x1x3xf32>,
    %c0_10 = arith.constant 0 : index
    %c0_11 = arith.constant 0 : index
    %c0_12 = arith.constant 0 : index
    %c0_13 = arith.constant 0 : index
    %6 = vector.load %arg1[%c0_10, %c0_11, %c0_12, %c0_13] : memref<1x16x16x3xf32, #tpu.memory_space<vmem>>, vector<1x16x16x3xf32>
    %7 = vector.shape_cast %6 : vector<1x16x16x3xf32> to vector<16x16x3xf32>
    %c1_14 = arith.constant 1 : index
    %c1_15 = arith.constant 1 : index
    %c0_16 = arith.constant 0 : index
    %8 = vector.load %arg7[%c1_14, %c1_15, %c0_16] : memref<18x18x3xf32, #tpu.memory_space<vmem>>, vector<16x16x3xf32>
    tpu.vector_store %arg7[%c1_14, %c1_15, %c0_16], %7 {strides = array<i32>} : memref<18x18x3xf32, #tpu.memory_space<vmem>>, vector<16x16x3xf32>,
    %c0_17 = arith.constant 0 : index
    %c0_18 = arith.constant 0 : index
    %9 = vector.load %arg2[%c0_17, %c0_18] : memref<27x8xbf16, #tpu.memory_space<vmem>>, vector<27x8xbf16>
    %c0_19 = arith.constant 0 : index
    %c0_20 = arith.constant 0 : index
    %10 = vector.load %arg3[%c0_19, %c0_20] : memref<1x8xf32, #tpu.memory_space<vmem>>, vector<1x8xf32>
    %c0_21 = arith.constant 0 : index
    %c0_22 = arith.constant 0 : index
    %c0_23 = arith.constant 0 : index
    %11 = vector.load %arg7[%c0_21, %c0_22, %c0_23] : memref<18x18x3xf32, #tpu.memory_space<vmem>>, vector<16x16x3xf32>
    %12 = vector.shape_cast %11 : vector<16x16x3xf32> to vector<256x3xf32>
    %c0_24 = arith.constant 0 : index
    %c1_25 = arith.constant 1 : index
    %c0_26 = arith.constant 0 : index
    %13 = vector.load %arg7[%c0_24, %c1_25, %c0_26] : memref<18x18x3xf32, #tpu.memory_space<vmem>>, vector<16x16x3xf32>
    %14 = vector.shape_cast %13 : vector<16x16x3xf32> to vector<256x3xf32>
    %c0_27 = arith.constant 0 : index
    %c2 = arith.constant 2 : index
    %c0_28 = arith.constant 0 : index
    %15 = vector.load %arg7[%c0_27, %c2, %c0_28] : memref<18x18x3xf32, #tpu.memory_space<vmem>>, vector<16x16x3xf32>
    %16 = vector.shape_cast %15 : vector<16x16x3xf32> to vector<256x3xf32>
    %c1_29 = arith.constant 1 : index
    %c0_30 = arith.constant 0 : index
    %c0_31 = arith.constant 0 : index
    %17 = vector.load %arg7[%c1_29, %c0_30, %c0_31] : memref<18x18x3xf32, #tpu.memory_space<vmem>>, vector<16x16x3xf32>
    %18 = vector.shape_cast %17 : vector<16x16x3xf32> to vector<256x3xf32>
    %c1_32 = arith.constant 1 : index
    %c1_33 = arith.constant 1 : index
    %c0_34 = arith.constant 0 : index
    %19 = vector.load %arg7[%c1_32, %c1_33, %c0_34] : memref<18x18x3xf32, #tpu.memory_space<vmem>>, vector<16x16x3xf32>
    %20 = vector.shape_cast %19 : vector<16x16x3xf32> to vector<256x3xf32>
    %c1_35 = arith.constant 1 : index
    %c2_36 = arith.constant 2 : index
    %c0_37 = arith.constant 0 : index
    %21 = vector.load %arg7[%c1_35, %c2_36, %c0_37] : memref<18x18x3xf32, #tpu.memory_space<vmem>>, vector<16x16x3xf32>
    %22 = vector.shape_cast %21 : vector<16x16x3xf32> to vector<256x3xf32>
    %c2_38 = arith.constant 2 : index
    %c0_39 = arith.constant 0 : index
    %c0_40 = arith.constant 0 : index
    %23 = vector.load %arg7[%c2_38, %c0_39, %c0_40] : memref<18x18x3xf32, #tpu.memory_space<vmem>>, vector<16x16x3xf32>
    %24 = vector.shape_cast %23 : vector<16x16x3xf32> to vector<256x3xf32>
    %c2_41 = arith.constant 2 : index
    %c1_42 = arith.constant 1 : index
    %c0_43 = arith.constant 0 : index
    %25 = vector.load %arg7[%c2_41, %c1_42, %c0_43] : memref<18x18x3xf32, #tpu.memory_space<vmem>>, vector<16x16x3xf32>
    %26 = vector.shape_cast %25 : vector<16x16x3xf32> to vector<256x3xf32>
    %c2_44 = arith.constant 2 : index
    %c2_45 = arith.constant 2 : index
    %c0_46 = arith.constant 0 : index
    %27 = vector.load %arg7[%c2_44, %c2_45, %c0_46] : memref<18x18x3xf32, #tpu.memory_space<vmem>>, vector<16x16x3xf32>
    %28 = vector.shape_cast %27 : vector<16x16x3xf32> to vector<256x3xf32>
    %29 = tpu.concatenate %12, %14, %16, %18, %20, %22, %24, %26, %28 in 1 : vector<256x3xf32>, vector<256x3xf32>, vector<256x3xf32>, vector<256x3xf32>, vector<256x3xf32>, vector<256x3xf32>, vector<256x3xf32>, vector<256x3xf32>, vector<256x3xf32> -> vector<256x27xf32>
    %30 = arith.truncf %29 : vector<256x27xf32> to vector<256x27xbf16>
    %cst_47 = arith.constant dense<0.000000e+00> : vector<256x8xf32>
    %31 = tpu.matmul %30, %9, %cst_47 {dimension_numbers = #tpu.dot_dimension_numbers<[1], [0], [0], [1], [0, 0, 1, 1], [], []>} : vector<256x27xbf16>, vector<27x8xbf16>, vector<256x8xf32> -> vector<256x8xf32>
    %32 = vector.broadcast %10 : vector<1x8xf32> to vector<256x8xf32>
    %33 = arith.addf %31, %32 : vector<256x8xf32>
    %cst_48 = arith.constant 0xFF800000 : f32
    %34 = vector.broadcast %cst_48 : f32 to vector<1x16x8xf32>
    %c0_49 = arith.constant 0 : index
    %c0_50 = arith.constant 0 : index
    %c0_51 = arith.constant 0 : index
    %35 = vector.load %arg8[%c0_49, %c0_50, %c0_51] : memref<17x16x8xf32, #tpu.memory_space<vmem>>, vector<1x16x8xf32>
    tpu.vector_store %arg8[%c0_49, %c0_50, %c0_51], %34 {strides = array<i32>} : memref<17x16x8xf32, #tpu.memory_space<vmem>>, vector<1x16x8xf32>,
    %36 = vector.shape_cast %33 : vector<256x8xf32> to vector<16x16x8xf32>
    %c1_52 = arith.constant 1 : index
    %c0_53 = arith.constant 0 : index
    %c0_54 = arith.constant 0 : index
    %37 = vector.load %arg8[%c1_52, %c0_53, %c0_54] : memref<17x16x8xf32, #tpu.memory_space<vmem>>, vector<16x16x8xf32>
    tpu.vector_store %arg8[%c1_52, %c0_53, %c0_54], %36 {strides = array<i32>} : memref<17x16x8xf32, #tpu.memory_space<vmem>>, vector<16x16x8xf32>,
    %c0_55 = arith.constant 0 : index
    %c0_56 = arith.constant 0 : index
    %c0_57 = arith.constant 0 : index
    %38 = tpu.strided_load %arg8[%c0_55, %c0_56, %c0_57] {strides = array<i32: 2, 1, 1>} : memref<17x16x8xf32, #tpu.memory_space<vmem>>, vector<8x16x8xf32>
    %c1_58 = arith.constant 1 : index
    %c0_59 = arith.constant 0 : index
    %c0_60 = arith.constant 0 : index
    %39 = tpu.strided_load %arg8[%c1_58, %c0_59, %c0_60] {strides = array<i32: 2, 1, 1>} : memref<17x16x8xf32, #tpu.memory_space<vmem>>, vector<8x16x8xf32>
    %40 = arith.maximumf %38, %39 : vector<8x16x8xf32>
    %c2_61 = arith.constant 2 : index
    %c0_62 = arith.constant 0 : index
    %c0_63 = arith.constant 0 : index
    %41 = tpu.strided_load %arg8[%c2_61, %c0_62, %c0_63] {strides = array<i32: 2, 1, 1>} : memref<17x16x8xf32, #tpu.memory_space<vmem>>, vector<8x16x8xf32>
    %42 = arith.maximumf %40, %41 : vector<8x16x8xf32>
    %cst_64 = arith.constant 0xFF800000 : f32
    %43 = vector.broadcast %cst_64 : f32 to vector<8x1x8xf32>
    %c0_65 = arith.constant 0 : index
    %c0_66 = arith.constant 0 : index
    %c0_67 = arith.constant 0 : index
    %44 = vector.load %arg9[%c0_65, %c0_66, %c0_67] : memref<8x17x8xf32, #tpu.memory_space<vmem>>, vector<8x1x8xf32>
    tpu.vector_store %arg9[%c0_65, %c0_66, %c0_67], %43 {strides = array<i32>} : memref<8x17x8xf32, #tpu.memory_space<vmem>>, vector<8x1x8xf32>,
    %c0_68 = arith.constant 0 : index
    %c1_69 = arith.constant 1 : index
    %c0_70 = arith.constant 0 : index
    %45 = vector.load %arg9[%c0_68, %c1_69, %c0_70] : memref<8x17x8xf32, #tpu.memory_space<vmem>>, vector<8x16x8xf32>
    tpu.vector_store %arg9[%c0_68, %c1_69, %c0_70], %42 {strides = array<i32>} : memref<8x17x8xf32, #tpu.memory_space<vmem>>, vector<8x16x8xf32>,
    %c0_71 = arith.constant 0 : index
    %c0_72 = arith.constant 0 : index
    %c0_73 = arith.constant 0 : index
    %46 = tpu.strided_load %arg9[%c0_71, %c0_72, %c0_73] {strides = array<i32: 1, 2, 1>} : memref<8x17x8xf32, #tpu.memory_space<vmem>>, vector<8x8x8xf32>
    %c0_74 = arith.constant 0 : index
    %c1_75 = arith.constant 1 : index
    %c0_76 = arith.constant 0 : index
    %47 = tpu.strided_load %arg9[%c0_74, %c1_75, %c0_76] {strides = array<i32: 1, 2, 1>} : memref<8x17x8xf32, #tpu.memory_space<vmem>>, vector<8x8x8xf32>
    %48 = arith.maximumf %46, %47 : vector<8x8x8xf32>
    %c0_77 = arith.constant 0 : index
    %c2_78 = arith.constant 2 : index
    %c0_79 = arith.constant 0 : index
    %49 = tpu.strided_load %arg9[%c0_77, %c2_78, %c0_79] {strides = array<i32: 1, 2, 1>} : memref<8x17x8xf32, #tpu.memory_space<vmem>>, vector<8x8x8xf32>
    %50 = arith.maximumf %48, %49 : vector<8x8x8xf32>
    %51 = vector.shape_cast %50 : vector<8x8x8xf32> to vector<64x8xf32>
    %cst_80 = arith.constant 0.000000e+00 : f32
    %52 = vector.broadcast %cst_80 : f32 to vector<1x10x8xf32>
    %c0_81 = arith.constant 0 : index
    %c0_82 = arith.constant 0 : index
    %c0_83 = arith.constant 0 : index
    %53 = vector.load %arg10[%c0_81, %c0_82, %c0_83] : memref<10x10x8xf32, #tpu.memory_space<vmem>>, vector<1x10x8xf32>
    tpu.vector_store %arg10[%c0_81, %c0_82, %c0_83], %52 {strides = array<i32>} : memref<10x10x8xf32, #tpu.memory_space<vmem>>, vector<1x10x8xf32>,
    %c9 = arith.constant 9 : index
    %c0_84 = arith.constant 0 : index
    %c0_85 = arith.constant 0 : index
    %54 = vector.load %arg10[%c9, %c0_84, %c0_85] : memref<10x10x8xf32, #tpu.memory_space<vmem>>, vector<1x10x8xf32>
    tpu.vector_store %arg10[%c9, %c0_84, %c0_85], %52 {strides = array<i32>} : memref<10x10x8xf32, #tpu.memory_space<vmem>>, vector<1x10x8xf32>,
    %cst_86 = arith.constant 0.000000e+00 : f32
    %55 = vector.broadcast %cst_86 : f32 to vector<8x1x8xf32>
    %c1_87 = arith.constant 1 : index
    %c0_88 = arith.constant 0 : index
    %c0_89 = arith.constant 0 : index
    %56 = vector.load %arg10[%c1_87, %c0_88, %c0_89] : memref<10x10x8xf32, #tpu.memory_space<vmem>>, vector<8x1x8xf32>
    tpu.vector_store %arg10[%c1_87, %c0_88, %c0_89], %55 {strides = array<i32>} : memref<10x10x8xf32, #tpu.memory_space<vmem>>, vector<8x1x8xf32>,
    %c1_90 = arith.constant 1 : index
    %c9_91 = arith.constant 9 : index
    %c0_92 = arith.constant 0 : index
    %57 = vector.load %arg10[%c1_90, %c9_91, %c0_92] : memref<10x10x8xf32, #tpu.memory_space<vmem>>, vector<8x1x8xf32>
    tpu.vector_store %arg10[%c1_90, %c9_91, %c0_92], %55 {strides = array<i32>} : memref<10x10x8xf32, #tpu.memory_space<vmem>>, vector<8x1x8xf32>,
    %c0_93 = arith.constant 0 : index
    %c0_94 = arith.constant 0 : index
    %c0_95 = arith.constant 0 : index
    %58 = vector.load %arg4[%c0_93, %c0_94, %c0_95] : memref<4x72x8xbf16, #tpu.memory_space<vmem>>, vector<1x72x8xbf16>
    %59 = vector.shape_cast %58 : vector<1x72x8xbf16> to vector<72x8xbf16>
    %c0_96 = arith.constant 0 : index
    %c0_97 = arith.constant 0 : index
    %c0_98 = arith.constant 0 : index
    %60 = vector.load %arg5[%c0_96, %c0_97, %c0_98] : memref<4x1x8xf32, #tpu.memory_space<vmem>>, vector<1x1x8xf32>
    %61 = vector.shape_cast %60 : vector<1x1x8xf32> to vector<1x8xf32>
    %c1_99 = arith.constant 1 : index
    %c0_100 = arith.constant 0 : index
    %c0_101 = arith.constant 0 : index
    %62 = vector.load %arg4[%c1_99, %c0_100, %c0_101] : memref<4x72x8xbf16, #tpu.memory_space<vmem>>, vector<1x72x8xbf16>
    %63 = vector.shape_cast %62 : vector<1x72x8xbf16> to vector<72x8xbf16>
    %c1_102 = arith.constant 1 : index
    %c0_103 = arith.constant 0 : index
    %c0_104 = arith.constant 0 : index
    %64 = vector.load %arg5[%c1_102, %c0_103, %c0_104] : memref<4x1x8xf32, #tpu.memory_space<vmem>>, vector<1x1x8xf32>
    %65 = vector.shape_cast %64 : vector<1x1x8xf32> to vector<1x8xf32>
    %cst_105 = arith.constant 0.000000e+00 : f32
    %66 = vector.broadcast %cst_105 : f32 to vector<64x8xf32>
    %67 = arith.maximumf %51, %66 : vector<64x8xf32>
    %68 = vector.shape_cast %67 : vector<64x8xf32> to vector<8x8x8xf32>
    %c1_106 = arith.constant 1 : index
    %c1_107 = arith.constant 1 : index
    %c0_108 = arith.constant 0 : index
    %69 = vector.load %arg10[%c1_106, %c1_107, %c0_108] : memref<10x10x8xf32, #tpu.memory_space<vmem>>, vector<8x8x8xf32>
    tpu.vector_store %arg10[%c1_106, %c1_107, %c0_108], %68 {strides = array<i32>} : memref<10x10x8xf32, #tpu.memory_space<vmem>>, vector<8x8x8xf32>,
    %c0_109 = arith.constant 0 : index
    %c0_110 = arith.constant 0 : index
    %c0_111 = arith.constant 0 : index
    %70 = vector.load %arg10[%c0_109, %c0_110, %c0_111] : memref<10x10x8xf32, #tpu.memory_space<vmem>>, vector<8x8x8xf32>
    %71 = vector.shape_cast %70 : vector<8x8x8xf32> to vector<64x8xf32>
    %c0_112 = arith.constant 0 : index
    %c1_113 = arith.constant 1 : index
    %c0_114 = arith.constant 0 : index
    %72 = vector.load %arg10[%c0_112, %c1_113, %c0_114] : memref<10x10x8xf32, #tpu.memory_space<vmem>>, vector<8x8x8xf32>
    %73 = vector.shape_cast %72 : vector<8x8x8xf32> to vector<64x8xf32>
    %c0_115 = arith.constant 0 : index
    %c2_116 = arith.constant 2 : index
    %c0_117 = arith.constant 0 : index
    %74 = vector.load %arg10[%c0_115, %c2_116, %c0_117] : memref<10x10x8xf32, #tpu.memory_space<vmem>>, vector<8x8x8xf32>
    %75 = vector.shape_cast %74 : vector<8x8x8xf32> to vector<64x8xf32>
    %c1_118 = arith.constant 1 : index
    %c0_119 = arith.constant 0 : index
    %c0_120 = arith.constant 0 : index
    %76 = vector.load %arg10[%c1_118, %c0_119, %c0_120] : memref<10x10x8xf32, #tpu.memory_space<vmem>>, vector<8x8x8xf32>
    %77 = vector.shape_cast %76 : vector<8x8x8xf32> to vector<64x8xf32>
    %c1_121 = arith.constant 1 : index
    %c1_122 = arith.constant 1 : index
    %c0_123 = arith.constant 0 : index
    %78 = vector.load %arg10[%c1_121, %c1_122, %c0_123] : memref<10x10x8xf32, #tpu.memory_space<vmem>>, vector<8x8x8xf32>
    %79 = vector.shape_cast %78 : vector<8x8x8xf32> to vector<64x8xf32>
    %c1_124 = arith.constant 1 : index
    %c2_125 = arith.constant 2 : index
    %c0_126 = arith.constant 0 : index
    %80 = vector.load %arg10[%c1_124, %c2_125, %c0_126] : memref<10x10x8xf32, #tpu.memory_space<vmem>>, vector<8x8x8xf32>
    %81 = vector.shape_cast %80 : vector<8x8x8xf32> to vector<64x8xf32>
    %c2_127 = arith.constant 2 : index
    %c0_128 = arith.constant 0 : index
    %c0_129 = arith.constant 0 : index
    %82 = vector.load %arg10[%c2_127, %c0_128, %c0_129] : memref<10x10x8xf32, #tpu.memory_space<vmem>>, vector<8x8x8xf32>
    %83 = vector.shape_cast %82 : vector<8x8x8xf32> to vector<64x8xf32>
    %c2_130 = arith.constant 2 : index
    %c1_131 = arith.constant 1 : index
    %c0_132 = arith.constant 0 : index
    %84 = vector.load %arg10[%c2_130, %c1_131, %c0_132] : memref<10x10x8xf32, #tpu.memory_space<vmem>>, vector<8x8x8xf32>
    %85 = vector.shape_cast %84 : vector<8x8x8xf32> to vector<64x8xf32>
    %c2_133 = arith.constant 2 : index
    %c2_134 = arith.constant 2 : index
    %c0_135 = arith.constant 0 : index
    %86 = vector.load %arg10[%c2_133, %c2_134, %c0_135] : memref<10x10x8xf32, #tpu.memory_space<vmem>>, vector<8x8x8xf32>
    %87 = vector.shape_cast %86 : vector<8x8x8xf32> to vector<64x8xf32>
    %88 = tpu.concatenate %71, %73, %75, %77, %79, %81, %83, %85, %87 in 1 : vector<64x8xf32>, vector<64x8xf32>, vector<64x8xf32>, vector<64x8xf32>, vector<64x8xf32>, vector<64x8xf32>, vector<64x8xf32>, vector<64x8xf32>, vector<64x8xf32> -> vector<64x72xf32>
    %89 = arith.truncf %88 : vector<64x72xf32> to vector<64x72xbf16>
    %cst_136 = arith.constant dense<0.000000e+00> : vector<64x8xf32>
    %90 = tpu.matmul %89, %59, %cst_136 {dimension_numbers = #tpu.dot_dimension_numbers<[1], [0], [0], [1], [0, 0, 1, 1], [], []>} : vector<64x72xbf16>, vector<72x8xbf16>, vector<64x8xf32> -> vector<64x8xf32>
    %91 = vector.broadcast %61 : vector<1x8xf32> to vector<64x8xf32>
    %92 = arith.addf %90, %91 : vector<64x8xf32>
    %cst_137 = arith.constant 0.000000e+00 : f32
    %93 = vector.broadcast %cst_137 : f32 to vector<64x8xf32>
    %94 = arith.maximumf %92, %93 : vector<64x8xf32>
    %95 = vector.shape_cast %94 : vector<64x8xf32> to vector<8x8x8xf32>
    %c1_138 = arith.constant 1 : index
    %c1_139 = arith.constant 1 : index
    %c0_140 = arith.constant 0 : index
    %96 = vector.load %arg10[%c1_138, %c1_139, %c0_140] : memref<10x10x8xf32, #tpu.memory_space<vmem>>, vector<8x8x8xf32>
    tpu.vector_store %arg10[%c1_138, %c1_139, %c0_140], %95 {strides = array<i32>} : memref<10x10x8xf32, #tpu.memory_space<vmem>>, vector<8x8x8xf32>,
    %c0_141 = arith.constant 0 : index
    %c0_142 = arith.constant 0 : index
    %c0_143 = arith.constant 0 : index
    %97 = vector.load %arg10[%c0_141, %c0_142, %c0_143] : memref<10x10x8xf32, #tpu.memory_space<vmem>>, vector<8x8x8xf32>
    %98 = vector.shape_cast %97 : vector<8x8x8xf32> to vector<64x8xf32>
    %c0_144 = arith.constant 0 : index
    %c1_145 = arith.constant 1 : index
    %c0_146 = arith.constant 0 : index
    %99 = vector.load %arg10[%c0_144, %c1_145, %c0_146] : memref<10x10x8xf32, #tpu.memory_space<vmem>>, vector<8x8x8xf32>
    %100 = vector.shape_cast %99 : vector<8x8x8xf32> to vector<64x8xf32>
    %c0_147 = arith.constant 0 : index
    %c2_148 = arith.constant 2 : index
    %c0_149 = arith.constant 0 : index
    %101 = vector.load %arg10[%c0_147, %c2_148, %c0_149] : memref<10x10x8xf32, #tpu.memory_space<vmem>>, vector<8x8x8xf32>
    %102 = vector.shape_cast %101 : vector<8x8x8xf32> to vector<64x8xf32>
    %c1_150 = arith.constant 1 : index
    %c0_151 = arith.constant 0 : index
    %c0_152 = arith.constant 0 : index
    %103 = vector.load %arg10[%c1_150, %c0_151, %c0_152] : memref<10x10x8xf32, #tpu.memory_space<vmem>>, vector<8x8x8xf32>
    %104 = vector.shape_cast %103 : vector<8x8x8xf32> to vector<64x8xf32>
    %c1_153 = arith.constant 1 : index
    %c1_154 = arith.constant 1 : index
    %c0_155 = arith.constant 0 : index
    %105 = vector.load %arg10[%c1_153, %c1_154, %c0_155] : memref<10x10x8xf32, #tpu.memory_space<vmem>>, vector<8x8x8xf32>
    %106 = vector.shape_cast %105 : vector<8x8x8xf32> to vector<64x8xf32>
    %c1_156 = arith.constant 1 : index
    %c2_157 = arith.constant 2 : index
    %c0_158 = arith.constant 0 : index
    %107 = vector.load %arg10[%c1_156, %c2_157, %c0_158] : memref<10x10x8xf32, #tpu.memory_space<vmem>>, vector<8x8x8xf32>
    %108 = vector.shape_cast %107 : vector<8x8x8xf32> to vector<64x8xf32>
    %c2_159 = arith.constant 2 : index
    %c0_160 = arith.constant 0 : index
    %c0_161 = arith.constant 0 : index
    %109 = vector.load %arg10[%c2_159, %c0_160, %c0_161] : memref<10x10x8xf32, #tpu.memory_space<vmem>>, vector<8x8x8xf32>
    %110 = vector.shape_cast %109 : vector<8x8x8xf32> to vector<64x8xf32>
    %c2_162 = arith.constant 2 : index
    %c1_163 = arith.constant 1 : index
    %c0_164 = arith.constant 0 : index
    %111 = vector.load %arg10[%c2_162, %c1_163, %c0_164] : memref<10x10x8xf32, #tpu.memory_space<vmem>>, vector<8x8x8xf32>
    %112 = vector.shape_cast %111 : vector<8x8x8xf32> to vector<64x8xf32>
    %c2_165 = arith.constant 2 : index
    %c2_166 = arith.constant 2 : index
    %c0_167 = arith.constant 0 : index
    %113 = vector.load %arg10[%c2_165, %c2_166, %c0_167] : memref<10x10x8xf32, #tpu.memory_space<vmem>>, vector<8x8x8xf32>
    %114 = vector.shape_cast %113 : vector<8x8x8xf32> to vector<64x8xf32>
    %115 = tpu.concatenate %98, %100, %102, %104, %106, %108, %110, %112, %114 in 1 : vector<64x8xf32>, vector<64x8xf32>, vector<64x8xf32>, vector<64x8xf32>, vector<64x8xf32>, vector<64x8xf32>, vector<64x8xf32>, vector<64x8xf32>, vector<64x8xf32> -> vector<64x72xf32>
    %116 = arith.truncf %115 : vector<64x72xf32> to vector<64x72xbf16>
    %cst_168 = arith.constant dense<0.000000e+00> : vector<64x8xf32>
    %117 = tpu.matmul %116, %63, %cst_168 {dimension_numbers = #tpu.dot_dimension_numbers<[1], [0], [0], [1], [0, 0, 1, 1], [], []>} : vector<64x72xbf16>, vector<72x8xbf16>, vector<64x8xf32> -> vector<64x8xf32>
    %118 = vector.broadcast %65 : vector<1x8xf32> to vector<64x8xf32>
    %119 = arith.addf %117, %118 : vector<64x8xf32>
    %120 = arith.addf %119, %51 : vector<64x8xf32>
    %c2_169 = arith.constant 2 : index
    %c0_170 = arith.constant 0 : index
    %c0_171 = arith.constant 0 : index
    %121 = vector.load %arg4[%c2_169, %c0_170, %c0_171] : memref<4x72x8xbf16, #tpu.memory_space<vmem>>, vector<1x72x8xbf16>
    %122 = vector.shape_cast %121 : vector<1x72x8xbf16> to vector<72x8xbf16>
    %c2_172 = arith.constant 2 : index
    %c0_173 = arith.constant 0 : index
    %c0_174 = arith.constant 0 : index
    %123 = vector.load %arg5[%c2_172, %c0_173, %c0_174] : memref<4x1x8xf32, #tpu.memory_space<vmem>>, vector<1x1x8xf32>
    %124 = vector.shape_cast %123 : vector<1x1x8xf32> to vector<1x8xf32>
    %c3 = arith.constant 3 : index
    %c0_175 = arith.constant 0 : index
    %c0_176 = arith.constant 0 : index
    %125 = vector.load %arg4[%c3, %c0_175, %c0_176] : memref<4x72x8xbf16, #tpu.memory_space<vmem>>, vector<1x72x8xbf16>
    %126 = vector.shape_cast %125 : vector<1x72x8xbf16> to vector<72x8xbf16>
    %c3_177 = arith.constant 3 : index
    %c0_178 = arith.constant 0 : index
    %c0_179 = arith.constant 0 : index
    %127 = vector.load %arg5[%c3_177, %c0_178, %c0_179] : memref<4x1x8xf32, #tpu.memory_space<vmem>>, vector<1x1x8xf32>
    %128 = vector.shape_cast %127 : vector<1x1x8xf32> to vector<1x8xf32>
    %cst_180 = arith.constant 0.000000e+00 : f32
    %129 = vector.broadcast %cst_180 : f32 to vector<64x8xf32>
    %130 = arith.maximumf %120, %129 : vector<64x8xf32>
    %131 = vector.shape_cast %130 : vector<64x8xf32> to vector<8x8x8xf32>
    %c1_181 = arith.constant 1 : index
    %c1_182 = arith.constant 1 : index
    %c0_183 = arith.constant 0 : index
    %132 = vector.load %arg10[%c1_181, %c1_182, %c0_183] : memref<10x10x8xf32, #tpu.memory_space<vmem>>, vector<8x8x8xf32>
    tpu.vector_store %arg10[%c1_181, %c1_182, %c0_183], %131 {strides = array<i32>} : memref<10x10x8xf32, #tpu.memory_space<vmem>>, vector<8x8x8xf32>,
    %c0_184 = arith.constant 0 : index
    %c0_185 = arith.constant 0 : index
    %c0_186 = arith.constant 0 : index
    %133 = vector.load %arg10[%c0_184, %c0_185, %c0_186] : memref<10x10x8xf32, #tpu.memory_space<vmem>>, vector<8x8x8xf32>
    %134 = vector.shape_cast %133 : vector<8x8x8xf32> to vector<64x8xf32>
    %c0_187 = arith.constant 0 : index
    %c1_188 = arith.constant 1 : index
    %c0_189 = arith.constant 0 : index
    %135 = vector.load %arg10[%c0_187, %c1_188, %c0_189] : memref<10x10x8xf32, #tpu.memory_space<vmem>>, vector<8x8x8xf32>
    %136 = vector.shape_cast %135 : vector<8x8x8xf32> to vector<64x8xf32>
    %c0_190 = arith.constant 0 : index
    %c2_191 = arith.constant 2 : index
    %c0_192 = arith.constant 0 : index
    %137 = vector.load %arg10[%c0_190, %c2_191, %c0_192] : memref<10x10x8xf32, #tpu.memory_space<vmem>>, vector<8x8x8xf32>
    %138 = vector.shape_cast %137 : vector<8x8x8xf32> to vector<64x8xf32>
    %c1_193 = arith.constant 1 : index
    %c0_194 = arith.constant 0 : index
    %c0_195 = arith.constant 0 : index
    %139 = vector.load %arg10[%c1_193, %c0_194, %c0_195] : memref<10x10x8xf32, #tpu.memory_space<vmem>>, vector<8x8x8xf32>
    %140 = vector.shape_cast %139 : vector<8x8x8xf32> to vector<64x8xf32>
    %c1_196 = arith.constant 1 : index
    %c1_197 = arith.constant 1 : index
    %c0_198 = arith.constant 0 : index
    %141 = vector.load %arg10[%c1_196, %c1_197, %c0_198] : memref<10x10x8xf32, #tpu.memory_space<vmem>>, vector<8x8x8xf32>
    %142 = vector.shape_cast %141 : vector<8x8x8xf32> to vector<64x8xf32>
    %c1_199 = arith.constant 1 : index
    %c2_200 = arith.constant 2 : index
    %c0_201 = arith.constant 0 : index
    %143 = vector.load %arg10[%c1_199, %c2_200, %c0_201] : memref<10x10x8xf32, #tpu.memory_space<vmem>>, vector<8x8x8xf32>
    %144 = vector.shape_cast %143 : vector<8x8x8xf32> to vector<64x8xf32>
    %c2_202 = arith.constant 2 : index
    %c0_203 = arith.constant 0 : index
    %c0_204 = arith.constant 0 : index
    %145 = vector.load %arg10[%c2_202, %c0_203, %c0_204] : memref<10x10x8xf32, #tpu.memory_space<vmem>>, vector<8x8x8xf32>
    %146 = vector.shape_cast %145 : vector<8x8x8xf32> to vector<64x8xf32>
    %c2_205 = arith.constant 2 : index
    %c1_206 = arith.constant 1 : index
    %c0_207 = arith.constant 0 : index
    %147 = vector.load %arg10[%c2_205, %c1_206, %c0_207] : memref<10x10x8xf32, #tpu.memory_space<vmem>>, vector<8x8x8xf32>
    %148 = vector.shape_cast %147 : vector<8x8x8xf32> to vector<64x8xf32>
    %c2_208 = arith.constant 2 : index
    %c2_209 = arith.constant 2 : index
    %c0_210 = arith.constant 0 : index
    %149 = vector.load %arg10[%c2_208, %c2_209, %c0_210] : memref<10x10x8xf32, #tpu.memory_space<vmem>>, vector<8x8x8xf32>
    %150 = vector.shape_cast %149 : vector<8x8x8xf32> to vector<64x8xf32>
    %151 = tpu.concatenate %134, %136, %138, %140, %142, %144, %146, %148, %150 in 1 : vector<64x8xf32>, vector<64x8xf32>, vector<64x8xf32>, vector<64x8xf32>, vector<64x8xf32>, vector<64x8xf32>, vector<64x8xf32>, vector<64x8xf32>, vector<64x8xf32> -> vector<64x72xf32>
    %152 = arith.truncf %151 : vector<64x72xf32> to vector<64x72xbf16>
    %cst_211 = arith.constant dense<0.000000e+00> : vector<64x8xf32>
    %153 = tpu.matmul %152, %122, %cst_211 {dimension_numbers = #tpu.dot_dimension_numbers<[1], [0], [0], [1], [0, 0, 1, 1], [], []>} : vector<64x72xbf16>, vector<72x8xbf16>, vector<64x8xf32> -> vector<64x8xf32>
    %154 = vector.broadcast %124 : vector<1x8xf32> to vector<64x8xf32>
    %155 = arith.addf %153, %154 : vector<64x8xf32>
    %cst_212 = arith.constant 0.000000e+00 : f32
    %156 = vector.broadcast %cst_212 : f32 to vector<64x8xf32>
    %157 = arith.maximumf %155, %156 : vector<64x8xf32>
    %158 = vector.shape_cast %157 : vector<64x8xf32> to vector<8x8x8xf32>
    %c1_213 = arith.constant 1 : index
    %c1_214 = arith.constant 1 : index
    %c0_215 = arith.constant 0 : index
    %159 = vector.load %arg10[%c1_213, %c1_214, %c0_215] : memref<10x10x8xf32, #tpu.memory_space<vmem>>, vector<8x8x8xf32>
    tpu.vector_store %arg10[%c1_213, %c1_214, %c0_215], %158 {strides = array<i32>} : memref<10x10x8xf32, #tpu.memory_space<vmem>>, vector<8x8x8xf32>,
    %c0_216 = arith.constant 0 : index
    %c0_217 = arith.constant 0 : index
    %c0_218 = arith.constant 0 : index
    %160 = vector.load %arg10[%c0_216, %c0_217, %c0_218] : memref<10x10x8xf32, #tpu.memory_space<vmem>>, vector<8x8x8xf32>
    %161 = vector.shape_cast %160 : vector<8x8x8xf32> to vector<64x8xf32>
    %c0_219 = arith.constant 0 : index
    %c1_220 = arith.constant 1 : index
    %c0_221 = arith.constant 0 : index
    %162 = vector.load %arg10[%c0_219, %c1_220, %c0_221] : memref<10x10x8xf32, #tpu.memory_space<vmem>>, vector<8x8x8xf32>
    %163 = vector.shape_cast %162 : vector<8x8x8xf32> to vector<64x8xf32>
    %c0_222 = arith.constant 0 : index
    %c2_223 = arith.constant 2 : index
    %c0_224 = arith.constant 0 : index
    %164 = vector.load %arg10[%c0_222, %c2_223, %c0_224] : memref<10x10x8xf32, #tpu.memory_space<vmem>>, vector<8x8x8xf32>
    %165 = vector.shape_cast %164 : vector<8x8x8xf32> to vector<64x8xf32>
    %c1_225 = arith.constant 1 : index
    %c0_226 = arith.constant 0 : index
    %c0_227 = arith.constant 0 : index
    %166 = vector.load %arg10[%c1_225, %c0_226, %c0_227] : memref<10x10x8xf32, #tpu.memory_space<vmem>>, vector<8x8x8xf32>
    %167 = vector.shape_cast %166 : vector<8x8x8xf32> to vector<64x8xf32>
    %c1_228 = arith.constant 1 : index
    %c1_229 = arith.constant 1 : index
    %c0_230 = arith.constant 0 : index
    %168 = vector.load %arg10[%c1_228, %c1_229, %c0_230] : memref<10x10x8xf32, #tpu.memory_space<vmem>>, vector<8x8x8xf32>
    %169 = vector.shape_cast %168 : vector<8x8x8xf32> to vector<64x8xf32>
    %c1_231 = arith.constant 1 : index
    %c2_232 = arith.constant 2 : index
    %c0_233 = arith.constant 0 : index
    %170 = vector.load %arg10[%c1_231, %c2_232, %c0_233] : memref<10x10x8xf32, #tpu.memory_space<vmem>>, vector<8x8x8xf32>
    %171 = vector.shape_cast %170 : vector<8x8x8xf32> to vector<64x8xf32>
    %c2_234 = arith.constant 2 : index
    %c0_235 = arith.constant 0 : index
    %c0_236 = arith.constant 0 : index
    %172 = vector.load %arg10[%c2_234, %c0_235, %c0_236] : memref<10x10x8xf32, #tpu.memory_space<vmem>>, vector<8x8x8xf32>
    %173 = vector.shape_cast %172 : vector<8x8x8xf32> to vector<64x8xf32>
    %c2_237 = arith.constant 2 : index
    %c1_238 = arith.constant 1 : index
    %c0_239 = arith.constant 0 : index
    %174 = vector.load %arg10[%c2_237, %c1_238, %c0_239] : memref<10x10x8xf32, #tpu.memory_space<vmem>>, vector<8x8x8xf32>
    %175 = vector.shape_cast %174 : vector<8x8x8xf32> to vector<64x8xf32>
    %c2_240 = arith.constant 2 : index
    %c2_241 = arith.constant 2 : index
    %c0_242 = arith.constant 0 : index
    %176 = vector.load %arg10[%c2_240, %c2_241, %c0_242] : memref<10x10x8xf32, #tpu.memory_space<vmem>>, vector<8x8x8xf32>
    %177 = vector.shape_cast %176 : vector<8x8x8xf32> to vector<64x8xf32>
    %178 = tpu.concatenate %161, %163, %165, %167, %169, %171, %173, %175, %177 in 1 : vector<64x8xf32>, vector<64x8xf32>, vector<64x8xf32>, vector<64x8xf32>, vector<64x8xf32>, vector<64x8xf32>, vector<64x8xf32>, vector<64x8xf32>, vector<64x8xf32> -> vector<64x72xf32>
    %179 = arith.truncf %178 : vector<64x72xf32> to vector<64x72xbf16>
    %cst_243 = arith.constant dense<0.000000e+00> : vector<64x8xf32>
    %180 = tpu.matmul %179, %126, %cst_243 {dimension_numbers = #tpu.dot_dimension_numbers<[1], [0], [0], [1], [0, 0, 1, 1], [], []>} : vector<64x72xbf16>, vector<72x8xbf16>, vector<64x8xf32> -> vector<64x8xf32>
    %181 = vector.broadcast %128 : vector<1x8xf32> to vector<64x8xf32>
    %182 = arith.addf %180, %181 : vector<64x8xf32>
    %183 = arith.addf %182, %120 : vector<64x8xf32>
    %184 = vector.shape_cast %183 : vector<64x8xf32> to vector<8x8x8xf32>
    %c0_244 = arith.constant 0 : index
    %c0_245 = arith.constant 0 : index
    %c0_246 = arith.constant 0 : index
    %c0_247 = arith.constant 0 : index
    %185 = vector.load %arg6[%c0_244, %c0_245, %c0_246, %c0_247] : memref<1x8x8x8xf32, #tpu.memory_space<vmem>>, vector<1x8x8x8xf32>
    %186 = vector.shape_cast %185 : vector<1x8x8x8xf32> to vector<8x8x8xf32>
    %187 = vector.shape_cast %184 : vector<8x8x8xf32> to vector<1x8x8x8xf32>
    tpu.vector_store %arg6[%c0_244, %c0_245, %c0_246, %c0_247], %187 {strides = array<i32>} : memref<1x8x8x8xf32, #tpu.memory_space<vmem>>, vector<1x8x8x8xf32>,
    return
  }
  func.func @transform_0(%arg0: i32) -> (i32, i32, i32, i32) {
    %c0_i32 = arith.constant 0 : i32
    %c0_i32_0 = arith.constant 0 : i32
    %c0_i32_1 = arith.constant 0 : i32
    %c0_i32_2 = arith.constant 0 : i32
    return %arg0, %c0_i32, %c0_i32_0, %c0_i32_1 : i32, i32, i32, i32
  }
  func.func @transform_1(%arg0: i32) -> (i32, i32) {
    %c0_i32 = arith.constant 0 : i32
    %c0_i32_0 = arith.constant 0 : i32
    %c0_i32_1 = arith.constant 0 : i32
    return %c0_i32, %c0_i32_0 : i32, i32
  }
  func.func @transform_2(%arg0: i32) -> (i32, i32) {
    %c0_i32 = arith.constant 0 : i32
    %c0_i32_0 = arith.constant 0 : i32
    %c0_i32_1 = arith.constant 0 : i32
    return %c0_i32, %c0_i32_0 : i32, i32
  }
  func.func @transform_3(%arg0: i32) -> (i32, i32, i32) {
    %c0_i32 = arith.constant 0 : i32
    %c0_i32_0 = arith.constant 0 : i32
    %c0_i32_1 = arith.constant 0 : i32
    %c0_i32_2 = arith.constant 0 : i32
    return %c0_i32, %c0_i32_0, %c0_i32_1 : i32, i32, i32
  }
  func.func @transform_4(%arg0: i32) -> (i32, i32, i32) {
    %c0_i32 = arith.constant 0 : i32
    %c0_i32_0 = arith.constant 0 : i32
    %c0_i32_1 = arith.constant 0 : i32
    %c0_i32_2 = arith.constant 0 : i32
    return %c0_i32, %c0_i32_0, %c0_i32_1 : i32, i32, i32
  }
  func.func @transform_5(%arg0: i32) -> (i32, i32, i32, i32) {
    %c0_i32 = arith.constant 0 : i32
    %c0_i32_0 = arith.constant 0 : i32
    %c0_i32_1 = arith.constant 0 : i32
    %c0_i32_2 = arith.constant 0 : i32
    return %arg0, %c0_i32, %c0_i32_0, %c0_i32_1 : i32, i32, i32, i32
  }
}

</mosaic_0001>

<llo_original>
// kernel: resnet_stack_forward.1
$region0: #{resnet_stack_forward.1}
  #allocation0 [shape = 'u32[]', space=smem, size = 0x4, offset = 0x4, fixed_abs, tag = 'smem constant byte address 0x4 - core index']
  #allocation1 [shape = 'u32[144,128]{1,0:T(1,128)}', space=vmem, size = 0x12000, scoped, tag = 'internal scratch']
  #allocation2 [shape = 'f32[18,18,3]{2,1,0:T(8,128)}', space=vmem, size = 0x36000, scoped, tag = 'scratch operand']
  #allocation3 [shape = 'f32[17,16,8]{2,1,0:T(8,128)}', space=vmem, size = 0x22000, scoped, tag = 'scratch operand']
  #allocation4 [shape = 'f32[8,17,8]{2,1,0:T(8,128)}', space=vmem, size = 0x18000, scoped, tag = 'scratch operand']
  #allocation5 [shape = 'f32[10,10,8]{2,1,0:T(8,128)}', space=vmem, size = 0x14000, scoped, tag = 'scratch operand']
  %s0 = inlined_call_operand.hbm [shape: f32[2,16,16,3], index: 0, kind: input, shape index: {}]
  %s1 = inlined_call_operand.hbm [shape: bf16[27,8], index: 1, kind: input, shape index: {}]
  %s2 = inlined_call_operand.hbm [shape: f32[1,8], index: 2, kind: input, shape index: {}]
  %s3 = inlined_call_operand.hbm [shape: bf16[4,72,8], index: 3, kind: input, shape index: {}]
  %s4 = inlined_call_operand.hbm [shape: f32[4,1,8], index: 4, kind: input, shape index: {}]
  %s5 = inlined_call_operand.hbm [shape: f32[2,8,8,8], index: 5, kind: output, shape index: {}]
  %s6 = sld [smem:[#allocation0]]
  $region73: #{resnet_stack_forward.1} parent=0
    _
  %s8 = ssub.s32 1, %s6
  %s9 = scalar_select 0, %s8, %s6
  $region1: #{resnet_stack_forward.1} parent=0
    #allocation6 [shape = 'u8[262144]{0}', space=vmem, size = 0x40000, scoped, tag = 'input window, operand 0']
    #allocation7 [shape = 's32[2]{0}', space=sflag, size = 0x8, scoped, tag = 'scoped memory for resnet_stack_forward.1']
    #allocation8 [shape = 's32[2]{0}', space=sflag, size = 0x8, scoped, tag = 'scoped memory for resnet_stack_forward.1']
    #allocation9 [shape = 'u8[8192]{0}', space=vmem, size = 0x2000, scoped, tag = 'input window, operand 1, single buffered']
    #allocation10 [shape = 's32[1]{0}', space=sflag, size = 0x4, scoped, tag = 'scoped memory for resnet_stack_forward.1']
    #allocation11 [shape = 'u8[512]{0}', space=vmem, size = 0x400, scoped, tag = 'input window, operand 2, single buffered']
    #allocation12 [shape = 'u8[73728]{0}', space=vmem, size = 0x12000, scoped, tag = 'input window, operand 3, single buffered']
    #allocation13 [shape = 's32[1]{0}', space=sflag, size = 0x4, scoped, tag = 'scoped memory for resnet_stack_forward.1']
    #allocation14 [shape = 'u8[2048]{0}', space=vmem, size = 0x800, scoped, tag = 'input window, operand 4, single buffered']
    #allocation15 [shape = 'u8[65536]{0}', space=vmem, size = 0x10000, scoped, tag = 'output window, operand 0']
    %10 = vsyncpa [#allocation7], 0
    %s11 = scalar_lea.sflag [#allocation7], 1
    %12 = vsyncpa %s11, 0
    %13 = vsyncpa [#allocation10], 0
    %14 = vsyncpa [#allocation13], 0
    %15 = vsyncpa [#allocation8], 0
    %s16 = scalar_lea.sflag [#allocation8], 1
    %17 = vsyncpa %s16, 0
    loop: start=0, step=1, limit=4
    $region2: #{resnet_stack_forward.1} parent=1 // loop_pre_header
      _
    $region3: #{resnet_stack_forward.1} parent=1 // loop_header
      %s19 = sphi 0, %s23
      %p20 = scmp.ge.s32.totalorder %s19, 4
      %s29 = sphi 0, %s31
      %s32 = sphi 0, %s29
      %s33 = sphi 0, %s32
      %s49 = sphi 0, %s33
      %s53 = sphi 0, %s53
      %s55 = sphi 0, %s53
      %s56 = sphi 0, %s55
      %s70 = sphi 0, %s56
      %s74 = sphi 0, %s74
      %s76 = sphi 0, %s74
      %s77 = sphi 0, %s76
      %s91 = sphi 0, %s77
      %s95 = sphi 0, %s95
      %s97 = sphi 0, %s95
      %s98 = sphi 0, %s97
      %s112 = sphi 0, %s98
      %s116 = sphi 0, %s116
      %s118 = sphi 0, %s116
      %s119 = sphi 0, %s118
      %s133 = sphi 0, %s119
      %s139 = sphi 0, %s141
      %s142 = sphi 0, %s139
      %s143 = sphi 0, %s142
      %s159 = sphi 0, %s143
    $region4: #{resnet_stack_forward.1} parent=1 // loop_header_branch
      %22 = sbr.rel (%p20) target = $region8
    $region5: #{resnet_stack_forward.1} parent=1 // loop_body
      %s24 = ssub.s32 %s19, 1
      %s25 = ssub.s32 %s19, 2
      %s26 = sadd.s32 %s19, 1
      %s27 = ssub.s32 %s19, %s26
      %p28 = scmp.eq.s32.totalorder %s27, 0
      %s30 = sadd.s32 %s29, 1
      %s31 = scalar_select %p28, %s29, %s30
      %p34 = pneg %p28
      %p35 = scmp.eq.s32.totalorder %s19, 1
      %p36 = por %p34, %p35
      %p37 = scmp.ne.s32.totalorder %s29, %s32
      %p38 = scmp.eq.s32.totalorder %s19, 0
      %p39 = por %p37, %p38
      %p40 = scmp.ne.s32.totalorder %s29, %s32
      %p41 = scmp.eq.s32.totalorder %s24, 1
      %p42 = por %p40, %p41
      %p43 = scmp.ne.s32.totalorder %s32, %s33
      %p44 = scmp.eq.s32.totalorder %s24, 0
      %p45 = por %p43, %p44
      %p46 = scmp.ne.s32.totalorder %s32, %s33
      %p47 = scmp.eq.s32.totalorder %s25, 1
      %p48 = por %p46, %p47
      %p50 = scmp.ne.s32.totalorder %s33, %s49
      %p51 = scmp.eq.s32.totalorder %s25, 0
      %p52 = por %p50, %p51
      %s54 = sadd.s32 %s53, 1
      %p57 = scmp.eq.s32.totalorder %s19, 1
      %p58 = scmp.ne.s32.totalorder %s53, %s55
      %p59 = scmp.eq.s32.totalorder %s19, 0
      %p60 = por %p58, %p59
      %p61 = scmp.ne.s32.totalorder %s53, %s55
      %p62 = scmp.eq.s32.totalorder %s24, 1
      %p63 = por %p61, %p62
      %p64 = scmp.ne.s32.totalorder %s55, %s56
      %p65 = scmp.eq.s32.totalorder %s24, 0
      %p66 = por %p64, %p65
      %p67 = scmp.ne.s32.totalorder %s55, %s56
      %p68 = scmp.eq.s32.totalorder %s25, 1
      %p69 = por %p67, %p68
      %p71 = scmp.ne.s32.totalorder %s56, %s70
      %p72 = scmp.eq.s32.totalorder %s25, 0
      %p73 = por %p71, %p72
      %s75 = sadd.s32 %s74, 1
      %p78 = scmp.eq.s32.totalorder %s19, 1
      %p79 = scmp.ne.s32.totalorder %s74, %s76
      %p80 = scmp.eq.s32.totalorder %s19, 0
      %p81 = por %p79, %p80
      %p82 = scmp.ne.s32.totalorder %s74, %s76
      %p83 = scmp.eq.s32.totalorder %s24, 1
      %p84 = por %p82, %p83
      %p85 = scmp.ne.s32.totalorder %s76, %s77
      %p86 = scmp.eq.s32.totalorder %s24, 0
      %p87 = por %p85, %p86
      %p88 = scmp.ne.s32.totalorder %s76, %s77
      %p89 = scmp.eq.s32.totalorder %s25, 1
      %p90 = por %p88, %p89
      %p92 = scmp.ne.s32.totalorder %s77, %s91
      %p93 = scmp.eq.s32.totalorder %s25, 0
      %p94 = por %p92, %p93
      %s96 = sadd.s32 %s95, 1
      %p99 = scmp.eq.s32.totalorder %s19, 1
      %p100 = scmp.ne.s32.totalorder %s95, %s97
      %p101 = scmp.eq.s32.totalorder %s19, 0
      %p102 = por %p100, %p101
      %p103 = scmp.ne.s32.totalorder %s95, %s97
      %p104 = scmp.eq.s32.totalorder %s24, 1
      %p105 = por %p103, %p104
      %p106 = scmp.ne.s32.totalorder %s97, %s98
      %p107 = scmp.eq.s32.totalorder %s24, 0
      %p108 = por %p106, %p107
      %p109 = scmp.ne.s32.totalorder %s97, %s98
      %p110 = scmp.eq.s32.totalorder %s25, 1
      %p111 = por %p109, %p110
      %p113 = scmp.ne.s32.totalorder %s98, %s112
      %p114 = scmp.eq.s32.totalorder %s25, 0
      %p115 = por %p113, %p114
      %s117 = sadd.s32 %s116, 1
      %p120 = scmp.eq.s32.totalorder %s19, 1
      %p121 = scmp.ne.s32.totalorder %s116, %s118
      %p122 = scmp.eq.s32.totalorder %s19, 0
      %p123 = por %p121, %p122
      %p124 = scmp.ne.s32.totalorder %s116, %s118
      %p125 = scmp.eq.s32.totalorder %s24, 1
      %p126 = por %p124, %p125
      %p127 = scmp.ne.s32.totalorder %s118, %s119
      %p128 = scmp.eq.s32.totalorder %s24, 0
      %p129 = por %p127, %p128
      %p130 = scmp.ne.s32.totalorder %s118, %s119
      %p131 = scmp.eq.s32.totalorder %s25, 1
      %p132 = por %p130, %p131
      %p134 = scmp.ne.s32.totalorder %s119, %s133
      %p135 = scmp.eq.s32.totalorder %s25, 0
      %p136 = por %p134, %p135
      %s137 = ssub.s32 %s19, %s26
      %p138 = scmp.eq.s32.totalorder %s137, 0
      %s140 = sadd.s32 %s139, 1
      %s141 = scalar_select %p138, %s139, %s140
      %p144 = pneg %p138
      %p145 = scmp.eq.s32.totalorder %s19, 1
      %p146 = por %p144, %p145
      %p147 = scmp.ne.s32.totalorder %s139, %s142
      %p148 = scmp.eq.s32.totalorder %s19, 0
      %p149 = por %p147, %p148
      %p150 = scmp.ne.s32.totalorder %s139, %s142
      %p151 = scmp.eq.s32.totalorder %s24, 1
      %p152 = por %p150, %p151
      %p153 = scmp.ne.s32.totalorder %s142, %s143
      %p154 = scmp.eq.s32.totalorder %s24, 0
      %p155 = por %p153, %p154
      %p156 = scmp.ne.s32.totalorder %s142, %s143
      %p157 = scmp.eq.s32.totalorder %s25, 1
      %p158 = por %p156, %p157
      %p160 = scmp.ne.s32.totalorder %s143, %s159
      %p161 = scmp.eq.s32.totalorder %s25, 0
      %p162 = por %p160, %p161
      %p163 = scmp.le.s32.totalorder 1, %s19
      %p164 = scmp.lt.s32.totalorder %s19, 3
      %p165 = pnand %p163, %p164
      %p166 = pneg %p165
      // Predicated region
      $region9: #{resnet_stack_forward.1} parent=5 // pred_check
        _
      $region10: #{resnet_stack_forward.1} parent=5 // pred_check_branch
        %168 = sbr.rel (%p165) target = $region12
      $region11: #{resnet_stack_forward.1} parent=5 // pred_region
        %s169 = ssub.s32 %s19, 1
        // Predicated region
        $region13: #{resnet_stack_forward.1} parent=11 // pred_check
          %p170 = pneg %p66
        $region14: #{resnet_stack_forward.1} parent=11 // pred_check_branch
          %172 = sbr.rel (%p170) target = $region16
        $region15: #{resnet_stack_forward.1} parent=11 // pred_region
          %s174 = ssub.s32 256, 256
          %175 = vsyncadd [#allocation10], %s174
          %s176 = sshll.u32 [#allocation9], 4
          %s177 = int_to_ptr.vmem [resolvable:$true] %s176
          %182 = dma.hbm_to_vmem [thread:$0]  %s1, 256, %s177, [#allocation10], 64, 64, 4
        $region16: #{resnet_stack_forward.1} parent=11 // pred_fallthru
          _
        // Predicated region
        $region17: #{resnet_stack_forward.1} parent=11 // pred_check
          %p183 = pneg %p87
        $region18: #{resnet_stack_forward.1} parent=11 // pred_check_branch
          %185 = sbr.rel (%p183) target = $region20
        $region19: #{resnet_stack_forward.1} parent=11 // pred_region
          %s187 = ssub.s32 16, 16
          %188 = vsyncadd [#allocation10], %s187
          %s190 = sshll.u32 [#allocation11], 4
          %s191 = int_to_ptr.vmem [resolvable:$true] %s190
          %193 = dma.hbm_to_vmem [thread:$0]  %s2, 16, %s191, [#allocation10]
        $region20: #{resnet_stack_forward.1} parent=11 // pred_fallthru
          _
        // Predicated region
        $region21: #{resnet_stack_forward.1} parent=11 // pred_check
          %p194 = pneg %p108
        $region22: #{resnet_stack_forward.1} parent=11 // pred_check_branch
          %196 = sbr.rel (%p194) target = $region24
        $region23: #{resnet_stack_forward.1} parent=11 // pred_region
          %s198 = ssub.s32 2304, 2304
          %199 = vsyncadd [#allocation13], %s198
          %s200 = sshll.u32 [#allocation12], 4
          %s201 = int_to_ptr.vmem [resolvable:$true] %s200
          %206 = dma.hbm_to_vmem [thread:$0]  %s3, 2304, %s201, [#allocation13], 64, 64, 4
        $region24: #{resnet_stack_forward.1} parent=11 // pred_fallthru
          _
        // Predicated region
        $region25: #{resnet_stack_forward.1} parent=11 // pred_check
          %p207 = pneg %p129
        $region26: #{resnet_stack_forward.1} parent=11 // pred_check_branch
          %209 = sbr.rel (%p207) target = $region28
        $region27: #{resnet_stack_forward.1} parent=11 // pred_region
          %s211 = ssub.s32 64, 64
          %212 = vsyncadd [#allocation13], %s211
          %s213 = sshll.u32 [#allocation14], 4
          %s214 = int_to_ptr.vmem [resolvable:$true] %s213
          %219 = dma.hbm_to_vmem [thread:$0]  %s4, 64, %s214, [#allocation13], 16, 16, 1
        $region28: #{resnet_stack_forward.1} parent=11 // pred_fallthru
          _
      $region12: #{resnet_stack_forward.1} parent=5 // pred_fallthru
        _
      %p220 = scmp.lt.s32.totalorder %s19, 2
      // Predicated region
      $region29: #{resnet_stack_forward.1} parent=5 // pred_check
        %p221 = pneg %p220
      $region30: #{resnet_stack_forward.1} parent=5 // pred_check_branch
        %223 = sbr.rel (%p221) target = $region32
      $region31: #{resnet_stack_forward.1} parent=5 // pred_region
        // Predicated region
        $region33: #{resnet_stack_forward.1} parent=31 // pred_check
          %p224 = pneg %p39
        $region34: #{resnet_stack_forward.1} parent=31 // pred_check_branch
          %226 = sbr.rel (%p224) target = $region36
        $region35: #{resnet_stack_forward.1} parent=31 // pred_region
          %s227 = sand.u32 %s29, 1
          %s228 = scalar_lea.sflag [#allocation7], %s227
          %s229 = sand.u32 %s29, 1
          %s230 = smul.addr %s229, 256
          %s231 = scalar_lea.vmem [#allocation6], %s230
          %s233 = ssub.s32 4096, 4096
          %234 = vsyncadd %s228, %s233
          %s235 = smul.addr %s19, 32
          %s236 = smul.addr %s235, 128
          %s237 = scalar_lea.hbm %s0, %s236
          %s238 = sshll.u32 %s231, 4
          %s239 = int_to_ptr.vmem [resolvable:$true] %s238
          %244 = dma.hbm_to_vmem [thread:$0]  %s237, 4096, %s239, %s228, 128, 128, 8
        $region36: #{resnet_stack_forward.1} parent=31 // pred_fallthru
          _
      $region32: #{resnet_stack_forward.1} parent=5 // pred_fallthru
        _
      %p245 = scmp.le.s32.totalorder 1, %s19
      %p246 = scmp.lt.s32.totalorder %s19, 3
      %p247 = pnand %p245, %p246
      %p248 = pneg %p247
      // Predicated region
      $region37: #{resnet_stack_forward.1} parent=5 // pred_check
        _
      $region38: #{resnet_stack_forward.1} parent=5 // pred_check_branch
        %250 = sbr.rel (%p247) target = $region40
      $region39: #{resnet_stack_forward.1} parent=5 // pred_region
        %s251 = ssub.s32 %s19, 1
        %s252 = sand.u32 %s32, 1
        %s253 = scalar_lea.sflag [#allocation7], %s252
        %s254 = sand.u32 %s32, 1
        %s255 = smul.addr %s254, 256
        %s256 = scalar_lea.vmem [#allocation6], %s255
        // Predicated region
        $region41: #{resnet_stack_forward.1} parent=39 // pred_check
          %p257 = pneg %p45
        $region42: #{resnet_stack_forward.1} parent=39 // pred_check_branch
          %259 = sbr.rel (%p257) target = $region44
        $region43: #{resnet_stack_forward.1} parent=39 // pred_region
          %260 = dma.done %s253, 4096
        $region44: #{resnet_stack_forward.1} parent=39 // pred_fallthru
          _
        // Predicated region
        $region45: #{resnet_stack_forward.1} parent=39 // pred_check
          %p261 = pneg %p66
        $region46: #{resnet_stack_forward.1} parent=39 // pred_check_branch
          %263 = sbr.rel (%p261) target = $region48
        $region47: #{resnet_stack_forward.1} parent=39 // pred_region
          %264 = dma.done [#allocation10], 256
        $region48: #{resnet_stack_forward.1} parent=39 // pred_fallthru
          _
        // Predicated region
        $region49: #{resnet_stack_forward.1} parent=39 // pred_check
          %p265 = pneg %p87
        $region50: #{resnet_stack_forward.1} parent=39 // pred_check_branch
          %267 = sbr.rel (%p265) target = $region52
        $region51: #{resnet_stack_forward.1} parent=39 // pred_region
          %268 = dma.done [#allocation10], 16
        $region52: #{resnet_stack_forward.1} parent=39 // pred_fallthru
          _
        // Predicated region
        $region53: #{resnet_stack_forward.1} parent=39 // pred_check
          %p269 = pneg %p108
        $region54: #{resnet_stack_forward.1} parent=39 // pred_check_branch
          %271 = sbr.rel (%p269) target = $region56
        $region55: #{resnet_stack_forward.1} parent=39 // pred_region
          %272 = dma.done [#allocation13], 2304
        $region56: #{resnet_stack_forward.1} parent=39 // pred_fallthru
          _
        // Predicated region
        $region57: #{resnet_stack_forward.1} parent=39 // pred_check
          %p273 = pneg %p129
        $region58: #{resnet_stack_forward.1} parent=39 // pred_check_branch
          %275 = sbr.rel (%p273) target = $region60
        $region59: #{resnet_stack_forward.1} parent=39 // pred_region
          %276 = dma.done [#allocation13], 64
        $region60: #{resnet_stack_forward.1} parent=39 // pred_fallthru
          _
        %s277 = sand.u32 %s32, 1
        %s278 = scalar_lea.sflag [#allocation7], %s277
        %s279 = sand.u32 %s32, 1
        %s280 = smul.addr %s279, 256
        %s281 = scalar_lea.vmem [#allocation6], %s280
        %p282 = pneg %p45
        %p283 = pneg %p42
        %p284 = pneg %p66
        %p285 = pneg %p63
        %p286 = pneg %p87
        %p287 = pneg %p84
        %p288 = pneg %p108
        %p289 = pneg %p105
        %p290 = pneg %p129
        %p291 = pneg %p126
        %p292 = pneg %p155
        %p293 = pneg %p152
        %s294 = sand.u32 %s142, 1
        %s295 = scalar_lea.sflag [#allocation8], %s294
        %s296 = sand.u32 %s142, 1
        %s297 = smul.addr %s296, 64
        %s298 = scalar_lea.vmem [#allocation15], %s297
        %vm300 = vcmask 23552
        %301 = vst.msk [vmem:[#allocation2] sm:$0xff] %vm300, 0.0
        %302 = vst.msk [vmem:[#allocation2 + $0x8] sm:$0xff] %vm300, 0.0
        %vm303 = vcmask 17408
        %304 = vst.msk [vmem:[#allocation2 + $0x10] sm:$0x3] %vm303, 0.0
        %s305 = scalar_lea.vmem [#allocation2], 408
        %306 = vst.msk [vmem:[%s305] sm:$0xff] %vm300, 0.0
        %307 = vst.msk [vmem:[%s305 + $0x8] sm:$0xff] %vm300, 0.0
        %308 = vst.msk [vmem:[%s305 + $0x10] sm:$0x3] %vm303, 0.0
        %s309 = scalar_lea.vmem [#allocation2], 24
        %vm310 = vcmask 16384
        %311 = vst.msk [vmem:[%s309] sm:$0x1] %vm310, 0.0
        %312 = vst.msk [vmem:[%s309 + $0x18] sm:$0x1] %vm310, 0.0
        %313 = vst.msk [vmem:[%s309 + $0x30] sm:$0x1] %vm310, 0.0
        %314 = vst.msk [vmem:[%s309 + $0x48] sm:$0x1] %vm310, 0.0
        %315 = vst.msk [vmem:[%s309 + $0x60] sm:$0x1] %vm310, 0.0
        %316 = vst.msk [vmem:[%s309 + $0x78] sm:$0x1] %vm310, 0.0
        %317 = vst.msk [vmem:[%s309 + $0x90] sm:$0x1] %vm310, 0.0
        %318 = vst.msk [vmem:[%s309 + $0xa8] sm:$0x1] %vm310, 0.0
        %319 = vst.msk [vmem:[%s309 + $0xc0] sm:$0x1] %vm310, 0.0
        %320 = vst.msk [vmem:[%s309 + $0xd8] sm:$0x1] %vm310, 0.0
        %321 = vst.msk [vmem:[%s309 + $0xf0] sm:$0x1] %vm310, 0.0
        %322 = vst.msk [vmem:[%s309 + $0x108] sm:$0x1] %vm310, 0.0
        %323 = vst.msk [vmem:[%s309 + $0x120] sm:$0x1] %vm310, 0.0
        %324 = vst.msk [vmem:[%s309 + $0x138] sm:$0x1] %vm310, 0.0
        %325 = vst.msk [vmem:[%s309 + $0x150] sm:$0x1] %vm310, 0.0
        %326 = vst.msk [vmem:[%s309 + $0x168] sm:$0x1] %vm310, 0.0
        %327 = vst.msk [vmem:[%s309 + $0x11] sm:$0x1] %vm310, 0.0
        %328 = vst.msk [vmem:[%s309 + $0x29] sm:$0x1] %vm310, 0.0
        %329 = vst.msk [vmem:[%s309 + $0x41] sm:$0x1] %vm310, 0.0
        %330 = vst.msk [vmem:[%s309 + $0x59] sm:$0x1] %vm310, 0.0
        %331 = vst.msk [vmem:[%s309 + $0x71] sm:$0x1] %vm310, 0.0
        %332 = vst.msk [vmem:[%s309 + $0x89] sm:$0x1] %vm310, 0.0
        %333 = vst.msk [vmem:[%s309 + $0xa1] sm:$0x1] %vm310, 0.0
        %334 = vst.msk [vmem:[%s309 + $0xb9] sm:$0x1] %vm310, 0.0
        %335 = vst.msk [vmem:[%s309 + $0xd1] sm:$0x1] %vm310, 0.0
        %336 = vst.msk [vmem:[%s309 + $0xe9] sm:$0x1] %vm310, 0.0
        %337 = vst.msk [vmem:[%s309 + $0x101] sm:$0x1] %vm310, 0.0
        %338 = vst.msk [vmem:[%s309 + $0x119] sm:$0x1] %vm310, 0.0
        %339 = vst.msk [vmem:[%s309 + $0x131] sm:$0x1] %vm310, 0.0
        %340 = vst.msk [vmem:[%s309 + $0x149] sm:$0x1] %vm310, 0.0
        %341 = vst.msk [vmem:[%s309 + $0x161] sm:$0x1] %vm310, 0.0
        %342 = vst.msk [vmem:[%s309 + $0x179] sm:$0x1] %vm310, 0.0
        %v343 = vld [vmem:[%s256] sm:$0xff]
        %v344 = vld [vmem:[%s256 + $0x8] sm:$0xff]
        %v345 = vld [vmem:[%s256 + $0x10] sm:$0xff]
        %v346 = vld [vmem:[%s256 + $0x18] sm:$0xff]
        %v347 = vld [vmem:[%s256 + $0x20] sm:$0xff]
        %v348 = vld [vmem:[%s256 + $0x28] sm:$0xff]
        %v349 = vld [vmem:[%s256 + $0x30] sm:$0xff]
        %v350 = vld [vmem:[%s256 + $0x38] sm:$0xff]
        %v351 = vld [vmem:[%s256 + $0x40] sm:$0xff]
        %v352 = vld [vmem:[%s256 + $0x48] sm:$0xff]
        %v353 = vld [vmem:[%s256 + $0x50] sm:$0xff]
        %v354 = vld [vmem:[%s256 + $0x58] sm:$0xff]
        %v355 = vld [vmem:[%s256 + $0x60] sm:$0xff]
        %v356 = vld [vmem:[%s256 + $0x68] sm:$0xff]
        %v357 = vld [vmem:[%s256 + $0x70] sm:$0xff]
        %v358 = vld [vmem:[%s256 + $0x78] sm:$0xff]
        %v359 = vld [vmem:[%s256 + $0x80] sm:$0xff]
        %v360 = vld [vmem:[%s256 + $0x88] sm:$0xff]
        %v361 = vld [vmem:[%s256 + $0x90] sm:$0xff]
        %v362 = vld [vmem:[%s256 + $0x98] sm:$0xff]
        %v363 = vld [vmem:[%s256 + $0xa0] sm:$0xff]
        %v364 = vld [vmem:[%s256 + $0xa8] sm:$0xff]
        %v365 = vld [vmem:[%s256 + $0xb0] sm:$0xff]
        %v366 = vld [vmem:[%s256 + $0xb8] sm:$0xff]
        %v367 = vld [vmem:[%s256 + $0xc0] sm:$0xff]
        %v368 = vld [vmem:[%s256 + $0xc8] sm:$0xff]
        %v369 = vld [vmem:[%s256 + $0xd0] sm:$0xff]
        %v370 = vld [vmem:[%s256 + $0xd8] sm:$0xff]
        %v371 = vld [vmem:[%s256 + $0xe0] sm:$0xff]
        %v372 = vld [vmem:[%s256 + $0xe8] sm:$0xff]
        %v373 = vld [vmem:[%s256 + $0xf0] sm:$0xff]
        %v374 = vld [vmem:[%s256 + $0xf8] sm:$0xff]
        %375 = vst.msk [vmem:[%s309 + $0x1] sm:$0xff] %vm300, %v343
        %376 = vst.msk [vmem:[%s309 + $0x9] sm:$0xff] %vm300, %v344
        %377 = vst.msk [vmem:[%s309 + $0x19] sm:$0xff] %vm300, %v345
        %378 = vst.msk [vmem:[%s309 + $0x21] sm:$0xff] %vm300, %v346
        %379 = vst.msk [vmem:[%s309 + $0x31] sm:$0xff] %vm300, %v347
        %380 = vst.msk [vmem:[%s309 + $0x39] sm:$0xff] %vm300, %v348
        %381 = vst.msk [vmem:[%s309 + $0x49] sm:$0xff] %vm300, %v349
        %382 = vst.msk [vmem:[%s309 + $0x51] sm:$0xff] %vm300, %v350
        %383 = vst.msk [vmem:[%s309 + $0x61] sm:$0xff] %vm300, %v351
        %384 = vst.msk [vmem:[%s309 + $0x69] sm:$0xff] %vm300, %v352
        %385 = vst.msk [vmem:[%s309 + $0x79] sm:$0xff] %vm300, %v353
        %386 = vst.msk [vmem:[%s309 + $0x81] sm:$0xff] %vm300, %v354
        %387 = vst.msk [vmem:[%s309 + $0x91] sm:$0xff] %vm300, %v355
        %388 = vst.msk [vmem:[%s309 + $0x99] sm:$0xff] %vm300, %v356
        %389 = vst.msk [vmem:[%s309 + $0xa9] sm:$0xff] %vm300, %v357
        %390 = vst.msk [vmem:[%s309 + $0xb1] sm:$0xff] %vm300, %v358
        %391 = vst.msk [vmem:[%s309 + $0xc1] sm:$0xff] %vm300, %v359
        %392 = vst.msk [vmem:[%s309 + $0xc9] sm:$0xff] %vm300, %v360
        %393 = vst.msk [vmem:[%s309 + $0xd9] sm:$0xff] %vm300, %v361
        %394 = vst.msk [vmem:[%s309 + $0xe1] sm:$0xff] %vm300, %v362
        %395 = vst.msk [vmem:[%s309 + $0xf1] sm:$0xff] %vm300, %v363
        %396 = vst.msk [vmem:[%s309 + $0xf9] sm:$0xff] %vm300, %v364
        %397 = vst.msk [vmem:[%s309 + $0x109] sm:$0xff] %vm300, %v365
        %398 = vst.msk [vmem:[%s309 + $0x111] sm:$0xff] %vm300, %v366
        %399 = vst.msk [vmem:[%s309 + $0x121] sm:$0xff] %vm300, %v367
        %400 = vst.msk [vmem:[%s309 + $0x129] sm:$0xff] %vm300, %v368
        %401 = vst.msk [vmem:[%s309 + $0x139] sm:$0xff] %vm300, %v369
        %402 = vst.msk [vmem:[%s309 + $0x141] sm:$0xff] %vm300, %v370
        %403 = vst.msk [vmem:[%s309 + $0x151] sm:$0xff] %vm300, %v371
        %404 = vst.msk [vmem:[%s309 + $0x159] sm:$0xff] %vm300, %v372
        %405 = vst.msk [vmem:[%s309 + $0x169] sm:$0xff] %vm300, %v373
        %406 = vst.msk [vmem:[%s309 + $0x171] sm:$0xff] %vm300, %v374
        %v407 = vld [vmem:[#allocation9] sm:$0xf]
        %v408 = vld [vmem:[#allocation9 + $0x4] sm:$0xf]
        %v409 = vld [vmem:[#allocation9 + $0x8] sm:$0xf]
        %v410 = vld [vmem:[#allocation9 + $0xc] sm:$0x3]
        %v411 = vld [vmem:[#allocation11] sm:$0x1]
        %v412 = vld [vmem:[#allocation2] sm:$0xff]
        %v413 = vld [vmem:[#allocation2 + $0x8] sm:$0xff]
        %v414 = vld [vmem:[#allocation2 + $0x18] sm:$0xff]
        %v415 = vld [vmem:[#allocation2 + $0x20] sm:$0xff]
        %v416 = vld [vmem:[#allocation2 + $0x30] sm:$0xff]
        %v417 = vld [vmem:[#allocation2 + $0x38] sm:$0xff]
        %v418 = vld [vmem:[#allocation2 + $0x48] sm:$0xff]
        %v419 = vld [vmem:[#allocation2 + $0x50] sm:$0xff]
        %v420 = vld [vmem:[#allocation2 + $0x60] sm:$0xff]
        %v421 = vld [vmem:[#allocation2 + $0x68] sm:$0xff]
        %v422 = vld [vmem:[#allocation2 + $0x78] sm:$0xff]
        %v423 = vld [vmem:[#allocation2 + $0x80] sm:$0xff]
        %v424 = vld [vmem:[#allocation2 + $0x90] sm:$0xff]
        %v425 = vld [vmem:[#allocation2 + $0x98] sm:$0xff]
        %v426 = vld [vmem:[#allocation2 + $0xa8] sm:$0xff]
        %v427 = vld [vmem:[#allocation2 + $0xb0] sm:$0xff]
        %v428 = vld [vmem:[#allocation2 + $0xc0] sm:$0xff]
        %v429 = vld [vmem:[#allocation2 + $0xc8] sm:$0xff]
        %v430 = vld [vmem:[#allocation2 + $0xd8] sm:$0xff]
        %v431 = vld [vmem:[#allocation2 + $0xe0] sm:$0xff]
        %v432 = vld [vmem:[#allocation2 + $0xf0] sm:$0xff]
        %v433 = vld [vmem:[#allocation2 + $0xf8] sm:$0xff]
        %v434 = vld [vmem:[#allocation2 + $0x108] sm:$0xff]
        %v435 = vld [vmem:[#allocation2 + $0x110] sm:$0xff]
        %v436 = vld [vmem:[#allocation2 + $0x120] sm:$0xff]
        %v437 = vld [vmem:[#allocation2 + $0x128] sm:$0xff]
        %v438 = vld [vmem:[#allocation2 + $0x138] sm:$0xff]
        %v439 = vld [vmem:[#allocation2 + $0x140] sm:$0xff]
        %v440 = vld [vmem:[#allocation2 + $0x150] sm:$0xff]
        %v441 = vld [vmem:[#allocation2 + $0x158] sm:$0xff]
        %v442 = vld [vmem:[#allocation2 + $0x168] sm:$0xff]
        %v443 = vld [vmem:[#allocation2 + $0x170] sm:$0xff]
        %v444 = vld [vmem:[#allocation2 + $0x1] sm:$0xff]
        %v445 = vld [vmem:[#allocation2 + $0x9] sm:$0xff]
        %v446 = vld [vmem:[#allocation2 + $0x19] sm:$0xff]
        %v447 = vld [vmem:[#allocation2 + $0x21] sm:$0xff]
        %v448 = vld [vmem:[#allocation2 + $0x31] sm:$0xff]
        %v449 = vld [vmem:[#allocation2 + $0x39] sm:$0xff]
        %v450 = vld [vmem:[#allocation2 + $0x49] sm:$0xff]
        %v451 = vld [vmem:[#allocation2 + $0x51] sm:$0xff]
        %v452 = vld [vmem:[#allocation2 + $0x61] sm:$0xff]
        %v453 = vld [vmem:[#allocation2 + $0x69] sm:$0xff]
        %v454 = vld [vmem:[#allocation2 + $0x79] sm:$0xff]
        %v455 = vld [vmem:[#allocation2 + $0x81] sm:$0xff]
        %v456 = vld [vmem:[#allocation2 + $0x91] sm:$0xff]
        %v457 = vld [vmem:[#allocation2 + $0x99] sm:$0xff]
        %v458 = vld [vmem:[#allocation2 + $0xa9] sm:$0xff]
        %v459 = vld [vmem:[#allocation2 + $0xb1] sm:$0xff]
        %v460 = vld [vmem:[#allocation2 + $0xc1] sm:$0xff]
        %v461 = vld [vmem:[#allocation2 + $0xc9] sm:$0xff]
        %v462 = vld [vmem:[#allocation2 + $0xd9] sm:$0xff]
        %v463 = vld [vmem:[#allocation2 + $0xe1] sm:$0xff]
        %v464 = vld [vmem:[#allocation2 + $0xf1] sm:$0xff]
        %v465 = vld [vmem:[#allocation2 + $0xf9] sm:$0xff]
        %v466 = vld [vmem:[#allocation2 + $0x109] sm:$0xff]
        %v467 = vld [vmem:[#allocation2 + $0x111] sm:$0xff]
        %v468 = vld [vmem:[#allocation2 + $0x121] sm:$0xff]
        %v469 = vld [vmem:[#allocation2 + $0x129] sm:$0xff]
        %v470 = vld [vmem:[#allocation2 + $0x139] sm:$0xff]
        %v471 = vld [vmem:[#allocation2 + $0x141] sm:$0xff]
        %v472 = vld [vmem:[#allocation2 + $0x151] sm:$0xff]
        %v473 = vld [vmem:[#allocation2 + $0x159] sm:$0xff]
        %v474 = vld [vmem:[#allocation2 + $0x169] sm:$0xff]
        %v475 = vld [vmem:[#allocation2 + $0x171] sm:$0xff]
        %v476 = vld [vmem:[#allocation2 + $0x2] sm:$0xff]
        %v477 = vld [vmem:[#allocation2 + $0xa] sm:$0xff]
        %v478 = vld [vmem:[#allocation2 + $0x1a] sm:$0xff]
        %v479 = vld [vmem:[#allocation2 + $0x22] sm:$0xff]
        %v480 = vld [vmem:[#allocation2 + $0x32] sm:$0xff]
        %v481 = vld [vmem:[#allocation2 + $0x3a] sm:$0xff]
        %v482 = vld [vmem:[#allocation2 + $0x4a] sm:$0xff]
        %v483 = vld [vmem:[#allocation2 + $0x52] sm:$0xff]
        %v484 = vld [vmem:[#allocation2 + $0x62] sm:$0xff]
        %v485 = vld [vmem:[#allocation2 + $0x6a] sm:$0xff]
        %v486 = vld [vmem:[#allocation2 + $0x7a] sm:$0xff]
        %v487 = vld [vmem:[#allocation2 + $0x82] sm:$0xff]
        %v488 = vld [vmem:[#allocation2 + $0x92] sm:$0xff]
        %v489 = vld [vmem:[#allocation2 + $0x9a] sm:$0xff]
        %v490 = vld [vmem:[#allocation2 + $0xaa] sm:$0xff]
        %v491 = vld [vmem:[#allocation2 + $0xb2] sm:$0xff]
        %v492 = vld [vmem:[#allocation2 + $0xc2] sm:$0xff]
        %v493 = vld [vmem:[#allocation2 + $0xca] sm:$0xff]
        %v494 = vld [vmem:[#allocation2 + $0xda] sm:$0xff]
        %v495 = vld [vmem:[#allocation2 + $0xe2] sm:$0xff]
        %v496 = vld [vmem:[#allocation2 + $0xf2] sm:$0xff]
        %v497 = vld [vmem:[#allocation2 + $0xfa] sm:$0xff]
        %v498 = vld [vmem:[#allocation2 + $0x10a] sm:$0xff]
        %v499 = vld [vmem:[#allocation2 + $0x112] sm:$0xff]
        %v500 = vld [vmem:[#allocation2 + $0x122] sm:$0xff]
        %v501 = vld [vmem:[#allocation2 + $0x12a] sm:$0xff]
        %v502 = vld [vmem:[#allocation2 + $0x13a] sm:$0xff]
        %v503 = vld [vmem:[#allocation2 + $0x142] sm:$0xff]
        %v504 = vld [vmem:[#allocation2 + $0x152] sm:$0xff]
        %v505 = vld [vmem:[#allocation2 + $0x15a] sm:$0xff]
        %v506 = vld [vmem:[#allocation2 + $0x16a] sm:$0xff]
        %v507 = vld [vmem:[#allocation2 + $0x172] sm:$0xff]
        %v508 = vld [vmem:[%s309] sm:$0xff]
        %v509 = vld [vmem:[%s309 + $0x8] sm:$0xff]
        %v510 = vld [vmem:[%s309 + $0x18] sm:$0xff]
        %v511 = vld [vmem:[%s309 + $0x20] sm:$0xff]
        %v512 = vld [vmem:[%s309 + $0x30] sm:$0xff]
        %v513 = vld [vmem:[%s309 + $0x38] sm:$0xff]
        %v514 = vld [vmem:[%s309 + $0x48] sm:$0xff]
        %v515 = vld [vmem:[%s309 + $0x50] sm:$0xff]
        %v516 = vld [vmem:[%s309 + $0x60] sm:$0xff]
        %v517 = vld [vmem:[%s309 + $0x68] sm:$0xff]
        %v518 = vld [vmem:[%s309 + $0x78] sm:$0xff]
        %v519 = vld [vmem:[%s309 + $0x80] sm:$0xff]
        %v520 = vld [vmem:[%s309 + $0x90] sm:$0xff]
        %v521 = vld [vmem:[%s309 + $0x98] sm:$0xff]
        %v522 = vld [vmem:[%s309 + $0xa8] sm:$0xff]
        %v523 = vld [vmem:[%s309 + $0xb0] sm:$0xff]
        %v524 = vld [vmem:[%s309 + $0xc0] sm:$0xff]
        %v525 = vld [vmem:[%s309 + $0xc8] sm:$0xff]
        %v526 = vld [vmem:[%s309 + $0xd8] sm:$0xff]
        %v527 = vld [vmem:[%s309 + $0xe0] sm:$0xff]
        %v528 = vld [vmem:[%s309 + $0xf0] sm:$0xff]
        %v529 = vld [vmem:[%s309 + $0xf8] sm:$0xff]
        %v530 = vld [vmem:[%s309 + $0x108] sm:$0xff]
        %v531 = vld [vmem:[%s309 + $0x110] sm:$0xff]
        %v532 = vld [vmem:[%s309 + $0x120] sm:$0xff]
        %v533 = vld [vmem:[%s309 + $0x128] sm:$0xff]
        %v534 = vld [vmem:[%s309 + $0x138] sm:$0xff]
        %v535 = vld [vmem:[%s309 + $0x140] sm:$0xff]
        %v536 = vld [vmem:[%s309 + $0x150] sm:$0xff]
        %v537 = vld [vmem:[%s309 + $0x158] sm:$0xff]
        %v538 = vld [vmem:[%s309 + $0x168] sm:$0xff]
        %v539 = vld [vmem:[%s309 + $0x170] sm:$0xff]
        %v540 = vld [vmem:[%s309 + $0x1] sm:$0xff]
        %v541 = vld [vmem:[%s309 + $0x9] sm:$0xff]
        %v542 = vld [vmem:[%s309 + $0x19] sm:$0xff]
        %v543 = vld [vmem:[%s309 + $0x21] sm:$0xff]
        %v544 = vld [vmem:[%s309 + $0x31] sm:$0xff]
        %v545 = vld [vmem:[%s309 + $0x39] sm:$0xff]
        %v546 = vld [vmem:[%s309 + $0x49] sm:$0xff]
        %v547 = vld [vmem:[%s309 + $0x51] sm:$0xff]
        %v548 = vld [vmem:[%s309 + $0x61] sm:$0xff]
        %v549 = vld [vmem:[%s309 + $0x69] sm:$0xff]
        %v550 = vld [vmem:[%s309 + $0x79] sm:$0xff]
        %v551 = vld [vmem:[%s309 + $0x81] sm:$0xff]
        %v552 = vld [vmem:[%s309 + $0x91] sm:$0xff]
        %v553 = vld [vmem:[%s309 + $0x99] sm:$0xff]
        %v554 = vld [vmem:[%s309 + $0xa9] sm:$0xff]
        %v555 = vld [vmem:[%s309 + $0xb1] sm:$0xff]
        %v556 = vld [vmem:[%s309 + $0xc1] sm:$0xff]
        %v557 = vld [vmem:[%s309 + $0xc9] sm:$0xff]
        %v558 = vld [vmem:[%s309 + $0xd9] sm:$0xff]
        %v559 = vld [vmem:[%s309 + $0xe1] sm:$0xff]
        %v560 = vld [vmem:[%s309 + $0xf1] sm:$0xff]
        %v561 = vld [vmem:[%s309 + $0xf9] sm:$0xff]
        %v562 = vld [vmem:[%s309 + $0x109] sm:$0xff]
        %v563 = vld [vmem:[%s309 + $0x111] sm:$0xff]
        %v564 = vld [vmem:[%s309 + $0x121] sm:$0xff]
        %v565 = vld [vmem:[%s309 + $0x129] sm:$0xff]
        %v566 = vld [vmem:[%s309 + $0x139] sm:$0xff]
        %v567 = vld [vmem:[%s309 + $0x141] sm:$0xff]
        %v568 = vld [vmem:[%s309 + $0x151] sm:$0xff]
        %v569 = vld [vmem:[%s309 + $0x159] sm:$0xff]
        %v570 = vld [vmem:[%s309 + $0x169] sm:$0xff]
        %v571 = vld [vmem:[%s309 + $0x171] sm:$0xff]
        %v572 = vld [vmem:[%s309 + $0x2] sm:$0xff]
        %v573 = vld [vmem:[%s309 + $0xa] sm:$0xff]
        %v574 = vld [vmem:[%s309 + $0x1a] sm:$0xff]
        %v575 = vld [vmem:[%s309 + $0x22] sm:$0xff]
        %v576 = vld [vmem:[%s309 + $0x32] sm:$0xff]
        %v577 = vld [vmem:[%s309 + $0x3a] sm:$0xff]
        %v578 = vld [vmem:[%s309 + $0x4a] sm:$0xff]
        %v579 = vld [vmem:[%s309 + $0x52] sm:$0xff]
        %v580 = vld [vmem:[%s309 + $0x62] sm:$0xff]
        %v581 = vld [vmem:[%s309 + $0x6a] sm:$0xff]
        %v582 = vld [vmem:[%s309 + $0x7a] sm:$0xff]
        %v583 = vld [vmem:[%s309 + $0x82] sm:$0xff]
        %v584 = vld [vmem:[%s309 + $0x92] sm:$0xff]
        %v585 = vld [vmem:[%s309 + $0x9a] sm:$0xff]
        %v586 = vld [vmem:[%s309 + $0xaa] sm:$0xff]
        %v587 = vld [vmem:[%s309 + $0xb2] sm:$0xff]
        %v588 = vld [vmem:[%s309 + $0xc2] sm:$0xff]
        %v589 = vld [vmem:[%s309 + $0xca] sm:$0xff]
        %v590 = vld [vmem:[%s309 + $0xda] sm:$0xff]
        %v591 = vld [vmem:[%s309 + $0xe2] sm:$0xff]
        %v592 = vld [vmem:[%s309 + $0xf2] sm:$0xff]
        %v593 = vld [vmem:[%s309 + $0xfa] sm:$0xff]
        %v594 = vld [vmem:[%s309 + $0x10a] sm:$0xff]
        %v595 = vld [vmem:[%s309 + $0x112] sm:$0xff]
        %v596 = vld [vmem:[%s309 + $0x122] sm:$0xff]
        %v597 = vld [vmem:[%s309 + $0x12a] sm:$0xff]
        %v598 = vld [vmem:[%s309 + $0x13a] sm:$0xff]
        %v599 = vld [vmem:[%s309 + $0x142] sm:$0xff]
        %v600 = vld [vmem:[%s309 + $0x152] sm:$0xff]
        %v601 = vld [vmem:[%s309 + $0x15a] sm:$0xff]
        %v602 = vld [vmem:[%s309 + $0x16a] sm:$0xff]
        %v603 = vld [vmem:[%s309 + $0x172] sm:$0xff]
        %s604 = scalar_lea.vmem [#allocation2], 48
        %v605 = vld [vmem:[%s604] sm:$0xff]
        %v606 = vld [vmem:[%s604 + $0x8] sm:$0xff]
        %v607 = vld [vmem:[%s604 + $0x18] sm:$0xff]
        %v608 = vld [vmem:[%s604 + $0x20] sm:$0xff]
        %v609 = vld [vmem:[%s604 + $0x30] sm:$0xff]
        %v610 = vld [vmem:[%s604 + $0x38] sm:$0xff]
        %v611 = vld [vmem:[%s604 + $0x48] sm:$0xff]
        %v612 = vld [vmem:[%s604 + $0x50] sm:$0xff]
        %v613 = vld [vmem:[%s604 + $0x60] sm:$0xff]
        %v614 = vld [vmem:[%s604 + $0x68] sm:$0xff]
        %v615 = vld [vmem:[%s604 + $0x78] sm:$0xff]
        %v616 = vld [vmem:[%s604 + $0x80] sm:$0xff]
        %v617 = vld [vmem:[%s604 + $0x90] sm:$0xff]
        %v618 = vld [vmem:[%s604 + $0x98] sm:$0xff]
        %v619 = vld [vmem:[%s604 + $0xa8] sm:$0xff]
        %v620 = vld [vmem:[%s604 + $0xb0] sm:$0xff]
        %v621 = vld [vmem:[%s604 + $0xc0] sm:$0xff]
        %v622 = vld [vmem:[%s604 + $0xc8] sm:$0xff]
        %v623 = vld [vmem:[%s604 + $0xd8] sm:$0xff]
        %v624 = vld [vmem:[%s604 + $0xe0] sm:$0xff]
        %v625 = vld [vmem:[%s604 + $0xf0] sm:$0xff]
        %v626 = vld [vmem:[%s604 + $0xf8] sm:$0xff]
        %v627 = vld [vmem:[%s604 + $0x108] sm:$0xff]
        %v628 = vld [vmem:[%s604 + $0x110] sm:$0xff]
        %v629 = vld [vmem:[%s604 + $0x120] sm:$0xff]
        %v630 = vld [vmem:[%s604 + $0x128] sm:$0xff]
        %v631 = vld [vmem:[%s604 + $0x138] sm:$0xff]
        %v632 = vld [vmem:[%s604 + $0x140] sm:$0xff]
        %v633 = vld [vmem:[%s604 + $0x150] sm:$0xff]
        %v634 = vld [vmem:[%s604 + $0x158] sm:$0xff]
        %v635 = vld [vmem:[%s604 + $0x168] sm:$0xff]
        %v636 = vld [vmem:[%s604 + $0x170] sm:$0xff]
        %v637 = vld [vmem:[%s604 + $0x1] sm:$0xff]
        %v638 = vld [vmem:[%s604 + $0x9] sm:$0xff]
        %v639 = vld [vmem:[%s604 + $0x19] sm:$0xff]
        %v640 = vld [vmem:[%s604 + $0x21] sm:$0xff]
        %v641 = vld [vmem:[%s604 + $0x31] sm:$0xff]
        %v642 = vld [vmem:[%s604 + $0x39] sm:$0xff]
        %v643 = vld [vmem:[%s604 + $0x49] sm:$0xff]
        %v644 = vld [vmem:[%s604 + $0x51] sm:$0xff]
        %v645 = vld [vmem:[%s604 + $0x61] sm:$0xff]
        %v646 = vld [vmem:[%s604 + $0x69] sm:$0xff]
        %v647 = vld [vmem:[%s604 + $0x79] sm:$0xff]
        %v648 = vld [vmem:[%s604 + $0x81] sm:$0xff]
        %v649 = vld [vmem:[%s604 + $0x91] sm:$0xff]
        %v650 = vld [vmem:[%s604 + $0x99] sm:$0xff]
        %v651 = vld [vmem:[%s604 + $0xa9] sm:$0xff]
        %v652 = vld [vmem:[%s604 + $0xb1] sm:$0xff]
        %v653 = vld [vmem:[%s604 + $0xc1] sm:$0xff]
        %v654 = vld [vmem:[%s604 + $0xc9] sm:$0xff]
        %v655 = vld [vmem:[%s604 + $0xd9] sm:$0xff]
        %v656 = vld [vmem:[%s604 + $0xe1] sm:$0xff]
        %v657 = vld [vmem:[%s604 + $0xf1] sm:$0xff]
        %v658 = vld [vmem:[%s604 + $0xf9] sm:$0xff]
        %v659 = vld [vmem:[%s604 + $0x109] sm:$0xff]
        %v660 = vld [vmem:[%s604 + $0x111] sm:$0xff]
        %v661 = vld [vmem:[%s604 + $0x121] sm:$0xff]
        %v662 = vld [vmem:[%s604 + $0x129] sm:$0xff]
        %v663 = vld [vmem:[%s604 + $0x139] sm:$0xff]
        %v664 = vld [vmem:[%s604 + $0x141] sm:$0xff]
        %v665 = vld [vmem:[%s604 + $0x151] sm:$0xff]
        %v666 = vld [vmem:[%s604 + $0x159] sm:$0xff]
        %v667 = vld [vmem:[%s604 + $0x169] sm:$0xff]
        %v668 = vld [vmem:[%s604 + $0x171] sm:$0xff]
        %v669 = vld [vmem:[%s604 + $0x2] sm:$0xff]
        %v670 = vld [vmem:[%s604 + $0xa] sm:$0xff]
        %v671 = vld [vmem:[%s604 + $0x1a] sm:$0xff]
        %v672 = vld [vmem:[%s604 + $0x22] sm:$0xff]
        %v673 = vld [vmem:[%s604 + $0x32] sm:$0xff]
        %v674 = vld [vmem:[%s604 + $0x3a] sm:$0xff]
        %v675 = vld [vmem:[%s604 + $0x4a] sm:$0xff]
        %v676 = vld [vmem:[%s604 + $0x52] sm:$0xff]
        %v677 = vld [vmem:[%s604 + $0x62] sm:$0xff]
        %v678 = vld [vmem:[%s604 + $0x6a] sm:$0xff]
        %v679 = vld [vmem:[%s604 + $0x7a] sm:$0xff]
        %v680 = vld [vmem:[%s604 + $0x82] sm:$0xff]
        %v681 = vld [vmem:[%s604 + $0x92] sm:$0xff]
        %v682 = vld [vmem:[%s604 + $0x9a] sm:$0xff]
        %v683 = vld [vmem:[%s604 + $0xaa] sm:$0xff]
        %v684 = vld [vmem:[%s604 + $0xb2] sm:$0xff]
        %v685 = vld [vmem:[%s604 + $0xc2] sm:$0xff]
        %v686 = vld [vmem:[%s604 + $0xca] sm:$0xff]
        %v687 = vld [vmem:[%s604 + $0xda] sm:$0xff]
        %v688 = vld [vmem:[%s604 + $0xe2] sm:$0xff]
        %v689 = vld [vmem:[%s604 + $0xf2] sm:$0xff]
        %v690 = vld [vmem:[%s604 + $0xfa] sm:$0xff]
        %v691 = vld [vmem:[%s604 + $0x10a] sm:$0xff]
        %v692 = vld [vmem:[%s604 + $0x112] sm:$0xff]
        %v693 = vld [vmem:[%s604 + $0x122] sm:$0xff]
        %v694 = vld [vmem:[%s604 + $0x12a] sm:$0xff]
        %v695 = vld [vmem:[%s604 + $0x13a] sm:$0xff]
        %v696 = vld [vmem:[%s604 + $0x142] sm:$0xff]
        %v697 = vld [vmem:[%s604 + $0x152] sm:$0xff]
        %v698 = vld [vmem:[%s604 + $0x15a] sm:$0xff]
        %v699 = vld [vmem:[%s604 + $0x16a] sm:$0xff]
        %v700 = vld [vmem:[%s604 + $0x172] sm:$0xff]
        %733 = vrot.lane.b32.xlu0 %v444, 3
        %v734 = vpop.permute.xlu0 %733
        %735 = vrot.lane.b32.xlu0 %v445, 3
        %v736 = vpop.permute.xlu0 %735
        %737 = vrot.lane.b32.xlu0 %v446, 3
        %v738 = vpop.permute.xlu0 %737
        %739 = vrot.lane.b32.xlu0 %v447, 3
        %v740 = vpop.permute.xlu0 %739
        %741 = vrot.lane.b32.xlu0 %v448, 3
        %v742 = vpop.permute.xlu0 %741
        %743 = vrot.lane.b32.xlu0 %v449, 3
        %v744 = vpop.permute.xlu0 %743
        %745 = vrot.lane.b32.xlu0 %v450, 3
        %v746 = vpop.permute.xlu0 %745
        %747 = vrot.lane.b32.xlu0 %v451, 3
        %v748 = vpop.permute.xlu0 %747
        %749 = vrot.lane.b32.xlu0 %v452, 3
        %v750 = vpop.permute.xlu0 %749
        %751 = vrot.lane.b32.xlu0 %v453, 3
        %v752 = vpop.permute.xlu0 %751
        %753 = vrot.lane.b32.xlu0 %v454, 3
        %v754 = vpop.permute.xlu0 %753
        %755 = vrot.lane.b32.xlu0 %v455, 3
        %v756 = vpop.permute.xlu0 %755
        %757 = vrot.lane.b32.xlu0 %v456, 3
        %v758 = vpop.permute.xlu0 %757
        %759 = vrot.lane.b32.xlu0 %v457, 3
        %v760 = vpop.permute.xlu0 %759
        %761 = vrot.lane.b32.xlu0 %v458, 3
        %v762 = vpop.permute.xlu0 %761
        %763 = vrot.lane.b32.xlu0 %v459, 3
        %v764 = vpop.permute.xlu0 %763
        %765 = vrot.lane.b32.xlu0 %v460, 3
        %v766 = vpop.permute.xlu0 %765
        %767 = vrot.lane.b32.xlu0 %v461, 3
        %v768 = vpop.permute.xlu0 %767
        %769 = vrot.lane.b32.xlu0 %v462, 3
        %v770 = vpop.permute.xlu0 %769
        %771 = vrot.lane.b32.xlu0 %v463, 3
        %v772 = vpop.permute.xlu0 %771
        %773 = vrot.lane.b32.xlu0 %v464, 3
        %v774 = vpop.permute.xlu0 %773
        %775 = vrot.lane.b32.xlu0 %v465, 3
        %v776 = vpop.permute.xlu0 %775
        %777 = vrot.lane.b32.xlu0 %v466, 3
        %v778 = vpop.permute.xlu0 %777
        %779 = vrot.lane.b32.xlu0 %v467, 3
        %v780 = vpop.permute.xlu0 %779
        %781 = vrot.lane.b32.xlu0 %v468, 3
        %v782 = vpop.permute.xlu0 %781
        %783 = vrot.lane.b32.xlu0 %v469, 3
        %v784 = vpop.permute.xlu0 %783
        %785 = vrot.lane.b32.xlu0 %v470, 3
        %v786 = vpop.permute.xlu0 %785
        %787 = vrot.lane.b32.xlu0 %v471, 3
        %v788 = vpop.permute.xlu0 %787
        %789 = vrot.lane.b32.xlu0 %v472, 3
        %v790 = vpop.permute.xlu0 %789
        %791 = vrot.lane.b32.xlu0 %v473, 3
        %v792 = vpop.permute.xlu0 %791
        %793 = vrot.lane.b32.xlu0 %v474, 3
        %v794 = vpop.permute.xlu0 %793
        %795 = vrot.lane.b32.xlu0 %v475, 3
        %v796 = vpop.permute.xlu0 %795
        %861 = vrot.lane.b32.xlu0 %v476, 6
        %v862 = vpop.permute.xlu0 %861
        %863 = vrot.lane.b32.xlu0 %v477, 6
        %v864 = vpop.permute.xlu0 %863
        %865 = vrot.lane.b32.xlu0 %v478, 6
        %v866 = vpop.permute.xlu0 %865
        %867 = vrot.lane.b32.xlu0 %v479, 6
        %v868 = vpop.permute.xlu0 %867
        %869 = vrot.lane.b32.xlu0 %v480, 6
        %v870 = vpop.permute.xlu0 %869
        %871 = vrot.lane.b32.xlu0 %v481, 6
        %v872 = vpop.permute.xlu0 %871
        %873 = vrot.lane.b32.xlu0 %v482, 6
        %v874 = vpop.permute.xlu0 %873
        %875 = vrot.lane.b32.xlu0 %v483, 6
        %v876 = vpop.permute.xlu0 %875
        %877 = vrot.lane.b32.xlu0 %v484, 6
        %v878 = vpop.permute.xlu0 %877
        %879 = vrot.lane.b32.xlu0 %v485, 6
        %v880 = vpop.permute.xlu0 %879
        %881 = vrot.lane.b32.xlu0 %v486, 6
        %v882 = vpop.permute.xlu0 %881
        %883 = vrot.lane.b32.xlu0 %v487, 6
        %v884 = vpop.permute.xlu0 %883
        %885 = vrot.lane.b32.xlu0 %v488, 6
        %v886 = vpop.permute.xlu0 %885
        %887 = vrot.lane.b32.xlu0 %v489, 6
        %v888 = vpop.permute.xlu0 %887
        %889 = vrot.lane.b32.xlu0 %v490, 6
        %v890 = vpop.permute.xlu0 %889
        %891 = vrot.lane.b32.xlu0 %v491, 6
        %v892 = vpop.permute.xlu0 %891
        %893 = vrot.lane.b32.xlu0 %v492, 6
        %v894 = vpop.permute.xlu0 %893
        %895 = vrot.lane.b32.xlu0 %v493, 6
        %v896 = vpop.permute.xlu0 %895
        %897 = vrot.lane.b32.xlu0 %v494, 6
        %v898 = vpop.permute.xlu0 %897
        %899 = vrot.lane.b32.xlu0 %v495, 6
        %v900 = vpop.permute.xlu0 %899
        %901 = vrot.lane.b32.xlu0 %v496, 6
        %v902 = vpop.permute.xlu0 %901
        %903 = vrot.lane.b32.xlu0 %v497, 6
        %v904 = vpop.permute.xlu0 %903
        %905 = vrot.lane.b32.xlu0 %v498, 6
        %v906 = vpop.permute.xlu0 %905
        %907 = vrot.lane.b32.xlu0 %v499, 6
        %v908 = vpop.permute.xlu0 %907
        %909 = vrot.lane.b32.xlu0 %v500, 6
        %v910 = vpop.permute.xlu0 %909
        %911 = vrot.lane.b32.xlu0 %v501, 6
        %v912 = vpop.permute.xlu0 %911
        %913 = vrot.lane.b32.xlu0 %v502, 6
        %v914 = vpop.permute.xlu0 %913
        %915 = vrot.lane.b32.xlu0 %v503, 6
        %v916 = vpop.permute.xlu0 %915
        %917 = vrot.lane.b32.xlu0 %v504, 6
        %v918 = vpop.permute.xlu0 %917
        %919 = vrot.lane.b32.xlu0 %v505, 6
        %v920 = vpop.permute.xlu0 %919
        %921 = vrot.lane.b32.xlu0 %v506, 6
        %v922 = vpop.permute.xlu0 %921
        %923 = vrot.lane.b32.xlu0 %v507, 6
        %v924 = vpop.permute.xlu0 %923
        %989 = vrot.lane.b32.xlu0 %v508, 9
        %v990 = vpop.permute.xlu0 %989
        %991 = vrot.lane.b32.xlu0 %v509, 9
        %v992 = vpop.permute.xlu0 %991
        %993 = vrot.lane.b32.xlu0 %v510, 9
        %v994 = vpop.permute.xlu0 %993
        %995 = vrot.lane.b32.xlu0 %v511, 9
        %v996 = vpop.permute.xlu0 %995
        %997 = vrot.lane.b32.xlu0 %v512, 9
        %v998 = vpop.permute.xlu0 %997
        %999 = vrot.lane.b32.xlu0 %v513, 9
        %v1000 = vpop.permute.xlu0 %999
        %1001 = vrot.lane.b32.xlu0 %v514, 9
        %v1002 = vpop.permute.xlu0 %1001
        %1003 = vrot.lane.b32.xlu0 %v515, 9
        %v1004 = vpop.permute.xlu0 %1003
        %1005 = vrot.lane.b32.xlu0 %v516, 9
        %v1006 = vpop.permute.xlu0 %1005
        %1007 = vrot.lane.b32.xlu0 %v517, 9
        %v1008 = vpop.permute.xlu0 %1007
        %1009 = vrot.lane.b32.xlu0 %v518, 9
        %v1010 = vpop.permute.xlu0 %1009
        %1011 = vrot.lane.b32.xlu0 %v519, 9
        %v1012 = vpop.permute.xlu0 %1011
        %1013 = vrot.lane.b32.xlu0 %v520, 9
        %v1014 = vpop.permute.xlu0 %1013
        %1015 = vrot.lane.b32.xlu0 %v521, 9
        %v1016 = vpop.permute.xlu0 %1015
        %1017 = vrot.lane.b32.xlu0 %v522, 9
        %v1018 = vpop.permute.xlu0 %1017
        %1019 = vrot.lane.b32.xlu0 %v523, 9
        %v1020 = vpop.permute.xlu0 %1019
        %1021 = vrot.lane.b32.xlu0 %v524, 9
        %v1022 = vpop.permute.xlu0 %1021
        %1023 = vrot.lane.b32.xlu0 %v525, 9
        %v1024 = vpop.permute.xlu0 %1023
        %1025 = vrot.lane.b32.xlu0 %v526, 9
        %v1026 = vpop.permute.xlu0 %1025
        %1027 = vrot.lane.b32.xlu0 %v527, 9
        %v1028 = vpop.permute.xlu0 %1027
        %1029 = vrot.lane.b32.xlu0 %v528, 9
        %v1030 = vpop.permute.xlu0 %1029
        %1031 = vrot.lane.b32.xlu0 %v529, 9
        %v1032 = vpop.permute.xlu0 %1031
        %1033 = vrot.lane.b32.xlu0 %v530, 9
        %v1034 = vpop.permute.xlu0 %1033
        %1035 = vrot.lane.b32.xlu0 %v531, 9
        %v1036 = vpop.permute.xlu0 %1035
        %1037 = vrot.lane.b32.xlu0 %v532, 9
        %v1038 = vpop.permute.xlu0 %1037
        %1039 = vrot.lane.b32.xlu0 %v533, 9
        %v1040 = vpop.permute.xlu0 %1039
        %1041 = vrot.lane.b32.xlu0 %v534, 9
        %v1042 = vpop.permute.xlu0 %1041
        %1043 = vrot.lane.b32.xlu0 %v535, 9
        %v1044 = vpop.permute.xlu0 %1043
        %1045 = vrot.lane.b32.xlu0 %v536, 9
        %v1046 = vpop.permute.xlu0 %1045
        %1047 = vrot.lane.b32.xlu0 %v537, 9
        %v1048 = vpop.permute.xlu0 %1047
        %1049 = vrot.lane.b32.xlu0 %v538, 9
        %v1050 = vpop.permute.xlu0 %1049
        %1051 = vrot.lane.b32.xlu0 %v539, 9
        %v1052 = vpop.permute.xlu0 %1051
        %1117 = vrot.lane.b32.xlu0 %v540, 12
        %v1118 = vpop.permute.xlu0 %1117
        %1119 = vrot.lane.b32.xlu0 %v541, 12
        %v1120 = vpop.permute.xlu0 %1119
        %1121 = vrot.lane.b32.xlu0 %v542, 12
        %v1122 = vpop.permute.xlu0 %1121
        %1123 = vrot.lane.b32.xlu0 %v543, 12
        %v1124 = vpop.permute.xlu0 %1123
        %1125 = vrot.lane.b32.xlu0 %v544, 12
        %v1126 = vpop.permute.xlu0 %1125
        %1127 = vrot.lane.b32.xlu0 %v545, 12
        %v1128 = vpop.permute.xlu0 %1127
        %1129 = vrot.lane.b32.xlu0 %v546, 12
        %v1130 = vpop.permute.xlu0 %1129
        %1131 = vrot.lane.b32.xlu0 %v547, 12
        %v1132 = vpop.permute.xlu0 %1131
        %1133 = vrot.lane.b32.xlu0 %v548, 12
        %v1134 = vpop.permute.xlu0 %1133
        %1135 = vrot.lane.b32.xlu0 %v549, 12
        %v1136 = vpop.permute.xlu0 %1135
        %1137 = vrot.lane.b32.xlu0 %v550, 12
        %v1138 = vpop.permute.xlu0 %1137
        %1139 = vrot.lane.b32.xlu0 %v551, 12
        %v1140 = vpop.permute.xlu0 %1139
        %1141 = vrot.lane.b32.xlu0 %v552, 12
        %v1142 = vpop.permute.xlu0 %1141
        %1143 = vrot.lane.b32.xlu0 %v553, 12
        %v1144 = vpop.permute.xlu0 %1143
        %1145 = vrot.lane.b32.xlu0 %v554, 12
        %v1146 = vpop.permute.xlu0 %1145
        %1147 = vrot.lane.b32.xlu0 %v555, 12
        %v1148 = vpop.permute.xlu0 %1147
        %1149 = vrot.lane.b32.xlu0 %v556, 12
        %v1150 = vpop.permute.xlu0 %1149
        %1151 = vrot.lane.b32.xlu0 %v557, 12
        %v1152 = vpop.permute.xlu0 %1151
        %1153 = vrot.lane.b32.xlu0 %v558, 12
        %v1154 = vpop.permute.xlu0 %1153
        %1155 = vrot.lane.b32.xlu0 %v559, 12
        %v1156 = vpop.permute.xlu0 %1155
        %1157 = vrot.lane.b32.xlu0 %v560, 12
        %v1158 = vpop.permute.xlu0 %1157
        %1159 = vrot.lane.b32.xlu0 %v561, 12
        %v1160 = vpop.permute.xlu0 %1159
        %1161 = vrot.lane.b32.xlu0 %v562, 12
        %v1162 = vpop.permute.xlu0 %1161
        %1163 = vrot.lane.b32.xlu0 %v563, 12
        %v1164 = vpop.permute.xlu0 %1163
        %1165 = vrot.lane.b32.xlu0 %v564, 12
        %v1166 = vpop.permute.xlu0 %1165
        %1167 = vrot.lane.b32.xlu0 %v565, 12
        %v1168 = vpop.permute.xlu0 %1167
        %1169 = vrot.lane.b32.xlu0 %v566, 12
        %v1170 = vpop.permute.xlu0 %1169
        %1171 = vrot.lane.b32.xlu0 %v567, 12
        %v1172 = vpop.permute.xlu0 %1171
        %1173 = vrot.lane.b32.xlu0 %v568, 12
        %v1174 = vpop.permute.xlu0 %1173
        %1175 = vrot.lane.b32.xlu0 %v569, 12
        %v1176 = vpop.permute.xlu0 %1175
        %1177 = vrot.lane.b32.xlu0 %v570, 12
        %v1178 = vpop.permute.xlu0 %1177
        %1179 = vrot.lane.b32.xlu0 %v571, 12
        %v1180 = vpop.permute.xlu0 %1179
        %1245 = vrot.lane.b32.xlu0 %v572, 15
        %v1246 = vpop.permute.xlu0 %1245
        %1247 = vrot.lane.b32.xlu0 %v573, 15
        %v1248 = vpop.permute.xlu0 %1247
        %1249 = vrot.lane.b32.xlu0 %v574, 15
        %v1250 = vpop.permute.xlu0 %1249
        %1251 = vrot.lane.b32.xlu0 %v575, 15
        %v1252 = vpop.permute.xlu0 %1251
        %1253 = vrot.lane.b32.xlu0 %v576, 15
        %v1254 = vpop.permute.xlu0 %1253
        %1255 = vrot.lane.b32.xlu0 %v577, 15
        %v1256 = vpop.permute.xlu0 %1255
        %1257 = vrot.lane.b32.xlu0 %v578, 15
        %v1258 = vpop.permute.xlu0 %1257
        %1259 = vrot.lane.b32.xlu0 %v579, 15
        %v1260 = vpop.permute.xlu0 %1259
        %1261 = vrot.lane.b32.xlu0 %v580, 15
        %v1262 = vpop.permute.xlu0 %1261
        %1263 = vrot.lane.b32.xlu0 %v581, 15
        %v1264 = vpop.permute.xlu0 %1263
        %1265 = vrot.lane.b32.xlu0 %v582, 15
        %v1266 = vpop.permute.xlu0 %1265
        %1267 = vrot.lane.b32.xlu0 %v583, 15
        %v1268 = vpop.permute.xlu0 %1267
        %1269 = vrot.lane.b32.xlu0 %v584, 15
        %v1270 = vpop.permute.xlu0 %1269
        %1271 = vrot.lane.b32.xlu0 %v585, 15
        %v1272 = vpop.permute.xlu0 %1271
        %1273 = vrot.lane.b32.xlu0 %v586, 15
        %v1274 = vpop.permute.xlu0 %1273
        %1275 = vrot.lane.b32.xlu0 %v587, 15
        %v1276 = vpop.permute.xlu0 %1275
        %1277 = vrot.lane.b32.xlu0 %v588, 15
        %v1278 = vpop.permute.xlu0 %1277
        %1279 = vrot.lane.b32.xlu0 %v589, 15
        %v1280 = vpop.permute.xlu0 %1279
        %1281 = vrot.lane.b32.xlu0 %v590, 15
        %v1282 = vpop.permute.xlu0 %1281
        %1283 = vrot.lane.b32.xlu0 %v591, 15
        %v1284 = vpop.permute.xlu0 %1283
        %1285 = vrot.lane.b32.xlu0 %v592, 15
        %v1286 = vpop.permute.xlu0 %1285
        %1287 = vrot.lane.b32.xlu0 %v593, 15
        %v1288 = vpop.permute.xlu0 %1287
        %1289 = vrot.lane.b32.xlu0 %v594, 15
        %v1290 = vpop.permute.xlu0 %1289
        %1291 = vrot.lane.b32.xlu0 %v595, 15
        %v1292 = vpop.permute.xlu0 %1291
        %1293 = vrot.lane.b32.xlu0 %v596, 15
        %v1294 = vpop.permute.xlu0 %1293
        %1295 = vrot.lane.b32.xlu0 %v597, 15
        %v1296 = vpop.permute.xlu0 %1295
        %1297 = vrot.lane.b32.xlu0 %v598, 15
        %v1298 = vpop.permute.xlu0 %1297
        %1299 = vrot.lane.b32.xlu0 %v599, 15
        %v1300 = vpop.permute.xlu0 %1299
        %1301 = vrot.lane.b32.xlu0 %v600, 15
        %v1302 = vpop.permute.xlu0 %1301
        %1303 = vrot.lane.b32.xlu0 %v601, 15
        %v1304 = vpop.permute.xlu0 %1303
        %1305 = vrot.lane.b32.xlu0 %v602, 15
        %v1306 = vpop.permute.xlu0 %1305
        %1307 = vrot.lane.b32.xlu0 %v603, 15
        %v1308 = vpop.permute.xlu0 %1307
        %1373 = vrot.lane.b32.xlu0 %v605, 18
        %v1374 = vpop.permute.xlu0 %1373
        %1375 = vrot.lane.b32.xlu0 %v606, 18
        %v1376 = vpop.permute.xlu0 %1375
        %1377 = vrot.lane.b32.xlu0 %v607, 18
        %v1378 = vpop.permute.xlu0 %1377
        %1379 = vrot.lane.b32.xlu0 %v608, 18
        %v1380 = vpop.permute.xlu0 %1379
        %1381 = vrot.lane.b32.xlu0 %v609, 18
        %v1382 = vpop.permute.xlu0 %1381
        %1383 = vrot.lane.b32.xlu0 %v610, 18
        %v1384 = vpop.permute.xlu0 %1383
        %1385 = vrot.lane.b32.xlu0 %v611, 18
        %v1386 = vpop.permute.xlu0 %1385
        %1387 = vrot.lane.b32.xlu0 %v612, 18
        %v1388 = vpop.permute.xlu0 %1387
        %1389 = vrot.lane.b32.xlu0 %v613, 18
        %v1390 = vpop.permute.xlu0 %1389
        %1391 = vrot.lane.b32.xlu0 %v614, 18
        %v1392 = vpop.permute.xlu0 %1391
        %1393 = vrot.lane.b32.xlu0 %v615, 18
        %v1394 = vpop.permute.xlu0 %1393
        %1395 = vrot.lane.b32.xlu0 %v616, 18
        %v1396 = vpop.permute.xlu0 %1395
        %1397 = vrot.lane.b32.xlu0 %v617, 18
        %v1398 = vpop.permute.xlu0 %1397
        %1399 = vrot.lane.b32.xlu0 %v618, 18
        %v1400 = vpop.permute.xlu0 %1399
        %1401 = vrot.lane.b32.xlu0 %v619, 18
        %v1402 = vpop.permute.xlu0 %1401
        %1403 = vrot.lane.b32.xlu0 %v620, 18
        %v1404 = vpop.permute.xlu0 %1403
        %1405 = vrot.lane.b32.xlu0 %v621, 18
        %v1406 = vpop.permute.xlu0 %1405
        %1407 = vrot.lane.b32.xlu0 %v622, 18
        %v1408 = vpop.permute.xlu0 %1407
        %1409 = vrot.lane.b32.xlu0 %v623, 18
        %v1410 = vpop.permute.xlu0 %1409
        %1411 = vrot.lane.b32.xlu0 %v624, 18
        %v1412 = vpop.permute.xlu0 %1411
        %1413 = vrot.lane.b32.xlu0 %v625, 18
        %v1414 = vpop.permute.xlu0 %1413
        %1415 = vrot.lane.b32.xlu0 %v626, 18
        %v1416 = vpop.permute.xlu0 %1415
        %1417 = vrot.lane.b32.xlu0 %v627, 18
        %v1418 = vpop.permute.xlu0 %1417
        %1419 = vrot.lane.b32.xlu0 %v628, 18
        %v1420 = vpop.permute.xlu0 %1419
        %1421 = vrot.lane.b32.xlu0 %v629, 18
        %v1422 = vpop.permute.xlu0 %1421
        %1423 = vrot.lane.b32.xlu0 %v630, 18
        %v1424 = vpop.permute.xlu0 %1423
        %1425 = vrot.lane.b32.xlu0 %v631, 18
        %v1426 = vpop.permute.xlu0 %1425
        %1427 = vrot.lane.b32.xlu0 %v632, 18
        %v1428 = vpop.permute.xlu0 %1427
        %1429 = vrot.lane.b32.xlu0 %v633, 18
        %v1430 = vpop.permute.xlu0 %1429
        %1431 = vrot.lane.b32.xlu0 %v634, 18
        %v1432 = vpop.permute.xlu0 %1431
        %1433 = vrot.lane.b32.xlu0 %v635, 18
        %v1434 = vpop.permute.xlu0 %1433
        %1435 = vrot.lane.b32.xlu0 %v636, 18
        %v1436 = vpop.permute.xlu0 %1435
        %1501 = vrot.lane.b32.xlu0 %v637, 21
        %v1502 = vpop.permute.xlu0 %1501
        %1503 = vrot.lane.b32.xlu0 %v638, 21
        %v1504 = vpop.permute.xlu0 %1503
        %1505 = vrot.lane.b32.xlu0 %v639, 21
        %v1506 = vpop.permute.xlu0 %1505
        %1507 = vrot.lane.b32.xlu0 %v640, 21
        %v1508 = vpop.permute.xlu0 %1507
        %1509 = vrot.lane.b32.xlu0 %v641, 21
        %v1510 = vpop.permute.xlu0 %1509
        %1511 = vrot.lane.b32.xlu0 %v642, 21
        %v1512 = vpop.permute.xlu0 %1511
        %1513 = vrot.lane.b32.xlu0 %v643, 21
        %v1514 = vpop.permute.xlu0 %1513
        %1515 = vrot.lane.b32.xlu0 %v644, 21
        %v1516 = vpop.permute.xlu0 %1515
        %1517 = vrot.lane.b32.xlu0 %v645, 21
        %v1518 = vpop.permute.xlu0 %1517
        %1519 = vrot.lane.b32.xlu0 %v646, 21
        %v1520 = vpop.permute.xlu0 %1519
        %1521 = vrot.lane.b32.xlu0 %v647, 21
        %v1522 = vpop.permute.xlu0 %1521
        %1523 = vrot.lane.b32.xlu0 %v648, 21
        %v1524 = vpop.permute.xlu0 %1523
        %1525 = vrot.lane.b32.xlu0 %v649, 21
        %v1526 = vpop.permute.xlu0 %1525
        %1527 = vrot.lane.b32.xlu0 %v650, 21
        %v1528 = vpop.permute.xlu0 %1527
        %1529 = vrot.lane.b32.xlu0 %v651, 21
        %v1530 = vpop.permute.xlu0 %1529
        %1531 = vrot.lane.b32.xlu0 %v652, 21
        %v1532 = vpop.permute.xlu0 %1531
        %1533 = vrot.lane.b32.xlu0 %v653, 21
        %v1534 = vpop.permute.xlu0 %1533
        %1535 = vrot.lane.b32.xlu0 %v654, 21
        %v1536 = vpop.permute.xlu0 %1535
        %1537 = vrot.lane.b32.xlu0 %v655, 21
        %v1538 = vpop.permute.xlu0 %1537
        %1539 = vrot.lane.b32.xlu0 %v656, 21
        %v1540 = vpop.permute.xlu0 %1539
        %1541 = vrot.lane.b32.xlu0 %v657, 21
        %v1542 = vpop.permute.xlu0 %1541
        %1543 = vrot.lane.b32.xlu0 %v658, 21
        %v1544 = vpop.permute.xlu0 %1543
        %1545 = vrot.lane.b32.xlu0 %v659, 21
        %v1546 = vpop.permute.xlu0 %1545
        %1547 = vrot.lane.b32.xlu0 %v660, 21
        %v1548 = vpop.permute.xlu0 %1547
        %1549 = vrot.lane.b32.xlu0 %v661, 21
        %v1550 = vpop.permute.xlu0 %1549
        %1551 = vrot.lane.b32.xlu0 %v662, 21
        %v1552 = vpop.permute.xlu0 %1551
        %1553 = vrot.lane.b32.xlu0 %v663, 21
        %v1554 = vpop.permute.xlu0 %1553
        %1555 = vrot.lane.b32.xlu0 %v664, 21
        %v1556 = vpop.permute.xlu0 %1555
        %1557 = vrot.lane.b32.xlu0 %v665, 21
        %v1558 = vpop.permute.xlu0 %1557
        %1559 = vrot.lane.b32.xlu0 %v666, 21
        %v1560 = vpop.permute.xlu0 %1559
        %1561 = vrot.lane.b32.xlu0 %v667, 21
        %v1562 = vpop.permute.xlu0 %1561
        %1563 = vrot.lane.b32.xlu0 %v668, 21
        %v1564 = vpop.permute.xlu0 %1563
        %1629 = vrot.lane.b32.xlu0 %v669, 24
        %v1630 = vpop.permute.xlu0 %1629
        %1631 = vrot.lane.b32.xlu0 %v670, 24
        %v1632 = vpop.permute.xlu0 %1631
        %1633 = vrot.lane.b32.xlu0 %v671, 24
        %v1634 = vpop.permute.xlu0 %1633
        %1635 = vrot.lane.b32.xlu0 %v672, 24
        %v1636 = vpop.permute.xlu0 %1635
        %1637 = vrot.lane.b32.xlu0 %v673, 24
        %v1638 = vpop.permute.xlu0 %1637
        %1639 = vrot.lane.b32.xlu0 %v674, 24
        %v1640 = vpop.permute.xlu0 %1639
        %1641 = vrot.lane.b32.xlu0 %v675, 24
        %v1642 = vpop.permute.xlu0 %1641
        %1643 = vrot.lane.b32.xlu0 %v676, 24
        %v1644 = vpop.permute.xlu0 %1643
        %1645 = vrot.lane.b32.xlu0 %v677, 24
        %v1646 = vpop.permute.xlu0 %1645
        %1647 = vrot.lane.b32.xlu0 %v678, 24
        %v1648 = vpop.permute.xlu0 %1647
        %1649 = vrot.lane.b32.xlu0 %v679, 24
        %v1650 = vpop.permute.xlu0 %1649
        %1651 = vrot.lane.b32.xlu0 %v680, 24
        %v1652 = vpop.permute.xlu0 %1651
        %1653 = vrot.lane.b32.xlu0 %v681, 24
        %v1654 = vpop.permute.xlu0 %1653
        %1655 = vrot.lane.b32.xlu0 %v682, 24
        %v1656 = vpop.permute.xlu0 %1655
        %1657 = vrot.lane.b32.xlu0 %v683, 24
        %v1658 = vpop.permute.xlu0 %1657
        %1659 = vrot.lane.b32.xlu0 %v684, 24
        %v1660 = vpop.permute.xlu0 %1659
        %1661 = vrot.lane.b32.xlu0 %v685, 24
        %v1662 = vpop.permute.xlu0 %1661
        %1663 = vrot.lane.b32.xlu0 %v686, 24
        %v1664 = vpop.permute.xlu0 %1663
        %1665 = vrot.lane.b32.xlu0 %v687, 24
        %v1666 = vpop.permute.xlu0 %1665
        %1667 = vrot.lane.b32.xlu0 %v688, 24
        %v1668 = vpop.permute.xlu0 %1667
        %1669 = vrot.lane.b32.xlu0 %v689, 24
        %v1670 = vpop.permute.xlu0 %1669
        %1671 = vrot.lane.b32.xlu0 %v690, 24
        %v1672 = vpop.permute.xlu0 %1671
        %1673 = vrot.lane.b32.xlu0 %v691, 24
        %v1674 = vpop.permute.xlu0 %1673
        %1675 = vrot.lane.b32.xlu0 %v692, 24
        %v1676 = vpop.permute.xlu0 %1675
        %1677 = vrot.lane.b32.xlu0 %v693, 24
        %v1678 = vpop.permute.xlu0 %1677
        %1679 = vrot.lane.b32.xlu0 %v694, 24
        %v1680 = vpop.permute.xlu0 %1679
        %1681 = vrot.lane.b32.xlu0 %v695, 24
        %v1682 = vpop.permute.xlu0 %1681
        %1683 = vrot.lane.b32.xlu0 %v696, 24
        %v1684 = vpop.permute.xlu0 %1683
        %1685 = vrot.lane.b32.xlu0 %v697, 24
        %v1686 = vpop.permute.xlu0 %1685
        %1687 = vrot.lane.b32.xlu0 %v698, 24
        %v1688 = vpop.permute.xlu0 %1687
        %1689 = vrot.lane.b32.xlu0 %v699, 24
        %v1690 = vpop.permute.xlu0 %1689
        %1691 = vrot.lane.b32.xlu0 %v700, 24
        %v1692 = vpop.permute.xlu0 %1691
        %v1725 = vsel %vm300, %v412, %v734
        %v1726 = vsel %vm300, %v413, %v736
        %v1727 = vsel %vm300, %v414, %v738
        %v1728 = vsel %vm300, %v415, %v740
        %v1729 = vsel %vm300, %v416, %v742
        %v1730 = vsel %vm300, %v417, %v744
        %v1731 = vsel %vm300, %v418, %v746
        %v1732 = vsel %vm300, %v419, %v748
        %v1733 = vsel %vm300, %v420, %v750
        %v1734 = vsel %vm300, %v421, %v752
        %v1735 = vsel %vm300, %v422, %v754
        %v1736 = vsel %vm300, %v423, %v756
        %v1737 = vsel %vm300, %v424, %v758
        %v1738 = vsel %vm300, %v425, %v760
        %v1739 = vsel %vm300, %v426, %v762
        %v1740 = vsel %vm300, %v427, %v764
        %v1741 = vsel %vm300, %v428, %v766
        %v1742 = vsel %vm300, %v429, %v768
        %v1743 = vsel %vm300, %v430, %v770
        %v1744 = vsel %vm300, %v431, %v772
        %v1745 = vsel %vm300, %v432, %v774
        %v1746 = vsel %vm300, %v433, %v776
        %v1747 = vsel %vm300, %v434, %v778
        %v1748 = vsel %vm300, %v435, %v780
        %v1749 = vsel %vm300, %v436, %v782
        %v1750 = vsel %vm300, %v437, %v784
        %v1751 = vsel %vm300, %v438, %v786
        %v1752 = vsel %vm300, %v439, %v788
        %v1753 = vsel %vm300, %v440, %v790
        %v1754 = vsel %vm300, %v441, %v792
        %v1755 = vsel %vm300, %v442, %v794
        %v1756 = vsel %vm300, %v443, %v796
        %vm1757 = vcmask 48128
        %v1758 = vsel %vm1757, %v1725, %v862
        %v1759 = vsel %vm1757, %v1726, %v864
        %v1760 = vsel %vm1757, %v1727, %v866
        %v1761 = vsel %vm1757, %v1728, %v868
        %v1762 = vsel %vm1757, %v1729, %v870
        %v1763 = vsel %vm1757, %v1730, %v872
        %v1764 = vsel %vm1757, %v1731, %v874
        %v1765 = vsel %vm1757, %v1732, %v876
        %v1766 = vsel %vm1757, %v1733, %v878
        %v1767 = vsel %vm1757, %v1734, %v880
        %v1768 = vsel %vm1757, %v1735, %v882
        %v1769 = vsel %vm1757, %v1736, %v884
        %v1770 = vsel %vm1757, %v1737, %v886
        %v1771 = vsel %vm1757, %v1738, %v888
        %v1772 = vsel %vm1757, %v1739, %v890
        %v1773 = vsel %vm1757, %v1740, %v892
        %v1774 = vsel %vm1757, %v1741, %v894
        %v1775 = vsel %vm1757, %v1742, %v896
        %v1776 = vsel %vm1757, %v1743, %v898
        %v1777 = vsel %vm1757, %v1744, %v900
        %v1778 = vsel %vm1757, %v1745, %v902
        %v1779 = vsel %vm1757, %v1746, %v904
        %v1780 = vsel %vm1757, %v1747, %v906
        %v1781 = vsel %vm1757, %v1748, %v908
        %v1782 = vsel %vm1757, %v1749, %v910
        %v1783 = vsel %vm1757, %v1750, %v912
        %v1784 = vsel %vm1757, %v1751, %v914
        %v1785 = vsel %vm1757, %v1752, %v916
        %v1786 = vsel %vm1757, %v1753, %v918
        %v1787 = vsel %vm1757, %v1754, %v920
        %v1788 = vsel %vm1757, %v1755, %v922
        %v1789 = vsel %vm1757, %v1756, %v924
        %vm1790 = vcmask 72704
        %v1791 = vsel %vm1790, %v1758, %v990
        %v1792 = vsel %vm1790, %v1759, %v992
        %v1793 = vsel %vm1790, %v1760, %v994
        %v1794 = vsel %vm1790, %v1761, %v996
        %v1795 = vsel %vm1790, %v1762, %v998
        %v1796 = vsel %vm1790, %v1763, %v1000
        %v1797 = vsel %vm1790, %v1764, %v1002
        %v1798 = vsel %vm1790, %v1765, %v1004
        %v1799 = vsel %vm1790, %v1766, %v1006
        %v1800 = vsel %vm1790, %v1767, %v1008
        %v1801 = vsel %vm1790, %v1768, %v1010
        %v1802 = vsel %vm1790, %v1769, %v1012
        %v1803 = vsel %vm1790, %v1770, %v1014
        %v1804 = vsel %vm1790, %v1771, %v1016
        %v1805 = vsel %vm1790, %v1772, %v1018
        %v1806 = vsel %vm1790, %v1773, %v1020
        %v1807 = vsel %vm1790, %v1774, %v1022
        %v1808 = vsel %vm1790, %v1775, %v1024
        %v1809 = vsel %vm1790, %v1776, %v1026
        %v1810 = vsel %vm1790, %v1777, %v1028
        %v1811 = vsel %vm1790, %v1778, %v1030
        %v1812 = vsel %vm1790, %v1779, %v1032
        %v1813 = vsel %vm1790, %v1780, %v1034
        %v1814 = vsel %vm1790, %v1781, %v1036
        %v1815 = vsel %vm1790, %v1782, %v1038
        %v1816 = vsel %vm1790, %v1783, %v1040
        %v1817 = vsel %vm1790, %v1784, %v1042
        %v1818 = vsel %vm1790, %v1785, %v1044
        %v1819 = vsel %vm1790, %v1786, %v1046
        %v1820 = vsel %vm1790, %v1787, %v1048
        %v1821 = vsel %vm1790, %v1788, %v1050
        %v1822 = vsel %vm1790, %v1789, %v1052
        %vm1823 = vcmask 97280
        %v1824 = vsel %vm1823, %v1791, %v1118
        %v1825 = vsel %vm1823, %v1792, %v1120
        %v1826 = vsel %vm1823, %v1793, %v1122
        %v1827 = vsel %vm1823, %v1794, %v1124
        %v1828 = vsel %vm1823, %v1795, %v1126
        %v1829 = vsel %vm1823, %v1796, %v1128
        %v1830 = vsel %vm1823, %v1797, %v1130
        %v1831 = vsel %vm1823, %v1798, %v1132
        %v1832 = vsel %vm1823, %v1799, %v1134
        %v1833 = vsel %vm1823, %v1800, %v1136
        %v1834 = vsel %vm1823, %v1801, %v1138
        %v1835 = vsel %vm1823, %v1802, %v1140
        %v1836 = vsel %vm1823, %v1803, %v1142
        %v1837 = vsel %vm1823, %v1804, %v1144
        %v1838 = vsel %vm1823, %v1805, %v1146
        %v1839 = vsel %vm1823, %v1806, %v1148
        %v1840 = vsel %vm1823, %v1807, %v1150
        %v1841 = vsel %vm1823, %v1808, %v1152
        %v1842 = vsel %vm1823, %v1809, %v1154
        %v1843 = vsel %vm1823, %v1810, %v1156
        %v1844 = vsel %vm1823, %v1811, %v1158
        %v1845 = vsel %vm1823, %v1812, %v1160
        %v1846 = vsel %vm1823, %v1813, %v1162
        %v1847 = vsel %vm1823, %v1814, %v1164
        %v1848 = vsel %vm1823, %v1815, %v1166
        %v1849 = vsel %vm1823, %v1816, %v1168
        %v1850 = vsel %vm1823, %v1817, %v1170
        %v1851 = vsel %vm1823, %v1818, %v1172
        %v1852 = vsel %vm1823, %v1819, %v1174
        %v1853 = vsel %vm1823, %v1820, %v1176
        %v1854 = vsel %vm1823, %v1821, %v1178
        %v1855 = vsel %vm1823, %v1822, %v1180
        %vm1856 = vcmask 121856
        %v1857 = vsel %vm1856, %v1824, %v1246
        %v1858 = vsel %vm1856, %v1825, %v1248
        %v1859 = vsel %vm1856, %v1826, %v1250
        %v1860 = vsel %vm1856, %v1827, %v1252
        %v1861 = vsel %vm1856, %v1828, %v1254
        %v1862 = vsel %vm1856, %v1829, %v1256
        %v1863 = vsel %vm1856, %v1830, %v1258
        %v1864 = vsel %vm1856, %v1831, %v1260
        %v1865 = vsel %vm1856, %v1832, %v1262
        %v1866 = vsel %vm1856, %v1833, %v1264
        %v1867 = vsel %vm1856, %v1834, %v1266
        %v1868 = vsel %vm1856, %v1835, %v1268
        %v1869 = vsel %vm1856, %v1836, %v1270
        %v1870 = vsel %vm1856, %v1837, %v1272
        %v1871 = vsel %vm1856, %v1838, %v1274
        %v1872 = vsel %vm1856, %v1839, %v1276
        %v1873 = vsel %vm1856, %v1840, %v1278
        %v1874 = vsel %vm1856, %v1841, %v1280
        %v1875 = vsel %vm1856, %v1842, %v1282
        %v1876 = vsel %vm1856, %v1843, %v1284
        %v1877 = vsel %vm1856, %v1844, %v1286
        %v1878 = vsel %vm1856, %v1845, %v1288
        %v1879 = vsel %vm1856, %v1846, %v1290
        %v1880 = vsel %vm1856, %v1847, %v1292
        %v1881 = vsel %vm1856, %v1848, %v1294
        %v1882 = vsel %vm1856, %v1849, %v1296
        %v1883 = vsel %vm1856, %v1850, %v1298
        %v1884 = vsel %vm1856, %v1851, %v1300
        %v1885 = vsel %vm1856, %v1852, %v1302
        %v1886 = vsel %vm1856, %v1853, %v1304
        %v1887 = vsel %vm1856, %v1854, %v1306
        %v1888 = vsel %vm1856, %v1855, %v1308
        %vm1889 = vcmask 146432
        %v1890 = vsel %vm1889, %v1857, %v1374
        %v1891 = vsel %vm1889, %v1858, %v1376
        %v1892 = vsel %vm1889, %v1859, %v1378
        %v1893 = vsel %vm1889, %v1860, %v1380
        %v1894 = vsel %vm1889, %v1861, %v1382
        %v1895 = vsel %vm1889, %v1862, %v1384
        %v1896 = vsel %vm1889, %v1863, %v1386
        %v1897 = vsel %vm1889, %v1864, %v1388
        %v1898 = vsel %vm1889, %v1865, %v1390
        %v1899 = vsel %vm1889, %v1866, %v1392
        %v1900 = vsel %vm1889, %v1867, %v1394
        %v1901 = vsel %vm1889, %v1868, %v1396
        %v1902 = vsel %vm1889, %v1869, %v1398
        %v1903 = vsel %vm1889, %v1870, %v1400
        %v1904 = vsel %vm1889, %v1871, %v1402
        %v1905 = vsel %vm1889, %v1872, %v1404
        %v1906 = vsel %vm1889, %v1873, %v1406
        %v1907 = vsel %vm1889, %v1874, %v1408
        %v1908 = vsel %vm1889, %v1875, %v1410
        %v1909 = vsel %vm1889, %v1876, %v1412
        %v1910 = vsel %vm1889, %v1877, %v1414
        %v1911 = vsel %vm1889, %v1878, %v1416
        %v1912 = vsel %vm1889, %v1879, %v1418
        %v1913 = vsel %vm1889, %v1880, %v1420
        %v1914 = vsel %vm1889, %v1881, %v1422
        %v1915 = vsel %vm1889, %v1882, %v1424
        %v1916 = vsel %vm1889, %v1883, %v1426
        %v1917 = vsel %vm1889, %v1884, %v1428
        %v1918 = vsel %vm1889, %v1885, %v1430
        %v1919 = vsel %vm1889, %v1886, %v1432
        %v1920 = vsel %vm1889, %v1887, %v1434
        %v1921 = vsel %vm1889, %v1888, %v1436
        %vm1922 = vcmask 171008
        %v1923 = vsel %vm1922, %v1890, %v1502
        %v1924 = vsel %vm1922, %v1891, %v1504
        %v1925 = vsel %vm1922, %v1892, %v1506
        %v1926 = vsel %vm1922, %v1893, %v1508
        %v1927 = vsel %vm1922, %v1894, %v1510
        %v1928 = vsel %vm1922, %v1895, %v1512
        %v1929 = vsel %vm1922, %v1896, %v1514
        %v1930 = vsel %vm1922, %v1897, %v1516
        %v1931 = vsel %vm1922, %v1898, %v1518
        %v1932 = vsel %vm1922, %v1899, %v1520
        %v1933 = vsel %vm1922, %v1900, %v1522
        %v1934 = vsel %vm1922, %v1901, %v1524
        %v1935 = vsel %vm1922, %v1902, %v1526
        %v1936 = vsel %vm1922, %v1903, %v1528
        %v1937 = vsel %vm1922, %v1904, %v1530
        %v1938 = vsel %vm1922, %v1905, %v1532
        %v1939 = vsel %vm1922, %v1906, %v1534
        %v1940 = vsel %vm1922, %v1907, %v1536
        %v1941 = vsel %vm1922, %v1908, %v1538
        %v1942 = vsel %vm1922, %v1909, %v1540
        %v1943 = vsel %vm1922, %v1910, %v1542
        %v1944 = vsel %vm1922, %v1911, %v1544
        %v1945 = vsel %vm1922, %v1912, %v1546
        %v1946 = vsel %vm1922, %v1913, %v1548
        %v1947 = vsel %vm1922, %v1914, %v1550
        %v1948 = vsel %vm1922, %v1915, %v1552
        %v1949 = vsel %vm1922, %v1916, %v1554
        %v1950 = vsel %vm1922, %v1917, %v1556
        %v1951 = vsel %vm1922, %v1918, %v1558
        %v1952 = vsel %vm1922, %v1919, %v1560
        %v1953 = vsel %vm1922, %v1920, %v1562
        %v1954 = vsel %vm1922, %v1921, %v1564
        %vm1955 = vcmask 195584
        %v1956 = vsel %vm1955, %v1923, %v1630
        %v1957 = vsel %vm1955, %v1924, %v1632
        %v1958 = vsel %vm1955, %v1925, %v1634
        %v1959 = vsel %vm1955, %v1926, %v1636
        %v1960 = vsel %vm1955, %v1927, %v1638
        %v1961 = vsel %vm1955, %v1928, %v1640
        %v1962 = vsel %vm1955, %v1929, %v1642
        %v1963 = vsel %vm1955, %v1930, %v1644
        %v1964 = vsel %vm1955, %v1931, %v1646
        %v1965 = vsel %vm1955, %v1932, %v1648
        %v1966 = vsel %vm1955, %v1933, %v1650
        %v1967 = vsel %vm1955, %v1934, %v1652
        %v1968 = vsel %vm1955, %v1935, %v1654
        %v1969 = vsel %vm1955, %v1936, %v1656
        %v1970 = vsel %vm1955, %v1937, %v1658
        %v1971 = vsel %vm1955, %v1938, %v1660
        %v1972 = vsel %vm1955, %v1939, %v1662
        %v1973 = vsel %vm1955, %v1940, %v1664
        %v1974 = vsel %vm1955, %v1941, %v1666
        %v1975 = vsel %vm1955, %v1942, %v1668
        %v1976 = vsel %vm1955, %v1943, %v1670
        %v1977 = vsel %vm1955, %v1944, %v1672
        %v1978 = vsel %vm1955, %v1945, %v1674
        %v1979 = vsel %vm1955, %v1946, %v1676
        %v1980 = vsel %vm1955, %v1947, %v1678
        %v1981 = vsel %vm1955, %v1948, %v1680
        %v1982 = vsel %vm1955, %v1949, %v1682
        %v1983 = vsel %vm1955, %v1950, %v1684
        %v1984 = vsel %vm1955, %v1951, %v1686
        %v1985 = vsel %vm1955, %v1952, %v1688
        %v1986 = vsel %vm1955, %v1953, %v1690
        %v1987 = vsel %vm1955, %v1954, %v1692
        %v1988 = vpack.c.bf16 %v1957, %v1956
        %v1989 = vpack.c.bf16 %v1959, %v1958
        %v1990 = vpack.c.bf16 %v1961, %v1960
        %v1991 = vpack.c.bf16 %v1963, %v1962
        %v1992 = vpack.c.bf16 %v1965, %v1964
        %v1993 = vpack.c.bf16 %v1967, %v1966
        %v1994 = vpack.c.bf16 %v1969, %v1968
        %v1995 = vpack.c.bf16 %v1971, %v1970
        %v1996 = vpack.c.bf16 %v1973, %v1972
        %v1997 = vpack.c.bf16 %v1975, %v1974
        %v1998 = vpack.c.bf16 %v1977, %v1976
        %v1999 = vpack.c.bf16 %v1979, %v1978
        %v2000 = vpack.c.bf16 %v1981, %v1980
        %v2001 = vpack.c.bf16 %v1983, %v1982
        %v2002 = vpack.c.bf16 %v1985, %v1984
        %v2003 = vpack.c.bf16 %v1987, %v1986
        %v2005 = vlaneseq
        %v2006 = vshrl.u32 %v2005, 7
        %v2007 = vsub.s32 0, %v2006
        %v2008 = vrot.slane %v411, %v2007
        %v2014 = vunpack.c.l.b16 %v407
        %v2015 = vunpack.c.l.b16 %v408
        %v2016 = vunpack.c.l.b16 %v409
        %v2017 = vunpack.c.l.b16 %v410
        %v2018 = vpack.c.b16 %v2015, %v2014
        %v2019 = vpack.c.b16 %v2017, %v2016
        %vm2021 = vcmask 220160
        %v2023 = vsel %vm2021, %v1988, 0
        %v2026 = vsel %vm2021, %v1989, 0
        %v2029 = vsel %vm2021, %v1990, 0
        %v2032 = vsel %vm2021, %v1991, 0
        %v2035 = vsel %vm2021, %v1992, 0
        %v2038 = vsel %vm2021, %v1993, 0
        %v2041 = vsel %vm2021, %v1994, 0
        %v2044 = vsel %vm2021, %v1995, 0
        %v2047 = vsel %vm2021, %v1996, 0
        %v2050 = vsel %vm2021, %v1997, 0
        %v2053 = vsel %vm2021, %v1998, 0
        %v2056 = vsel %vm2021, %v1999, 0
        %v2059 = vsel %vm2021, %v2000, 0
        %v2062 = vsel %vm2021, %v2001, 0
        %v2065 = vsel %vm2021, %v2002, 0
        %v2068 = vsel %vm2021, %v2003, 0
        %vm2070 = vcmask 1044480
        %vm2071 = vcmask 1045504
        %v2072 = vsel %vm2070, 4294967295, 65535
        %v2073 = vsel %vm2071, %v2072, 0
        %v2075 = vand.u32 %v2019, %v2073
        %2077 = vmatprep.subr.bf16.mxu0 0
        %2078 = vmatpush1.bf16.msra.mxu0 %v2018
        %2079 = vmatprep.subr.bf16.mxu0 0
        %2080 = vmatpush1.bf16.msra.mxu0 %v2075
        %2081 = vmatprep.subr.bf16.mxu0 0
        %2082 = vmatpush1.bf16.msra.mxu0 0
        %2083 = vmatprep.subr.bf16.mxu0 0
        %2084 = vmatpush1.bf16.msra.mxu0 0
        %2085 = vmatprep.subr.bf16.mxu0 0
        %2086 = vmatpush1.bf16.msra.mxu0 0
        %2087 = vmatprep.subr.bf16.mxu0 0
        %2088 = vmatpush1.bf16.msra.mxu0 0
        %2089 = vmatprep.subr.bf16.mxu0 0
        %2090 = vmatpush1.bf16.msra.mxu0 0
        %2091 = vmatprep.subr.bf16.mxu0 0
        %2092 = vmatpush1.bf16.msra.mxu0 0
        %2093 = vmatprep.subr.bf16.mxu0 0
        %2094 = vmatpush1.bf16.msra.mxu0 0
        %2095 = vmatprep.subr.bf16.mxu0 0
        %2096 = vmatpush1.bf16.msra.mxu0 0
        %2097 = vmatprep.subr.bf16.mxu0 0
        %2098 = vmatpush1.bf16.msra.mxu0 0
        %2099 = vmatprep.subr.bf16.mxu0 0
        %2100 = vmatpush1.bf16.msra.mxu0 0
        %2101 = vmatprep.subr.bf16.mxu0 0
        %2102 = vmatpush1.bf16.msra.mxu0 0
        %2103 = vmatprep.subr.bf16.mxu0 0
        %2104 = vmatpush1.bf16.msra.mxu0 0
        %2105 = vmatprep.subr.bf16.mxu0 0
        %2106 = vmatpush1.bf16.msra.mxu0 0
        %2107 = vmatprep.subr.bf16.mxu0 0
        %2108 = vmatpush1.bf16.msra.mxu0 0
        %2109 = vmatprep.mubr.bf16.mxu0 0
        %2110 = vmatmul.mubr.bf16.gmra.mrb[0].mxu0 %v2023
        %v2111 = vpop.f32.mrb[0].mxu0
        %v2112 = vadd.f32 %v2008, %v2111
        %v2113 = vpop.f32.mrb[0].mxu0
        %v2114 = vpop.f32.mrb[0].mxu0
        %v2115 = vadd.f32 %v2008, %v2114
        %v2116 = vpop.f32.mrb[0].mxu0
        %2117 = vmatprep.mubr.bf16.mxu0 0
        %2118 = vmatmul.mubr.bf16.gmra.mrb[0].mxu0 %v2026
        %v2119 = vpop.f32.mrb[0].mxu0
        %v2120 = vadd.f32 %v2008, %v2119
        %v2121 = vpop.f32.mrb[0].mxu0
        %v2122 = vpop.f32.mrb[0].mxu0
        %v2123 = vadd.f32 %v2008, %v2122
        %v2124 = vpop.f32.mrb[0].mxu0
        %2125 = vmatprep.mubr.bf16.mxu0 0
        %2126 = vmatmul.mubr.bf16.gmra.mrb[0].mxu0 %v2029
        %v2127 = vpop.f32.mrb[0].mxu0
        %v2128 = vadd.f32 %v2008, %v2127
        %v2129 = vpop.f32.mrb[0].mxu0
        %v2130 = vpop.f32.mrb[0].mxu0
        %v2131 = vadd.f32 %v2008, %v2130
        %v2132 = vpop.f32.mrb[0].mxu0
        %2133 = vmatprep.mubr.bf16.mxu0 0
        %2134 = vmatmul.mubr.bf16.gmra.mrb[0].mxu0 %v2032
        %v2135 = vpop.f32.mrb[0].mxu0
        %v2136 = vadd.f32 %v2008, %v2135
        %v2137 = vpop.f32.mrb[0].mxu0
        %v2138 = vpop.f32.mrb[0].mxu0
        %v2139 = vadd.f32 %v2008, %v2138
        %v2140 = vpop.f32.mrb[0].mxu0
        %2141 = vmatprep.mubr.bf16.mxu0 0
        %2142 = vmatmul.mubr.bf16.gmra.mrb[0].mxu0 %v2035
        %v2143 = vpop.f32.mrb[0].mxu0
        %v2144 = vadd.f32 %v2008, %v2143
        %v2145 = vpop.f32.mrb[0].mxu0
        %v2146 = vpop.f32.mrb[0].mxu0
        %v2147 = vadd.f32 %v2008, %v2146
        %v2148 = vpop.f32.mrb[0].mxu0
        %2149 = vmatprep.mubr.bf16.mxu0 0
        %2150 = vmatmul.mubr.bf16.gmra.mrb[0].mxu0 %v2038
        %v2151 = vpop.f32.mrb[0].mxu0
        %v2152 = vadd.f32 %v2008, %v2151
        %v2153 = vpop.f32.mrb[0].mxu0
        %v2154 = vpop.f32.mrb[0].mxu0
        %v2155 = vadd.f32 %v2008, %v2154
        %v2156 = vpop.f32.mrb[0].mxu0
        %2157 = vmatprep.mubr.bf16.mxu0 0
        %2158 = vmatmul.mubr.bf16.gmra.mrb[0].mxu0 %v2041
        %v2159 = vpop.f32.mrb[0].mxu0
        %v2160 = vadd.f32 %v2008, %v2159
        %v2161 = vpop.f32.mrb[0].mxu0
        %v2162 = vpop.f32.mrb[0].mxu0
        %v2163 = vadd.f32 %v2008, %v2162
        %v2164 = vpop.f32.mrb[0].mxu0
        %2165 = vmatprep.mubr.bf16.mxu0 0
        %2166 = vmatmul.mubr.bf16.gmra.mrb[0].mxu0 %v2044
        %v2167 = vpop.f32.mrb[0].mxu0
        %v2168 = vadd.f32 %v2008, %v2167
        %v2169 = vpop.f32.mrb[0].mxu0
        %v2170 = vpop.f32.mrb[0].mxu0
        %v2171 = vadd.f32 %v2008, %v2170
        %v2172 = vpop.f32.mrb[0].mxu0
        %2173 = vmatprep.mubr.bf16.mxu0 0
        %2174 = vmatmul.mubr.bf16.gmra.mrb[0].mxu0 %v2047
        %v2175 = vpop.f32.mrb[0].mxu0
        %v2176 = vadd.f32 %v2008, %v2175
        %v2177 = vpop.f32.mrb[0].mxu0
        %v2178 = vpop.f32.mrb[0].mxu0
        %v2179 = vadd.f32 %v2008, %v2178
        %v2180 = vpop.f32.mrb[0].mxu0
        %2181 = vmatprep.mubr.bf16.mxu0 0
        %2182 = vmatmul.mubr.bf16.gmra.mrb[0].mxu0 %v2050
        %v2183 = vpop.f32.mrb[0].mxu0
        %v2184 = vadd.f32 %v2008, %v2183
        %v2185 = vpop.f32.mrb[0].mxu0
        %v2186 = vpop.f32.mrb[0].mxu0
        %v2187 = vadd.f32 %v2008, %v2186
        %v2188 = vpop.f32.mrb[0].mxu0
        %2189 = vmatprep.mubr.bf16.mxu0 0
        %2190 = vmatmul.mubr.bf16.gmra.mrb[0].mxu0 %v2053
        %v2191 = vpop.f32.mrb[0].mxu0
        %v2192 = vadd.f32 %v2008, %v2191
        %v2193 = vpop.f32.mrb[0].mxu0
        %v2194 = vpop.f32.mrb[0].mxu0
        %v2195 = vadd.f32 %v2008, %v2194
        %v2196 = vpop.f32.mrb[0].mxu0
        %2197 = vmatprep.mubr.bf16.mxu0 0
        %2198 = vmatmul.mubr.bf16.gmra.mrb[0].mxu0 %v2056
        %v2199 = vpop.f32.mrb[0].mxu0
        %v2200 = vadd.f32 %v2008, %v2199
        %v2201 = vpop.f32.mrb[0].mxu0
        %v2202 = vpop.f32.mrb[0].mxu0
        %v2203 = vadd.f32 %v2008, %v2202
        %v2204 = vpop.f32.mrb[0].mxu0
        %2205 = vmatprep.mubr.bf16.mxu0 0
        %2206 = vmatmul.mubr.bf16.gmra.mrb[0].mxu0 %v2059
        %v2207 = vpop.f32.mrb[0].mxu0
        %v2208 = vadd.f32 %v2008, %v2207
        %v2209 = vpop.f32.mrb[0].mxu0
        %v2210 = vpop.f32.mrb[0].mxu0
        %v2211 = vadd.f32 %v2008, %v2210
        %v2212 = vpop.f32.mrb[0].mxu0
        %2213 = vmatprep.mubr.bf16.mxu0 0
        %2214 = vmatmul.mubr.bf16.gmra.mrb[0].mxu0 %v2062
        %v2215 = vpop.f32.mrb[0].mxu0
        %v2216 = vadd.f32 %v2008, %v2215
        %v2217 = vpop.f32.mrb[0].mxu0
        %v2218 = vpop.f32.mrb[0].mxu0
        %v2219 = vadd.f32 %v2008, %v2218
        %v2220 = vpop.f32.mrb[0].mxu0
        %2221 = vmatprep.mubr.bf16.mxu0 0
        %2222 = vmatmul.mubr.bf16.gmra.mrb[0].mxu0 %v2065
        %v2223 = vpop.f32.mrb[0].mxu0
        %v2224 = vadd.f32 %v2008, %v2223
        %v2225 = vpop.f32.mrb[0].mxu0
        %v2226 = vpop.f32.mrb[0].mxu0
        %v2227 = vadd.f32 %v2008, %v2226
        %v2228 = vpop.f32.mrb[0].mxu0
        %2229 = vmatprep.mubr.bf16.mxu0 0
        %2230 = vmatmul.mubr.bf16.gmra.mrb[0].mxu0 %v2068
        %v2231 = vpop.f32.mrb[0].mxu0
        %v2232 = vadd.f32 %v2008, %v2231
        %v2233 = vpop.f32.mrb[0].mxu0
        %v2234 = vpop.f32.mrb[0].mxu0
        %v2235 = vadd.f32 %v2008, %v2234
        %v2236 = vpop.f32.mrb[0].mxu0
        %2237 = vdwg.mxu0
        %vm2238 = vcmask 64512
        %2239 = vst.msk [vmem:[#allocation3] sm:$0xff] %vm2238, -inf
        %2240 = vst.msk [vmem:[#allocation3 + $0x8] sm:$0xff] %vm2238, -inf
        %s2241 = scalar_lea.vmem [#allocation3], 16
        %2242 = vst.msk [vmem:[%s2241] sm:$0xff] %vm2238, %v2112
        %2243 = vst.msk [vmem:[%s2241 + $0x8] sm:$0xff] %vm2238, %v2115
        %2244 = vst.msk [vmem:[%s2241 + $0x10] sm:$0xff] %vm2238, %v2120
        %2245 = vst.msk [vmem:[%s2241 + $0x18] sm:$0xff] %vm2238, %v2123
        %2246 = vst.msk [vmem:[%s2241 + $0x20] sm:$0xff] %vm2238, %v2128
        %2247 = vst.msk [vmem:[%s2241 + $0x28] sm:$0xff] %vm2238, %v2131
        %2248 = vst.msk [vmem:[%s2241 + $0x30] sm:$0xff] %vm2238, %v2136
        %2249 = vst.msk [vmem:[%s2241 + $0x38] sm:$0xff] %vm2238, %v2139
        %2250 = vst.msk [vmem:[%s2241 + $0x40] sm:$0xff] %vm2238, %v2144
        %2251 = vst.msk [vmem:[%s2241 + $0x48] sm:$0xff] %vm2238, %v2147
        %2252 = vst.msk [vmem:[%s2241 + $0x50] sm:$0xff] %vm2238, %v2152
        %2253 = vst.msk [vmem:[%s2241 + $0x58] sm:$0xff] %vm2238, %v2155
        %2254 = vst.msk [vmem:[%s2241 + $0x60] sm:$0xff] %vm2238, %v2160
        %2255 = vst.msk [vmem:[%s2241 + $0x68] sm:$0xff] %vm2238, %v2163
        %2256 = vst.msk [vmem:[%s2241 + $0x70] sm:$0xff] %vm2238, %v2168
        %2257 = vst.msk [vmem:[%s2241 + $0x78] sm:$0xff] %vm2238, %v2171
        %2258 = vst.msk [vmem:[%s2241 + $0x80] sm:$0xff] %vm2238, %v2176
        %2259 = vst.msk [vmem:[%s2241 + $0x88] sm:$0xff] %vm2238, %v2179
        %2260 = vst.msk [vmem:[%s2241 + $0x90] sm:$0xff] %vm2238, %v2184
        %2261 = vst.msk [vmem:[%s2241 + $0x98] sm:$0xff] %vm2238, %v2187
        %2262 = vst.msk [vmem:[%s2241 + $0xa0] sm:$0xff] %vm2238, %v2192
        %2263 = vst.msk [vmem:[%s2241 + $0xa8] sm:$0xff] %vm2238, %v2195
        %2264 = vst.msk [vmem:[%s2241 + $0xb0] sm:$0xff] %vm2238, %v2200
        %2265 = vst.msk [vmem:[%s2241 + $0xb8] sm:$0xff] %vm2238, %v2203
        %2266 = vst.msk [vmem:[%s2241 + $0xc0] sm:$0xff] %vm2238, %v2208
        %2267 = vst.msk [vmem:[%s2241 + $0xc8] sm:$0xff] %vm2238, %v2211
        %2268 = vst.msk [vmem:[%s2241 + $0xd0] sm:$0xff] %vm2238, %v2216
        %2269 = vst.msk [vmem:[%s2241 + $0xd8] sm:$0xff] %vm2238, %v2219
        %2270 = vst.msk [vmem:[%s2241 + $0xe0] sm:$0xff] %vm2238, %v2224
        %2271 = vst.msk [vmem:[%s2241 + $0xe8] sm:$0xff] %vm2238, %v2227
        %2272 = vst.msk [vmem:[%s2241 + $0xf0] sm:$0xff] %vm2238, %v2232
        %2273 = vst.msk [vmem:[%s2241 + $0xf8] sm:$0xff] %vm2238, %v2235
        %v2274 = vld [vmem:[#allocation3] sm:$0xff]
        %v2275 = vld [vmem:[#allocation3 + $0x8] sm:$0xff]
        %v2276 = vld [vmem:[#allocation3 + $0x20] sm:$0xff]
        %v2277 = vld [vmem:[#allocation3 + $0x28] sm:$0xff]
        %v2278 = vld [vmem:[#allocation3 + $0x40] sm:$0xff]
        %v2279 = vld [vmem:[#allocation3 + $0x48] sm:$0xff]
        %v2280 = vld [vmem:[#allocation3 + $0x60] sm:$0xff]
        %v2281 = vld [vmem:[#allocation3 + $0x68] sm:$0xff]
        %v2282 = vld [vmem:[#allocation3 + $0x80] sm:$0xff]
        %v2283 = vld [vmem:[#allocation3 + $0x88] sm:$0xff]
        %v2284 = vld [vmem:[#allocation3 + $0xa0] sm:$0xff]
        %v2285 = vld [vmem:[#allocation3 + $0xa8] sm:$0xff]
        %v2286 = vld [vmem:[#allocation3 + $0xc0] sm:$0xff]
        %v2287 = vld [vmem:[#allocation3 + $0xc8] sm:$0xff]
        %v2288 = vld [vmem:[#allocation3 + $0xe0] sm:$0xff]
        %v2289 = vld [vmem:[#allocation3 + $0xe8] sm:$0xff]
        %v2290 = vld [vmem:[%s2241] sm:$0xff]
        %v2291 = vld [vmem:[%s2241 + $0x8] sm:$0xff]
        %v2292 = vld [vmem:[%s2241 + $0x20] sm:$0xff]
        %v2293 = vld [vmem:[%s2241 + $0x28] sm:$0xff]
        %v2294 = vld [vmem:[%s2241 + $0x40] sm:$0xff]
        %v2295 = vld [vmem:[%s2241 + $0x48] sm:$0xff]
        %v2296 = vld [vmem:[%s2241 + $0x60] sm:$0xff]
        %v2297 = vld [vmem:[%s2241 + $0x68] sm:$0xff]
        %v2298 = vld [vmem:[%s2241 + $0x80] sm:$0xff]
        %v2299 = vld [vmem:[%s2241 + $0x88] sm:$0xff]
        %v2300 = vld [vmem:[%s2241 + $0xa0] sm:$0xff]
        %v2301 = vld [vmem:[%s2241 + $0xa8] sm:$0xff]
        %v2302 = vld [vmem:[%s2241 + $0xc0] sm:$0xff]
        %v2303 = vld [vmem:[%s2241 + $0xc8] sm:$0xff]
        %v2304 = vld [vmem:[%s2241 + $0xe0] sm:$0xff]
        %v2305 = vld [vmem:[%s2241 + $0xe8] sm:$0xff]
        %v2306 = vmax.f32 %v2274, %v2290
        %v2307 = vmax.f32 %v2275, %v2291
        %v2308 = vmax.f32 %v2276, %v2292
        %v2309 = vmax.f32 %v2277, %v2293
        %v2310 = vmax.f32 %v2278, %v2294
        %v2311 = vmax.f32 %v2279, %v2295
        %v2312 = vmax.f32 %v2280, %v2296
        %v2313 = vmax.f32 %v2281, %v2297
        %v2314 = vmax.f32 %v2282, %v2298
        %v2315 = vmax.f32 %v2283, %v2299
        %v2316 = vmax.f32 %v2284, %v2300
        %v2317 = vmax.f32 %v2285, %v2301
        %v2318 = vmax.f32 %v2286, %v2302
        %v2319 = vmax.f32 %v2287, %v2303
        %v2320 = vmax.f32 %v2288, %v2304
        %v2321 = vmax.f32 %v2289, %v2305
        %s2322 = scalar_lea.vmem [#allocation3], 32
        %v2323 = vld [vmem:[%s2322] sm:$0xff]
        %v2324 = vld [vmem:[%s2322 + $0x8] sm:$0xff]
        %v2325 = vld [vmem:[%s2322 + $0x20] sm:$0xff]
        %v2326 = vld [vmem:[%s2322 + $0x28] sm:$0xff]
        %v2327 = vld [vmem:[%s2322 + $0x40] sm:$0xff]
        %v2328 = vld [vmem:[%s2322 + $0x48] sm:$0xff]
        %v2329 = vld [vmem:[%s2322 + $0x60] sm:$0xff]
        %v2330 = vld [vmem:[%s2322 + $0x68] sm:$0xff]
        %v2331 = vld [vmem:[%s2322 + $0x80] sm:$0xff]
        %v2332 = vld [vmem:[%s2322 + $0x88] sm:$0xff]
        %v2333 = vld [vmem:[%s2322 + $0xa0] sm:$0xff]
        %v2334 = vld [vmem:[%s2322 + $0xa8] sm:$0xff]
        %v2335 = vld [vmem:[%s2322 + $0xc0] sm:$0xff]
        %v2336 = vld [vmem:[%s2322 + $0xc8] sm:$0xff]
        %v2337 = vld [vmem:[%s2322 + $0xe0] sm:$0xff]
        %v2338 = vld [vmem:[%s2322 + $0xe8] sm:$0xff]
        %v2339 = vmax.f32 %v2306, %v2323
        %v2340 = vmax.f32 %v2307, %v2324
        %v2341 = vmax.f32 %v2308, %v2325
        %v2342 = vmax.f32 %v2309, %v2326
        %v2343 = vmax.f32 %v2310, %v2327
        %v2344 = vmax.f32 %v2311, %v2328
        %v2345 = vmax.f32 %v2312, %v2329
        %v2346 = vmax.f32 %v2313, %v2330
        %v2347 = vmax.f32 %v2314, %v2331
        %v2348 = vmax.f32 %v2315, %v2332
        %v2349 = vmax.f32 %v2316, %v2333
        %v2350 = vmax.f32 %v2317, %v2334
        %v2351 = vmax.f32 %v2318, %v2335
        %v2352 = vmax.f32 %v2319, %v2336
        %v2353 = vmax.f32 %v2320, %v2337
        %v2354 = vmax.f32 %v2321, %v2338
        %vm2355 = vcmask 57344
        %2356 = vst.msk [vmem:[#allocation4] sm:$0x1] %vm2355, -inf
        %2357 = vst.msk [vmem:[#allocation4 + $0x18] sm:$0x1] %vm2355, -inf
        %2358 = vst.msk [vmem:[#allocation4 + $0x30] sm:$0x1] %vm2355, -inf
        %2359 = vst.msk [vmem:[#allocation4 + $0x48] sm:$0x1] %vm2355, -inf
        %2360 = vst.msk [vmem:[#allocation4 + $0x60] sm:$0x1] %vm2355, -inf
        %2361 = vst.msk [vmem:[#allocation4 + $0x78] sm:$0x1] %vm2355, -inf
        %2362 = vst.msk [vmem:[#allocation4 + $0x90] sm:$0x1] %vm2355, -inf
        %2363 = vst.msk [vmem:[#allocation4 + $0xa8] sm:$0x1] %vm2355, -inf
        %2364 = vst.msk [vmem:[#allocation4 + $0x1] sm:$0xff] %vm2238, %v2339
        %2365 = vst.msk [vmem:[#allocation4 + $0x9] sm:$0xff] %vm2238, %v2340
        %2366 = vst.msk [vmem:[#allocation4 + $0x19] sm:$0xff] %vm2238, %v2341
        %2367 = vst.msk [vmem:[#allocation4 + $0x21] sm:$0xff] %vm2238, %v2342
        %2368 = vst.msk [vmem:[#allocation4 + $0x31] sm:$0xff] %vm2238, %v2343
        %2369 = vst.msk [vmem:[#allocation4 + $0x39] sm:$0xff] %vm2238, %v2344
        %2370 = vst.msk [vmem:[#allocation4 + $0x49] sm:$0xff] %vm2238, %v2345
        %2371 = vst.msk [vmem:[#allocation4 + $0x51] sm:$0xff] %vm2238, %v2346
        %2372 = vst.msk [vmem:[#allocation4 + $0x61] sm:$0xff] %vm2238, %v2347
        %2373 = vst.msk [vmem:[#allocation4 + $0x69] sm:$0xff] %vm2238, %v2348
        %2374 = vst.msk [vmem:[#allocation4 + $0x79] sm:$0xff] %vm2238, %v2349
        %2375 = vst.msk [vmem:[#allocation4 + $0x81] sm:$0xff] %vm2238, %v2350
        %2376 = vst.msk [vmem:[#allocation4 + $0x91] sm:$0xff] %vm2238, %v2351
        %2377 = vst.msk [vmem:[#allocation4 + $0x99] sm:$0xff] %vm2238, %v2352
        %2378 = vst.msk [vmem:[#allocation4 + $0xa9] sm:$0xff] %vm2238, %v2353
        %2379 = vst.msk [vmem:[#allocation4 + $0xb1] sm:$0xff] %vm2238, %v2354
        %v2380 = vld [vmem:[#allocation4] ss:$2 sm:$0xff]
        %s2381 = scalar_lea.vmem [#allocation4], 24
        %v2382 = vld [vmem:[%s2381] ss:$2 sm:$0xff]
        %s2383 = scalar_lea.vmem [#allocation4], 48
        %v2384 = vld [vmem:[%s2383] ss:$2 sm:$0xff]
        %s2385 = scalar_lea.vmem [#allocation4], 72
        %v2386 = vld [vmem:[%s2385] ss:$2 sm:$0xff]
        %s2387 = scalar_lea.vmem [#allocation4], 96
        %v2388 = vld [vmem:[%s2387] ss:$2 sm:$0xff]
        %s2389 = scalar_lea.vmem [#allocation4], 120
        %v2390 = vld [vmem:[%s2389] ss:$2 sm:$0xff]
        %s2391 = scalar_lea.vmem [#allocation4], 144
        %v2392 = vld [vmem:[%s2391] ss:$2 sm:$0xff]
        %s2393 = scalar_lea.vmem [#allocation4], 168
        %v2394 = vld [vmem:[%s2393] ss:$2 sm:$0xff]
        %s2395 = scalar_lea.vmem [#allocation4], 1
        %v2396 = vld [vmem:[%s2395] ss:$2 sm:$0xff]
        %s2397 = scalar_lea.vmem [#allocation4], 25
        %v2398 = vld [vmem:[%s2397] ss:$2 sm:$0xff]
        %s2399 = scalar_lea.vmem [#allocation4], 49
        %v2400 = vld [vmem:[%s2399] ss:$2 sm:$0xff]
        %s2401 = scalar_lea.vmem [#allocation4], 73
        %v2402 = vld [vmem:[%s2401] ss:$2 sm:$0xff]
        %s2403 = scalar_lea.vmem [#allocation4], 97
        %v2404 = vld [vmem:[%s2403] ss:$2 sm:$0xff]
        %s2405 = scalar_lea.vmem [#allocation4], 121
        %v2406 = vld [vmem:[%s2405] ss:$2 sm:$0xff]
        %s2407 = scalar_lea.vmem [#allocation4], 145
        %v2408 = vld [vmem:[%s2407] ss:$2 sm:$0xff]
        %s2409 = scalar_lea.vmem [#allocation4], 169
        %v2410 = vld [vmem:[%s2409] ss:$2 sm:$0xff]
        %v2411 = vmax.f32 %v2380, %v2396
        %v2412 = vmax.f32 %v2382, %v2398
        %v2413 = vmax.f32 %v2384, %v2400
        %v2414 = vmax.f32 %v2386, %v2402
        %v2415 = vmax.f32 %v2388, %v2404
        %v2416 = vmax.f32 %v2390, %v2406
        %v2417 = vmax.f32 %v2392, %v2408
        %v2418 = vmax.f32 %v2394, %v2410
        %s2419 = scalar_lea.vmem [#allocation4], 2
        %v2420 = vld [vmem:[%s2419] ss:$2 sm:$0xff]
        %s2421 = scalar_lea.vmem [#allocation4], 26
        %v2422 = vld [vmem:[%s2421] ss:$2 sm:$0xff]
        %s2423 = scalar_lea.vmem [#allocation4], 50
        %v2424 = vld [vmem:[%s2423] ss:$2 sm:$0xff]
        %s2425 = scalar_lea.vmem [#allocation4], 74
        %v2426 = vld [vmem:[%s2425] ss:$2 sm:$0xff]
        %s2427 = scalar_lea.vmem [#allocation4], 98
        %v2428 = vld [vmem:[%s2427] ss:$2 sm:$0xff]
        %s2429 = scalar_lea.vmem [#allocation4], 122
        %v2430 = vld [vmem:[%s2429] ss:$2 sm:$0xff]
        %s2431 = scalar_lea.vmem [#allocation4], 146
        %v2432 = vld [vmem:[%s2431] ss:$2 sm:$0xff]
        %s2433 = scalar_lea.vmem [#allocation4], 170
        %v2434 = vld [vmem:[%s2433] ss:$2 sm:$0xff]
        %v2435 = vmax.f32 %v2411, %v2420
        %v2436 = vmax.f32 %v2412, %v2422
        %v2437 = vmax.f32 %v2413, %v2424
        %v2438 = vmax.f32 %v2414, %v2426
        %v2439 = vmax.f32 %v2415, %v2428
        %v2440 = vmax.f32 %v2416, %v2430
        %v2441 = vmax.f32 %v2417, %v2432
        %v2442 = vmax.f32 %v2418, %v2434
        %2443 = vst.msk [vmem:[#allocation5] sm:$0xff] %vm2238, 0.0
        %vm2444 = vcmask 58368
        %2445 = vst.msk [vmem:[#allocation5 + $0x8] sm:$0x3] %vm2444, 0.0
        %s2446 = scalar_lea.vmem [#allocation5], 144
        %2447 = vst.msk [vmem:[%s2446] sm:$0xff] %vm2238, 0.0
        %2448 = vst.msk [vmem:[%s2446 + $0x8] sm:$0x3] %vm2444, 0.0
        %s2449 = scalar_lea.vmem [#allocation5], 16
        %2450 = vst.msk [vmem:[%s2449] sm:$0x1] %vm2355, 0.0
        %2451 = vst.msk [vmem:[%s2449 + $0x10] sm:$0x1] %vm2355, 0.0
        %2452 = vst.msk [vmem:[%s2449 + $0x20] sm:$0x1] %vm2355, 0.0
        %2453 = vst.msk [vmem:[%s2449 + $0x30] sm:$0x1] %vm2355, 0.0
        %2454 = vst.msk [vmem:[%s2449 + $0x40] sm:$0x1] %vm2355, 0.0
        %2455 = vst.msk [vmem:[%s2449 + $0x50] sm:$0x1] %vm2355, 0.0
        %2456 = vst.msk [vmem:[%s2449 + $0x60] sm:$0x1] %vm2355, 0.0
        %2457 = vst.msk [vmem:[%s2449 + $0x70] sm:$0x1] %vm2355, 0.0
        %2458 = vst.msk [vmem:[%s2449 + $0x9] sm:$0x1] %vm2355, 0.0
        %2459 = vst.msk [vmem:[%s2449 + $0x19] sm:$0x1] %vm2355, 0.0
        %2460 = vst.msk [vmem:[%s2449 + $0x29] sm:$0x1] %vm2355, 0.0
        %2461 = vst.msk [vmem:[%s2449 + $0x39] sm:$0x1] %vm2355, 0.0
        %2462 = vst.msk [vmem:[%s2449 + $0x49] sm:$0x1] %vm2355, 0.0
        %2463 = vst.msk [vmem:[%s2449 + $0x59] sm:$0x1] %vm2355, 0.0
        %2464 = vst.msk [vmem:[%s2449 + $0x69] sm:$0x1] %vm2355, 0.0
        %2465 = vst.msk [vmem:[%s2449 + $0x79] sm:$0x1] %vm2355, 0.0
        %v2466 = vld [vmem:[#allocation12] sm:$0xf]
        %v2467 = vld [vmem:[#allocation12 + $0x4] sm:$0xf]
        %v2468 = vld [vmem:[#allocation12 + $0x8] sm:$0xf]
        %v2469 = vld [vmem:[#allocation12 + $0xc] sm:$0xf]
        %v2470 = vld [vmem:[#allocation12 + $0x10] sm:$0xf]
        %v2471 = vld [vmem:[#allocation12 + $0x14] sm:$0xf]
        %v2472 = vld [vmem:[#allocation12 + $0x18] sm:$0xf]
        %v2473 = vld [vmem:[#allocation12 + $0x1c] sm:$0xf]
        %v2474 = vld [vmem:[#allocation12 + $0x20] sm:$0xf]
        %v2475 = vld [vmem:[#allocation14] sm:$0x1]
        %s2476 = scalar_lea.vmem [#allocation12], 36
        %v2477 = vld [vmem:[%s2476] sm:$0xf]
        %v2478 = vld [vmem:[%s2476 + $0x4] sm:$0xf]
        %v2479 = vld [vmem:[%s2476 + $0x8] sm:$0xf]
        %v2480 = vld [vmem:[%s2476 + $0xc] sm:$0xf]
        %v2481 = vld [vmem:[%s2476 + $0x10] sm:$0xf]
        %v2482 = vld [vmem:[%s2476 + $0x14] sm:$0xf]
        %v2483 = vld [vmem:[%s2476 + $0x18] sm:$0xf]
        %v2484 = vld [vmem:[%s2476 + $0x1c] sm:$0xf]
        %v2485 = vld [vmem:[%s2476 + $0x20] sm:$0xf]
        %s2486 = scalar_lea.vmem [#allocation14], 1
        %v2487 = vld [vmem:[%s2486] sm:$0x1]
        %v2488 = vmax.f32 %v2435, 0.0
        %v2489 = vmax.f32 %v2436, 0.0
        %v2490 = vmax.f32 %v2437, 0.0
        %v2491 = vmax.f32 %v2438, 0.0
        %v2492 = vmax.f32 %v2439, 0.0
        %v2493 = vmax.f32 %v2440, 0.0
        %v2494 = vmax.f32 %v2441, 0.0
        %v2495 = vmax.f32 %v2442, 0.0
        %2496 = vst.msk [vmem:[%s2449 + $0x1] sm:$0xff] %vm2238, %v2488
        %2497 = vst.msk [vmem:[%s2449 + $0x11] sm:$0xff] %vm2238, %v2489
        %2498 = vst.msk [vmem:[%s2449 + $0x21] sm:$0xff] %vm2238, %v2490
        %2499 = vst.msk [vmem:[%s2449 + $0x31] sm:$0xff] %vm2238, %v2491
        %2500 = vst.msk [vmem:[%s2449 + $0x41] sm:$0xff] %vm2238, %v2492
        %2501 = vst.msk [vmem:[%s2449 + $0x51] sm:$0xff] %vm2238, %v2493
        %2502 = vst.msk [vmem:[%s2449 + $0x61] sm:$0xff] %vm2238, %v2494
        %2503 = vst.msk [vmem:[%s2449 + $0x71] sm:$0xff] %vm2238, %v2495
        %v2504 = vld [vmem:[#allocation5] sm:$0xff]
        %v2505 = vld [vmem:[#allocation5 + $0x10] sm:$0xff]
        %v2506 = vld [vmem:[#allocation5 + $0x20] sm:$0xff]
        %v2507 = vld [vmem:[#allocation5 + $0x30] sm:$0xff]
        %v2508 = vld [vmem:[#allocation5 + $0x40] sm:$0xff]
        %v2509 = vld [vmem:[#allocation5 + $0x50] sm:$0xff]
        %v2510 = vld [vmem:[#allocation5 + $0x60] sm:$0xff]
        %v2511 = vld [vmem:[#allocation5 + $0x70] sm:$0xff]
        %v2512 = vld [vmem:[#allocation5 + $0x1] sm:$0xff]
        %v2513 = vld [vmem:[#allocation5 + $0x11] sm:$0xff]
        %v2514 = vld [vmem:[#allocation5 + $0x21] sm:$0xff]
        %v2515 = vld [vmem:[#allocation5 + $0x31] sm:$0xff]
        %v2516 = vld [vmem:[#allocation5 + $0x41] sm:$0xff]
        %v2517 = vld [vmem:[#allocation5 + $0x51] sm:$0xff]
        %v2518 = vld [vmem:[#allocation5 + $0x61] sm:$0xff]
        %v2519 = vld [vmem:[#allocation5 + $0x71] sm:$0xff]
        %v2520 = vld [vmem:[#allocation5 + $0x2] sm:$0xff]
        %v2521 = vld [vmem:[#allocation5 + $0x12] sm:$0xff]
        %v2522 = vld [vmem:[#allocation5 + $0x22] sm:$0xff]
        %v2523 = vld [vmem:[#allocation5 + $0x32] sm:$0xff]
        %v2524 = vld [vmem:[#allocation5 + $0x42] sm:$0xff]
        %v2525 = vld [vmem:[#allocation5 + $0x52] sm:$0xff]
        %v2526 = vld [vmem:[#allocation5 + $0x62] sm:$0xff]
        %v2527 = vld [vmem:[#allocation5 + $0x72] sm:$0xff]
        %v2528 = vld [vmem:[%s2449] sm:$0xff]
        %v2529 = vld [vmem:[%s2449 + $0x10] sm:$0xff]
        %v2530 = vld [vmem:[%s2449 + $0x20] sm:$0xff]
        %v2531 = vld [vmem:[%s2449 + $0x30] sm:$0xff]
        %v2532 = vld [vmem:[%s2449 + $0x40] sm:$0xff]
        %v2533 = vld [vmem:[%s2449 + $0x50] sm:$0xff]
        %v2534 = vld [vmem:[%s2449 + $0x60] sm:$0xff]
        %v2535 = vld [vmem:[%s2449 + $0x70] sm:$0xff]
        %v2536 = vld [vmem:[%s2449 + $0x1] sm:$0xff]
        %v2537 = vld [vmem:[%s2449 + $0x11] sm:$0xff]
        %v2538 = vld [vmem:[%s2449 + $0x21] sm:$0xff]
        %v2539 = vld [vmem:[%s2449 + $0x31] sm:$0xff]
        %v2540 = vld [vmem:[%s2449 + $0x41] sm:$0xff]
        %v2541 = vld [vmem:[%s2449 + $0x51] sm:$0xff]
        %v2542 = vld [vmem:[%s2449 + $0x61] sm:$0xff]
        %v2543 = vld [vmem:[%s2449 + $0x71] sm:$0xff]
        %v2544 = vld [vmem:[%s2449 + $0x2] sm:$0xff]
        %v2545 = vld [vmem:[%s2449 + $0x12] sm:$0xff]
        %v2546 = vld [vmem:[%s2449 + $0x22] sm:$0xff]
        %v2547 = vld [vmem:[%s2449 + $0x32] sm:$0xff]
        %v2548 = vld [vmem:[%s2449 + $0x42] sm:$0xff]
        %v2549 = vld [vmem:[%s2449 + $0x52] sm:$0xff]
        %v2550 = vld [vmem:[%s2449 + $0x62] sm:$0xff]
        %v2551 = vld [vmem:[%s2449 + $0x72] sm:$0xff]
        %s2552 = scalar_lea.vmem [#allocation5], 32
        %v2553 = vld [vmem:[%s2552] sm:$0xff]
        %v2554 = vld [vmem:[%s2552 + $0x10] sm:$0xff]
        %v2555 = vld [vmem:[%s2552 + $0x20] sm:$0xff]
        %v2556 = vld [vmem:[%s2552 + $0x30] sm:$0xff]
        %v2557 = vld [vmem:[%s2552 + $0x40] sm:$0xff]
        %v2558 = vld [vmem:[%s2552 + $0x50] sm:$0xff]
        %v2559 = vld [vmem:[%s2552 + $0x60] sm:$0xff]
        %v2560 = vld [vmem:[%s2552 + $0x70] sm:$0xff]
        %v2561 = vld [vmem:[%s2552 + $0x1] sm:$0xff]
        %v2562 = vld [vmem:[%s2552 + $0x11] sm:$0xff]
        %v2563 = vld [vmem:[%s2552 + $0x21] sm:$0xff]
        %v2564 = vld [vmem:[%s2552 + $0x31] sm:$0xff]
        %v2565 = vld [vmem:[%s2552 + $0x41] sm:$0xff]
        %v2566 = vld [vmem:[%s2552 + $0x51] sm:$0xff]
        %v2567 = vld [vmem:[%s2552 + $0x61] sm:$0xff]
        %v2568 = vld [vmem:[%s2552 + $0x71] sm:$0xff]
        %v2569 = vld [vmem:[%s2552 + $0x2] sm:$0xff]
        %v2570 = vld [vmem:[%s2552 + $0x12] sm:$0xff]
        %v2571 = vld [vmem:[%s2552 + $0x22] sm:$0xff]
        %v2572 = vld [vmem:[%s2552 + $0x32] sm:$0xff]
        %v2573 = vld [vmem:[%s2552 + $0x42] sm:$0xff]
        %v2574 = vld [vmem:[%s2552 + $0x52] sm:$0xff]
        %v2575 = vld [vmem:[%s2552 + $0x62] sm:$0xff]
        %v2576 = vld [vmem:[%s2552 + $0x72] sm:$0xff]
        %2585 = vrot.lane.b32.xlu0 %v2512, 8
        %v2586 = vpop.permute.xlu0 %2585
        %2587 = vrot.lane.b32.xlu0 %v2513, 8
        %v2588 = vpop.permute.xlu0 %2587
        %2589 = vrot.lane.b32.xlu0 %v2514, 8
        %v2590 = vpop.permute.xlu0 %2589
        %2591 = vrot.lane.b32.xlu0 %v2515, 8
        %v2592 = vpop.permute.xlu0 %2591
        %2593 = vrot.lane.b32.xlu0 %v2516, 8
        %v2594 = vpop.permute.xlu0 %2593
        %2595 = vrot.lane.b32.xlu0 %v2517, 8
        %v2596 = vpop.permute.xlu0 %2595
        %2597 = vrot.lane.b32.xlu0 %v2518, 8
        %v2598 = vpop.permute.xlu0 %2597
        %2599 = vrot.lane.b32.xlu0 %v2519, 8
        %v2600 = vpop.permute.xlu0 %2599
        %2617 = vrot.lane.b32.xlu0 %v2520, 16
        %v2618 = vpop.permute.xlu0 %2617
        %2619 = vrot.lane.b32.xlu0 %v2521, 16
        %v2620 = vpop.permute.xlu0 %2619
        %2621 = vrot.lane.b32.xlu0 %v2522, 16
        %v2622 = vpop.permute.xlu0 %2621
        %2623 = vrot.lane.b32.xlu0 %v2523, 16
        %v2624 = vpop.permute.xlu0 %2623
        %2625 = vrot.lane.b32.xlu0 %v2524, 16
        %v2626 = vpop.permute.xlu0 %2625
        %2627 = vrot.lane.b32.xlu0 %v2525, 16
        %v2628 = vpop.permute.xlu0 %2627
        %2629 = vrot.lane.b32.xlu0 %v2526, 16
        %v2630 = vpop.permute.xlu0 %2629
        %2631 = vrot.lane.b32.xlu0 %v2527, 16
        %v2632 = vpop.permute.xlu0 %2631
        %2649 = vrot.lane.b32.xlu0 %v2528, 24
        %v2650 = vpop.permute.xlu0 %2649
        %2651 = vrot.lane.b32.xlu0 %v2529, 24
        %v2652 = vpop.permute.xlu0 %2651
        %2653 = vrot.lane.b32.xlu0 %v2530, 24
        %v2654 = vpop.permute.xlu0 %2653
        %2655 = vrot.lane.b32.xlu0 %v2531, 24
        %v2656 = vpop.permute.xlu0 %2655
        %2657 = vrot.lane.b32.xlu0 %v2532, 24
        %v2658 = vpop.permute.xlu0 %2657
        %2659 = vrot.lane.b32.xlu0 %v2533, 24
        %v2660 = vpop.permute.xlu0 %2659
        %2661 = vrot.lane.b32.xlu0 %v2534, 24
        %v2662 = vpop.permute.xlu0 %2661
        %2663 = vrot.lane.b32.xlu0 %v2535, 24
        %v2664 = vpop.permute.xlu0 %2663
        %2681 = vrot.lane.b32.xlu0 %v2536, 32
        %v2682 = vpop.permute.xlu0 %2681
        %2683 = vrot.lane.b32.xlu0 %v2537, 32
        %v2684 = vpop.permute.xlu0 %2683
        %2685 = vrot.lane.b32.xlu0 %v2538, 32
        %v2686 = vpop.permute.xlu0 %2685
        %2687 = vrot.lane.b32.xlu0 %v2539, 32
        %v2688 = vpop.permute.xlu0 %2687
        %2689 = vrot.lane.b32.xlu0 %v2540, 32
        %v2690 = vpop.permute.xlu0 %2689
        %2691 = vrot.lane.b32.xlu0 %v2541, 32
        %v2692 = vpop.permute.xlu0 %2691
        %2693 = vrot.lane.b32.xlu0 %v2542, 32
        %v2694 = vpop.permute.xlu0 %2693
        %2695 = vrot.lane.b32.xlu0 %v2543, 32
        %v2696 = vpop.permute.xlu0 %2695
        %2713 = vrot.lane.b32.xlu0 %v2544, 40
        %v2714 = vpop.permute.xlu0 %2713
        %2715 = vrot.lane.b32.xlu0 %v2545, 40
        %v2716 = vpop.permute.xlu0 %2715
        %2717 = vrot.lane.b32.xlu0 %v2546, 40
        %v2718 = vpop.permute.xlu0 %2717
        %2719 = vrot.lane.b32.xlu0 %v2547, 40
        %v2720 = vpop.permute.xlu0 %2719
        %2721 = vrot.lane.b32.xlu0 %v2548, 40
        %v2722 = vpop.permute.xlu0 %2721
        %2723 = vrot.lane.b32.xlu0 %v2549, 40
        %v2724 = vpop.permute.xlu0 %2723
        %2725 = vrot.lane.b32.xlu0 %v2550, 40
        %v2726 = vpop.permute.xlu0 %2725
        %2727 = vrot.lane.b32.xlu0 %v2551, 40
        %v2728 = vpop.permute.xlu0 %2727
        %2745 = vrot.lane.b32.xlu0 %v2553, 48
        %v2746 = vpop.permute.xlu0 %2745
        %2747 = vrot.lane.b32.xlu0 %v2554, 48
        %v2748 = vpop.permute.xlu0 %2747
        %2749 = vrot.lane.b32.xlu0 %v2555, 48
        %v2750 = vpop.permute.xlu0 %2749
        %2751 = vrot.lane.b32.xlu0 %v2556, 48
        %v2752 = vpop.permute.xlu0 %2751
        %2753 = vrot.lane.b32.xlu0 %v2557, 48
        %v2754 = vpop.permute.xlu0 %2753
        %2755 = vrot.lane.b32.xlu0 %v2558, 48
        %v2756 = vpop.permute.xlu0 %2755
        %2757 = vrot.lane.b32.xlu0 %v2559, 48
        %v2758 = vpop.permute.xlu0 %2757
        %2759 = vrot.lane.b32.xlu0 %v2560, 48
        %v2760 = vpop.permute.xlu0 %2759
        %2777 = vrot.lane.b32.xlu0 %v2561, 56
        %v2778 = vpop.permute.xlu0 %2777
        %2779 = vrot.lane.b32.xlu0 %v2562, 56
        %v2780 = vpop.permute.xlu0 %2779
        %2781 = vrot.lane.b32.xlu0 %v2563, 56
        %v2782 = vpop.permute.xlu0 %2781
        %2783 = vrot.lane.b32.xlu0 %v2564, 56
        %v2784 = vpop.permute.xlu0 %2783
        %2785 = vrot.lane.b32.xlu0 %v2565, 56
        %v2786 = vpop.permute.xlu0 %2785
        %2787 = vrot.lane.b32.xlu0 %v2566, 56
        %v2788 = vpop.permute.xlu0 %2787
        %2789 = vrot.lane.b32.xlu0 %v2567, 56
        %v2790 = vpop.permute.xlu0 %2789
        %2791 = vrot.lane.b32.xlu0 %v2568, 56
        %v2792 = vpop.permute.xlu0 %2791
        %2809 = vrot.lane.b32.xlu0 %v2569, 64
        %v2810 = vpop.permute.xlu0 %2809
        %2811 = vrot.lane.b32.xlu0 %v2570, 64
        %v2812 = vpop.permute.xlu0 %2811
        %2813 = vrot.lane.b32.xlu0 %v2571, 64
        %v2814 = vpop.permute.xlu0 %2813
        %2815 = vrot.lane.b32.xlu0 %v2572, 64
        %v2816 = vpop.permute.xlu0 %2815
        %2817 = vrot.lane.b32.xlu0 %v2573, 64
        %v2818 = vpop.permute.xlu0 %2817
        %2819 = vrot.lane.b32.xlu0 %v2574, 64
        %v2820 = vpop.permute.xlu0 %2819
        %2821 = vrot.lane.b32.xlu0 %v2575, 64
        %v2822 = vpop.permute.xlu0 %2821
        %2823 = vrot.lane.b32.xlu0 %v2576, 64
        %v2824 = vpop.permute.xlu0 %2823
        %v2833 = vsel %vm2238, %v2504, %v2586
        %v2834 = vsel %vm2238, %v2505, %v2588
        %v2835 = vsel %vm2238, %v2506, %v2590
        %v2836 = vsel %vm2238, %v2507, %v2592
        %v2837 = vsel %vm2238, %v2508, %v2594
        %v2838 = vsel %vm2238, %v2509, %v2596
        %v2839 = vsel %vm2238, %v2510, %v2598
        %v2840 = vsel %vm2238, %v2511, %v2600
        %vm2841 = vcmask 130048
        %v2842 = vsel %vm2841, %v2833, %v2618
        %v2843 = vsel %vm2841, %v2834, %v2620
        %v2844 = vsel %vm2841, %v2835, %v2622
        %v2845 = vsel %vm2841, %v2836, %v2624
        %v2846 = vsel %vm2841, %v2837, %v2626
        %v2847 = vsel %vm2841, %v2838, %v2628
        %v2848 = vsel %vm2841, %v2839, %v2630
        %v2849 = vsel %vm2841, %v2840, %v2632
        %v2850 = vsel %vm1955, %v2842, %v2650
        %v2851 = vsel %vm1955, %v2843, %v2652
        %v2852 = vsel %vm1955, %v2844, %v2654
        %v2853 = vsel %vm1955, %v2845, %v2656
        %v2854 = vsel %vm1955, %v2846, %v2658
        %v2855 = vsel %vm1955, %v2847, %v2660
        %v2856 = vsel %vm1955, %v2848, %v2662
        %v2857 = vsel %vm1955, %v2849, %v2664
        %vm2858 = vcmask 261120
        %v2859 = vsel %vm2858, %v2850, %v2682
        %v2860 = vsel %vm2858, %v2851, %v2684
        %v2861 = vsel %vm2858, %v2852, %v2686
        %v2862 = vsel %vm2858, %v2853, %v2688
        %v2863 = vsel %vm2858, %v2854, %v2690
        %v2864 = vsel %vm2858, %v2855, %v2692
        %v2865 = vsel %vm2858, %v2856, %v2694
        %v2866 = vsel %vm2858, %v2857, %v2696
        %vm2867 = vcmask 326656
        %v2868 = vsel %vm2867, %v2859, %v2714
        %v2869 = vsel %vm2867, %v2860, %v2716
        %v2870 = vsel %vm2867, %v2861, %v2718
        %v2871 = vsel %vm2867, %v2862, %v2720
        %v2872 = vsel %vm2867, %v2863, %v2722
        %v2873 = vsel %vm2867, %v2864, %v2724
        %v2874 = vsel %vm2867, %v2865, %v2726
        %v2875 = vsel %vm2867, %v2866, %v2728
        %vm2876 = vcmask 392192
        %v2877 = vsel %vm2876, %v2868, %v2746
        %v2878 = vsel %vm2876, %v2869, %v2748
        %v2879 = vsel %vm2876, %v2870, %v2750
        %v2880 = vsel %vm2876, %v2871, %v2752
        %v2881 = vsel %vm2876, %v2872, %v2754
        %v2882 = vsel %vm2876, %v2873, %v2756
        %v2883 = vsel %vm2876, %v2874, %v2758
        %v2884 = vsel %vm2876, %v2875, %v2760
        %vm2885 = vcmask 457728
        %v2886 = vsel %vm2885, %v2877, %v2778
        %v2887 = vsel %vm2885, %v2878, %v2780
        %v2888 = vsel %vm2885, %v2879, %v2782
        %v2889 = vsel %vm2885, %v2880, %v2784
        %v2890 = vsel %vm2885, %v2881, %v2786
        %v2891 = vsel %vm2885, %v2882, %v2788
        %v2892 = vsel %vm2885, %v2883, %v2790
        %v2893 = vsel %vm2885, %v2884, %v2792
        %vm2894 = vcmask 523264
        %v2895 = vsel %vm2894, %v2886, %v2810
        %v2896 = vsel %vm2894, %v2887, %v2812
        %v2897 = vsel %vm2894, %v2888, %v2814
        %v2898 = vsel %vm2894, %v2889, %v2816
        %v2899 = vsel %vm2894, %v2890, %v2818
        %v2900 = vsel %vm2894, %v2891, %v2820
        %v2901 = vsel %vm2894, %v2892, %v2822
        %v2902 = vsel %vm2894, %v2893, %v2824
        %v2903 = vpack.c.bf16 %v2896, %v2895
        %v2904 = vpack.c.bf16 %v2898, %v2897
        %v2905 = vpack.c.bf16 %v2900, %v2899
        %v2906 = vpack.c.bf16 %v2902, %v2901
        %v2908 = vlaneseq
        %v2909 = vshrl.u32 %v2908, 7
        %v2910 = vsub.s32 0, %v2909
        %v2911 = vrot.slane %v2475, %v2910
        %v2922 = vunpack.c.l.b16 %v2466
        %v2923 = vunpack.c.l.b16 %v2467
        %v2924 = vunpack.c.l.b16 %v2468
        %v2925 = vunpack.c.l.b16 %v2469
        %v2926 = vunpack.c.l.b16 %v2470
        %v2927 = vunpack.c.l.b16 %v2471
        %v2928 = vunpack.c.l.b16 %v2472
        %v2929 = vunpack.c.l.b16 %v2473
        %v2930 = vunpack.c.l.b16 %v2474
        %v2931 = vpack.c.b16 %v2923, %v2922
        %v2932 = vpack.c.b16 %v2925, %v2924
        %v2933 = vpack.c.b16 %v2927, %v2926
        %v2934 = vpack.c.b16 %v2929, %v2928
        %v2935 = vpack.c.b16 %v2930, %v2930
        %vm2940 = vcmask 588800
        %v2942 = vsel %vm2940, %v2903, 0
        %v2945 = vsel %vm2940, %v2904, 0
        %v2948 = vsel %vm2940, %v2905, 0
        %v2951 = vsel %vm2940, %v2906, 0
        %vm2953 = vcmask 1043456
        %v2955 = vsel %vm2953, %v2935, 0
        %2957 = vmatprep.subr.bf16.mxu0 0
        %2958 = vmatpush1.bf16.msra.mxu0 %v2931
        %2959 = vmatprep.subr.bf16.mxu0 0
        %2960 = vmatpush1.bf16.msra.mxu0 %v2932
        %2961 = vmatprep.subr.bf16.mxu0 0
        %2962 = vmatpush1.bf16.msra.mxu0 %v2933
        %2963 = vmatprep.subr.bf16.mxu0 0
        %2964 = vmatpush1.bf16.msra.mxu0 %v2934
        %2965 = vmatprep.subr.bf16.mxu0 0
        %2966 = vmatpush1.bf16.msra.mxu0 %v2955
        %2967 = vmatprep.subr.bf16.mxu0 0
        %2968 = vmatpush1.bf16.msra.mxu0 0
        %2969 = vmatprep.subr.bf16.mxu0 0
        %2970 = vmatpush1.bf16.msra.mxu0 0
        %2971 = vmatprep.subr.bf16.mxu0 0
        %2972 = vmatpush1.bf16.msra.mxu0 0
        %2973 = vmatprep.subr.bf16.mxu0 0
        %2974 = vmatpush1.bf16.msra.mxu0 0
        %2975 = vmatprep.subr.bf16.mxu0 0
        %2976 = vmatpush1.bf16.msra.mxu0 0
        %2977 = vmatprep.subr.bf16.mxu0 0
        %2978 = vmatpush1.bf16.msra.mxu0 0
        %2979 = vmatprep.subr.bf16.mxu0 0
        %2980 = vmatpush1.bf16.msra.mxu0 0
        %2981 = vmatprep.subr.bf16.mxu0 0
        %2982 = vmatpush1.bf16.msra.mxu0 0
        %2983 = vmatprep.subr.bf16.mxu0 0
        %2984 = vmatpush1.bf16.msra.mxu0 0
        %2985 = vmatprep.subr.bf16.mxu0 0
        %2986 = vmatpush1.bf16.msra.mxu0 0
        %2987 = vmatprep.subr.bf16.mxu0 0
        %2988 = vmatpush1.bf16.msra.mxu0 0
        %2989 = vmatprep.mubr.bf16.mxu0 0
        %2990 = vmatmul.mubr.bf16.gmra.mrb[0].mxu0 %v2942
        %v2991 = vpop.f32.mrb[0].mxu0
        %v2992 = vadd.f32 %v2911, %v2991
        %v2993 = vpop.f32.mrb[0].mxu0
        %v2994 = vpop.f32.mrb[0].mxu0
        %v2995 = vadd.f32 %v2911, %v2994
        %v2996 = vpop.f32.mrb[0].mxu0
        %2997 = vmatprep.mubr.bf16.mxu0 0
        %2998 = vmatmul.mubr.bf16.gmra.mrb[0].mxu0 %v2945
        %v2999 = vpop.f32.mrb[0].mxu0
        %v3000 = vadd.f32 %v2911, %v2999
        %v3001 = vpop.f32.mrb[0].mxu0
        %v3002 = vpop.f32.mrb[0].mxu0
        %v3003 = vadd.f32 %v2911, %v3002
        %v3004 = vpop.f32.mrb[0].mxu0
        %3005 = vmatprep.mubr.bf16.mxu0 0
        %3006 = vmatmul.mubr.bf16.gmra.mrb[0].mxu0 %v2948
        %v3007 = vpop.f32.mrb[0].mxu0
        %v3008 = vadd.f32 %v2911, %v3007
        %v3009 = vpop.f32.mrb[0].mxu0
        %v3010 = vpop.f32.mrb[0].mxu0
        %v3011 = vadd.f32 %v2911, %v3010
        %v3012 = vpop.f32.mrb[0].mxu0
        %3013 = vmatprep.mubr.bf16.mxu0 0
        %3014 = vmatmul.mubr.bf16.gmra.mrb[0].mxu0 %v2951
        %v3015 = vpop.f32.mrb[0].mxu0
        %v3016 = vadd.f32 %v2911, %v3015
        %v3017 = vpop.f32.mrb[0].mxu0
        %v3018 = vpop.f32.mrb[0].mxu0
        %v3019 = vadd.f32 %v2911, %v3018
        %v3020 = vpop.f32.mrb[0].mxu0
        %3021 = vdwg.mxu0
        %v3022 = vmax.f32 %v2992, 0.0
        %v3023 = vmax.f32 %v2995, 0.0
        %v3024 = vmax.f32 %v3000, 0.0
        %v3025 = vmax.f32 %v3003, 0.0
        %v3026 = vmax.f32 %v3008, 0.0
        %v3027 = vmax.f32 %v3011, 0.0
        %v3028 = vmax.f32 %v3016, 0.0
        %v3029 = vmax.f32 %v3019, 0.0
        %3030 = vst.msk [vmem:[%s2449 + $0x1] sm:$0xff] %vm2238, %v3022
        %3031 = vst.msk [vmem:[%s2449 + $0x11] sm:$0xff] %vm2238, %v3023
        %3032 = vst.msk [vmem:[%s2449 + $0x21] sm:$0xff] %vm2238, %v3024
        %3033 = vst.msk [vmem:[%s2449 + $0x31] sm:$0xff] %vm2238, %v3025
        %3034 = vst.msk [vmem:[%s2449 + $0x41] sm:$0xff] %vm2238, %v3026
        %3035 = vst.msk [vmem:[%s2449 + $0x51] sm:$0xff] %vm2238, %v3027
        %3036 = vst.msk [vmem:[%s2449 + $0x61] sm:$0xff] %vm2238, %v3028
        %3037 = vst.msk [vmem:[%s2449 + $0x71] sm:$0xff] %vm2238, %v3029
        %v3038 = vld [vmem:[#allocation5] sm:$0xff]
        %v3039 = vld [vmem:[#allocation5 + $0x10] sm:$0xff]
        %v3040 = vld [vmem:[#allocation5 + $0x20] sm:$0xff]
        %v3041 = vld [vmem:[#allocation5 + $0x30] sm:$0xff]
        %v3042 = vld [vmem:[#allocation5 + $0x40] sm:$0xff]
        %v3043 = vld [vmem:[#allocation5 + $0x50] sm:$0xff]
        %v3044 = vld [vmem:[#allocation5 + $0x60] sm:$0xff]
        %v3045 = vld [vmem:[#allocation5 + $0x70] sm:$0xff]
        %v3046 = vld [vmem:[#allocation5 + $0x1] sm:$0xff]
        %v3047 = vld [vmem:[#allocation5 + $0x11] sm:$0xff]
        %v3048 = vld [vmem:[#allocation5 + $0x21] sm:$0xff]
        %v3049 = vld [vmem:[#allocation5 + $0x31] sm:$0xff]
        %v3050 = vld [vmem:[#allocation5 + $0x41] sm:$0xff]
        %v3051 = vld [vmem:[#allocation5 + $0x51] sm:$0xff]
        %v3052 = vld [vmem:[#allocation5 + $0x61] sm:$0xff]
        %v3053 = vld [vmem:[#allocation5 + $0x71] sm:$0xff]
        %v3054 = vld [vmem:[#allocation5 + $0x2] sm:$0xff]
        %v3055 = vld [vmem:[#allocation5 + $0x12] sm:$0xff]
        %v3056 = vld [vmem:[#allocation5 + $0x22] sm:$0xff]
        %v3057 = vld [vmem:[#allocation5 + $0x32] sm:$0xff]
        %v3058 = vld [vmem:[#allocation5 + $0x42] sm:$0xff]
        %v3059 = vld [vmem:[#allocation5 + $0x52] sm:$0xff]
        %v3060 = vld [vmem:[#allocation5 + $0x62] sm:$0xff]
        %v3061 = vld [vmem:[#allocation5 + $0x72] sm:$0xff]
        %v3062 = vld [vmem:[%s2449] sm:$0xff]
        %v3063 = vld [vmem:[%s2449 + $0x10] sm:$0xff]
        %v3064 = vld [vmem:[%s2449 + $0x20] sm:$0xff]
        %v3065 = vld [vmem:[%s2449 + $0x30] sm:$0xff]
        %v3066 = vld [vmem:[%s2449 + $0x40] sm:$0xff]
        %v3067 = vld [vmem:[%s2449 + $0x50] sm:$0xff]
        %v3068 = vld [vmem:[%s2449 + $0x60] sm:$0xff]
        %v3069 = vld [vmem:[%s2449 + $0x70] sm:$0xff]
        %v3070 = vld [vmem:[%s2449 + $0x1] sm:$0xff]
        %v3071 = vld [vmem:[%s2449 + $0x11] sm:$0xff]
        %v3072 = vld [vmem:[%s2449 + $0x21] sm:$0xff]
        %v3073 = vld [vmem:[%s2449 + $0x31] sm:$0xff]
        %v3074 = vld [vmem:[%s2449 + $0x41] sm:$0xff]
        %v3075 = vld [vmem:[%s2449 + $0x51] sm:$0xff]
        %v3076 = vld [vmem:[%s2449 + $0x61] sm:$0xff]
        %v3077 = vld [vmem:[%s2449 + $0x71] sm:$0xff]
        %v3078 = vld [vmem:[%s2449 + $0x2] sm:$0xff]
        %v3079 = vld [vmem:[%s2449 + $0x12] sm:$0xff]
        %v3080 = vld [vmem:[%s2449 + $0x22] sm:$0xff]
        %v3081 = vld [vmem:[%s2449 + $0x32] sm:$0xff]
        %v3082 = vld [vmem:[%s2449 + $0x42] sm:$0xff]
        %v3083 = vld [vmem:[%s2449 + $0x52] sm:$0xff]
        %v3084 = vld [vmem:[%s2449 + $0x62] sm:$0xff]
        %v3085 = vld [vmem:[%s2449 + $0x72] sm:$0xff]
        %v3086 = vld [vmem:[%s2552] sm:$0xff]
        %v3087 = vld [vmem:[%s2552 + $0x10] sm:$0xff]
        %v3088 = vld [vmem:[%s2552 + $0x20] sm:$0xff]
        %v3089 = vld [vmem:[%s2552 + $0x30] sm:$0xff]
        %v3090 = vld [vmem:[%s2552 + $0x40] sm:$0xff]
        %v3091 = vld [vmem:[%s2552 + $0x50] sm:$0xff]
        %v3092 = vld [vmem:[%s2552 + $0x60] sm:$0xff]
        %v3093 = vld [vmem:[%s2552 + $0x70] sm:$0xff]
        %v3094 = vld [vmem:[%s2552 + $0x1] sm:$0xff]
        %v3095 = vld [vmem:[%s2552 + $0x11] sm:$0xff]
        %v3096 = vld [vmem:[%s2552 + $0x21] sm:$0xff]
        %v3097 = vld [vmem:[%s2552 + $0x31] sm:$0xff]
        %v3098 = vld [vmem:[%s2552 + $0x41] sm:$0xff]
        %v3099 = vld [vmem:[%s2552 + $0x51] sm:$0xff]
        %v3100 = vld [vmem:[%s2552 + $0x61] sm:$0xff]
        %v3101 = vld [vmem:[%s2552 + $0x71] sm:$0xff]
        %v3102 = vld [vmem:[%s2552 + $0x2] sm:$0xff]
        %v3103 = vld [vmem:[%s2552 + $0x12] sm:$0xff]
        %v3104 = vld [vmem:[%s2552 + $0x22] sm:$0xff]
        %v3105 = vld [vmem:[%s2552 + $0x32] sm:$0xff]
        %v3106 = vld [vmem:[%s2552 + $0x42] sm:$0xff]
        %v3107 = vld [vmem:[%s2552 + $0x52] sm:$0xff]
        %v3108 = vld [vmem:[%s2552 + $0x62] sm:$0xff]
        %v3109 = vld [vmem:[%s2552 + $0x72] sm:$0xff]
        %3118 = vrot.lane.b32.xlu0 %v3046, 8
        %v3119 = vpop.permute.xlu0 %3118
        %3120 = vrot.lane.b32.xlu0 %v3047, 8
        %v3121 = vpop.permute.xlu0 %3120
        %3122 = vrot.lane.b32.xlu0 %v3048, 8
        %v3123 = vpop.permute.xlu0 %3122
        %3124 = vrot.lane.b32.xlu0 %v3049, 8
        %v3125 = vpop.permute.xlu0 %3124
        %3126 = vrot.lane.b32.xlu0 %v3050, 8
        %v3127 = vpop.permute.xlu0 %3126
        %3128 = vrot.lane.b32.xlu0 %v3051, 8
        %v3129 = vpop.permute.xlu0 %3128
        %3130 = vrot.lane.b32.xlu0 %v3052, 8
        %v3131 = vpop.permute.xlu0 %3130
        %3132 = vrot.lane.b32.xlu0 %v3053, 8
        %v3133 = vpop.permute.xlu0 %3132
        %3150 = vrot.lane.b32.xlu0 %v3054, 16
        %v3151 = vpop.permute.xlu0 %3150
        %3152 = vrot.lane.b32.xlu0 %v3055, 16
        %v3153 = vpop.permute.xlu0 %3152
        %3154 = vrot.lane.b32.xlu0 %v3056, 16
        %v3155 = vpop.permute.xlu0 %3154
        %3156 = vrot.lane.b32.xlu0 %v3057, 16
        %v3157 = vpop.permute.xlu0 %3156
        %3158 = vrot.lane.b32.xlu0 %v3058, 16
        %v3159 = vpop.permute.xlu0 %3158
        %3160 = vrot.lane.b32.xlu0 %v3059, 16
        %v3161 = vpop.permute.xlu0 %3160
        %3162 = vrot.lane.b32.xlu0 %v3060, 16
        %v3163 = vpop.permute.xlu0 %3162
        %3164 = vrot.lane.b32.xlu0 %v3061, 16
        %v3165 = vpop.permute.xlu0 %3164
        %3182 = vrot.lane.b32.xlu0 %v3062, 24
        %v3183 = vpop.permute.xlu0 %3182
        %3184 = vrot.lane.b32.xlu0 %v3063, 24
        %v3185 = vpop.permute.xlu0 %3184
        %3186 = vrot.lane.b32.xlu0 %v3064, 24
        %v3187 = vpop.permute.xlu0 %3186
        %3188 = vrot.lane.b32.xlu0 %v3065, 24
        %v3189 = vpop.permute.xlu0 %3188
        %3190 = vrot.lane.b32.xlu0 %v3066, 24
        %v3191 = vpop.permute.xlu0 %3190
        %3192 = vrot.lane.b32.xlu0 %v3067, 24
        %v3193 = vpop.permute.xlu0 %3192
        %3194 = vrot.lane.b32.xlu0 %v3068, 24
        %v3195 = vpop.permute.xlu0 %3194
        %3196 = vrot.lane.b32.xlu0 %v3069, 24
        %v3197 = vpop.permute.xlu0 %3196
        %3214 = vrot.lane.b32.xlu0 %v3070, 32
        %v3215 = vpop.permute.xlu0 %3214
        %3216 = vrot.lane.b32.xlu0 %v3071, 32
        %v3217 = vpop.permute.xlu0 %3216
        %3218 = vrot.lane.b32.xlu0 %v3072, 32
        %v3219 = vpop.permute.xlu0 %3218
        %3220 = vrot.lane.b32.xlu0 %v3073, 32
        %v3221 = vpop.permute.xlu0 %3220
        %3222 = vrot.lane.b32.xlu0 %v3074, 32
        %v3223 = vpop.permute.xlu0 %3222
        %3224 = vrot.lane.b32.xlu0 %v3075, 32
        %v3225 = vpop.permute.xlu0 %3224
        %3226 = vrot.lane.b32.xlu0 %v3076, 32
        %v3227 = vpop.permute.xlu0 %3226
        %3228 = vrot.lane.b32.xlu0 %v3077, 32
        %v3229 = vpop.permute.xlu0 %3228
        %3246 = vrot.lane.b32.xlu0 %v3078, 40
        %v3247 = vpop.permute.xlu0 %3246
        %3248 = vrot.lane.b32.xlu0 %v3079, 40
        %v3249 = vpop.permute.xlu0 %3248
        %3250 = vrot.lane.b32.xlu0 %v3080, 40
        %v3251 = vpop.permute.xlu0 %3250
        %3252 = vrot.lane.b32.xlu0 %v3081, 40
        %v3253 = vpop.permute.xlu0 %3252
        %3254 = vrot.lane.b32.xlu0 %v3082, 40
        %v3255 = vpop.permute.xlu0 %3254
        %3256 = vrot.lane.b32.xlu0 %v3083, 40
        %v3257 = vpop.permute.xlu0 %3256
        %3258 = vrot.lane.b32.xlu0 %v3084, 40
        %v3259 = vpop.permute.xlu0 %3258
        %3260 = vrot.lane.b32.xlu0 %v3085, 40
        %v3261 = vpop.permute.xlu0 %3260
        %3278 = vrot.lane.b32.xlu0 %v3086, 48
        %v3279 = vpop.permute.xlu0 %3278
        %3280 = vrot.lane.b32.xlu0 %v3087, 48
        %v3281 = vpop.permute.xlu0 %3280
        %3282 = vrot.lane.b32.xlu0 %v3088, 48
        %v3283 = vpop.permute.xlu0 %3282
        %3284 = vrot.lane.b32.xlu0 %v3089, 48
        %v3285 = vpop.permute.xlu0 %3284
        %3286 = vrot.lane.b32.xlu0 %v3090, 48
        %v3287 = vpop.permute.xlu0 %3286
        %3288 = vrot.lane.b32.xlu0 %v3091, 48
        %v3289 = vpop.permute.xlu0 %3288
        %3290 = vrot.lane.b32.xlu0 %v3092, 48
        %v3291 = vpop.permute.xlu0 %3290
        %3292 = vrot.lane.b32.xlu0 %v3093, 48
        %v3293 = vpop.permute.xlu0 %3292
        %3310 = vrot.lane.b32.xlu0 %v3094, 56
        %v3311 = vpop.permute.xlu0 %3310
        %3312 = vrot.lane.b32.xlu0 %v3095, 56
        %v3313 = vpop.permute.xlu0 %3312
        %3314 = vrot.lane.b32.xlu0 %v3096, 56
        %v3315 = vpop.permute.xlu0 %3314
        %3316 = vrot.lane.b32.xlu0 %v3097, 56
        %v3317 = vpop.permute.xlu0 %3316
        %3318 = vrot.lane.b32.xlu0 %v3098, 56
        %v3319 = vpop.permute.xlu0 %3318
        %3320 = vrot.lane.b32.xlu0 %v3099, 56
        %v3321 = vpop.permute.xlu0 %3320
        %3322 = vrot.lane.b32.xlu0 %v3100, 56
        %v3323 = vpop.permute.xlu0 %3322
        %3324 = vrot.lane.b32.xlu0 %v3101, 56
        %v3325 = vpop.permute.xlu0 %3324
        %3342 = vrot.lane.b32.xlu0 %v3102, 64
        %v3343 = vpop.permute.xlu0 %3342
        %3344 = vrot.lane.b32.xlu0 %v3103, 64
        %v3345 = vpop.permute.xlu0 %3344
        %3346 = vrot.lane.b32.xlu0 %v3104, 64
        %v3347 = vpop.permute.xlu0 %3346
        %3348 = vrot.lane.b32.xlu0 %v3105, 64
        %v3349 = vpop.permute.xlu0 %3348
        %3350 = vrot.lane.b32.xlu0 %v3106, 64
        %v3351 = vpop.permute.xlu0 %3350
        %3352 = vrot.lane.b32.xlu0 %v3107, 64
        %v3353 = vpop.permute.xlu0 %3352
        %3354 = vrot.lane.b32.xlu0 %v3108, 64
        %v3355 = vpop.permute.xlu0 %3354
        %3356 = vrot.lane.b32.xlu0 %v3109, 64
        %v3357 = vpop.permute.xlu0 %3356
        %v3366 = vsel %vm2238, %v3038, %v3119
        %v3367 = vsel %vm2238, %v3039, %v3121
        %v3368 = vsel %vm2238, %v3040, %v3123
        %v3369 = vsel %vm2238, %v3041, %v3125
        %v3370 = vsel %vm2238, %v3042, %v3127
        %v3371 = vsel %vm2238, %v3043, %v3129
        %v3372 = vsel %vm2238, %v3044, %v3131
        %v3373 = vsel %vm2238, %v3045, %v3133
        %v3374 = vsel %vm2841, %v3366, %v3151
        %v3375 = vsel %vm2841, %v3367, %v3153
        %v3376 = vsel %vm2841, %v3368, %v3155
        %v3377 = vsel %vm2841, %v3369, %v3157
        %v3378 = vsel %vm2841, %v3370, %v3159
        %v3379 = vsel %vm2841, %v3371, %v3161
        %v3380 = vsel %vm2841, %v3372, %v3163
        %v3381 = vsel %vm2841, %v3373, %v3165
        %v3382 = vsel %vm1955, %v3374, %v3183
        %v3383 = vsel %vm1955, %v3375, %v3185
        %v3384 = vsel %vm1955, %v3376, %v3187
        %v3385 = vsel %vm1955, %v3377, %v3189
        %v3386 = vsel %vm1955, %v3378, %v3191
        %v3387 = vsel %vm1955, %v3379, %v3193
        %v3388 = vsel %vm1955, %v3380, %v3195
        %v3389 = vsel %vm1955, %v3381, %v3197
        %v3390 = vsel %vm2858, %v3382, %v3215
        %v3391 = vsel %vm2858, %v3383, %v3217
        %v3392 = vsel %vm2858, %v3384, %v3219
        %v3393 = vsel %vm2858, %v3385, %v3221
        %v3394 = vsel %vm2858, %v3386, %v3223
        %v3395 = vsel %vm2858, %v3387, %v3225
        %v3396 = vsel %vm2858, %v3388, %v3227
        %v3397 = vsel %vm2858, %v3389, %v3229
        %v3398 = vsel %vm2867, %v3390, %v3247
        %v3399 = vsel %vm2867, %v3391, %v3249
        %v3400 = vsel %vm2867, %v3392, %v3251
        %v3401 = vsel %vm2867, %v3393, %v3253
        %v3402 = vsel %vm2867, %v3394, %v3255
        %v3403 = vsel %vm2867, %v3395, %v3257
        %v3404 = vsel %vm2867, %v3396, %v3259
        %v3405 = vsel %vm2867, %v3397, %v3261
        %v3406 = vsel %vm2876, %v3398, %v3279
        %v3407 = vsel %vm2876, %v3399, %v3281
        %v3408 = vsel %vm2876, %v3400, %v3283
        %v3409 = vsel %vm2876, %v3401, %v3285
        %v3410 = vsel %vm2876, %v3402, %v3287
        %v3411 = vsel %vm2876, %v3403, %v3289
        %v3412 = vsel %vm2876, %v3404, %v3291
        %v3413 = vsel %vm2876, %v3405, %v3293
        %v3414 = vsel %vm2885, %v3406, %v3311
        %v3415 = vsel %vm2885, %v3407, %v3313
        %v3416 = vsel %vm2885, %v3408, %v3315
        %v3417 = vsel %vm2885, %v3409, %v3317
        %v3418 = vsel %vm2885, %v3410, %v3319
        %v3419 = vsel %vm2885, %v3411, %v3321
        %v3420 = vsel %vm2885, %v3412, %v3323
        %v3421 = vsel %vm2885, %v3413, %v3325
        %v3422 = vsel %vm2894, %v3414, %v3343
        %v3423 = vsel %vm2894, %v3415, %v3345
        %v3424 = vsel %vm2894, %v3416, %v3347
        %v3425 = vsel %vm2894, %v3417, %v3349
        %v3426 = vsel %vm2894, %v3418, %v3351
        %v3427 = vsel %vm2894, %v3419, %v3353
        %v3428 = vsel %vm2894, %v3420, %v3355
        %v3429 = vsel %vm2894, %v3421, %v3357
        %v3430 = vpack.c.bf16 %v3423, %v3422
        %v3431 = vpack.c.bf16 %v3425, %v3424
        %v3432 = vpack.c.bf16 %v3427, %v3426
        %v3433 = vpack.c.bf16 %v3429, %v3428
        %v3435 = vlaneseq
        %v3436 = vshrl.u32 %v3435, 7
        %v3437 = vsub.s32 0, %v3436
        %v3438 = vrot.slane %v2487, %v3437
        %v3449 = vunpack.c.l.b16 %v2477
        %v3450 = vunpack.c.l.b16 %v2478
        %v3451 = vunpack.c.l.b16 %v2479
        %v3452 = vunpack.c.l.b16 %v2480
        %v3453 = vunpack.c.l.b16 %v2481
        %v3454 = vunpack.c.l.b16 %v2482
        %v3455 = vunpack.c.l.b16 %v2483
        %v3456 = vunpack.c.l.b16 %v2484
        %v3457 = vunpack.c.l.b16 %v2485
        %v3458 = vpack.c.b16 %v3450, %v3449
        %v3459 = vpack.c.b16 %v3452, %v3451
        %v3460 = vpack.c.b16 %v3454, %v3453
        %v3461 = vpack.c.b16 %v3456, %v3455
        %v3462 = vpack.c.b16 %v3457, %v3457
        %v3468 = vsel %vm2940, %v3430, 0
        %v3471 = vsel %vm2940, %v3431, 0
        %v3474 = vsel %vm2940, %v3432, 0
        %v3477 = vsel %vm2940, %v3433, 0
        %v3480 = vsel %vm2953, %v3462, 0
        %3482 = vmatprep.subr.bf16.mxu0 0
        %3483 = vmatpush1.bf16.msra.mxu0 %v3458
        %3484 = vmatprep.subr.bf16.mxu0 0
        %3485 = vmatpush1.bf16.msra.mxu0 %v3459
        %3486 = vmatprep.subr.bf16.mxu0 0
        %3487 = vmatpush1.bf16.msra.mxu0 %v3460
        %3488 = vmatprep.subr.bf16.mxu0 0
        %3489 = vmatpush1.bf16.msra.mxu0 %v3461
        %3490 = vmatprep.subr.bf16.mxu0 0
        %3491 = vmatpush1.bf16.msra.mxu0 %v3480
        %3492 = vmatprep.subr.bf16.mxu0 0
        %3493 = vmatpush1.bf16.msra.mxu0 0
        %3494 = vmatprep.subr.bf16.mxu0 0
        %3495 = vmatpush1.bf16.msra.mxu0 0
        %3496 = vmatprep.subr.bf16.mxu0 0
        %3497 = vmatpush1.bf16.msra.mxu0 0
        %3498 = vmatprep.subr.bf16.mxu0 0
        %3499 = vmatpush1.bf16.msra.mxu0 0
        %3500 = vmatprep.subr.bf16.mxu0 0
        %3501 = vmatpush1.bf16.msra.mxu0 0
        %3502 = vmatprep.subr.bf16.mxu0 0
        %3503 = vmatpush1.bf16.msra.mxu0 0
        %3504 = vmatprep.subr.bf16.mxu0 0
        %3505 = vmatpush1.bf16.msra.mxu0 0
        %3506 = vmatprep.subr.bf16.mxu0 0
        %3507 = vmatpush1.bf16.msra.mxu0 0
        %3508 = vmatprep.subr.bf16.mxu0 0
        %3509 = vmatpush1.bf16.msra.mxu0 0
        %3510 = vmatprep.subr.bf16.mxu0 0
        %3511 = vmatpush1.bf16.msra.mxu0 0
        %3512 = vmatprep.subr.bf16.mxu0 0
        %3513 = vmatpush1.bf16.msra.mxu0 0
        %3514 = vmatprep.mubr.bf16.mxu0 0
        %3515 = vmatmul.mubr.bf16.gmra.mrb[0].mxu0 %v3468
        %v3516 = vpop.f32.mrb[0].mxu0
        %v3517 = vadd.f32 %v3438, %v3516
        %v3518 = vpop.f32.mrb[0].mxu0
        %v3519 = vpop.f32.mrb[0].mxu0
        %v3520 = vadd.f32 %v3438, %v3519
        %v3521 = vpop.f32.mrb[0].mxu0
        %3522 = vmatprep.mubr.bf16.mxu0 0
        %3523 = vmatmul.mubr.bf16.gmra.mrb[0].mxu0 %v3471
        %v3524 = vpop.f32.mrb[0].mxu0
        %v3525 = vadd.f32 %v3438, %v3524
        %v3526 = vpop.f32.mrb[0].mxu0
        %v3527 = vpop.f32.mrb[0].mxu0
        %v3528 = vadd.f32 %v3438, %v3527
        %v3529 = vpop.f32.mrb[0].mxu0
        %3530 = vmatprep.mubr.bf16.mxu0 0
        %3531 = vmatmul.mubr.bf16.gmra.mrb[0].mxu0 %v3474
        %v3532 = vpop.f32.mrb[0].mxu0
        %v3533 = vadd.f32 %v3438, %v3532
        %v3534 = vpop.f32.mrb[0].mxu0
        %v3535 = vpop.f32.mrb[0].mxu0
        %v3536 = vadd.f32 %v3438, %v3535
        %v3537 = vpop.f32.mrb[0].mxu0
        %3538 = vmatprep.mubr.bf16.mxu0 0
        %3539 = vmatmul.mubr.bf16.gmra.mrb[0].mxu0 %v3477
        %v3540 = vpop.f32.mrb[0].mxu0
        %v3541 = vadd.f32 %v3438, %v3540
        %v3542 = vpop.f32.mrb[0].mxu0
        %v3543 = vpop.f32.mrb[0].mxu0
        %v3544 = vadd.f32 %v3438, %v3543
        %v3545 = vpop.f32.mrb[0].mxu0
        %3546 = vdwg.mxu0
        %v3547 = vadd.f32 %v3517, %v2435
        %v3548 = vadd.f32 %v3520, %v2436
        %v3549 = vadd.f32 %v3525, %v2437
        %v3550 = vadd.f32 %v3528, %v2438
        %v3551 = vadd.f32 %v3533, %v2439
        %v3552 = vadd.f32 %v3536, %v2440
        %v3553 = vadd.f32 %v3541, %v2441
        %v3554 = vadd.f32 %v3544, %v2442
        %s3555 = scalar_lea.vmem [#allocation12], 72
        %v3556 = vld [vmem:[%s3555] sm:$0xf]
        %v3557 = vld [vmem:[%s3555 + $0x4] sm:$0xf]
        %v3558 = vld [vmem:[%s3555 + $0x8] sm:$0xf]
        %v3559 = vld [vmem:[%s3555 + $0xc] sm:$0xf]
        %v3560 = vld [vmem:[%s3555 + $0x10] sm:$0xf]
        %v3561 = vld [vmem:[%s3555 + $0x14] sm:$0xf]
        %v3562 = vld [vmem:[%s3555 + $0x18] sm:$0xf]
        %v3563 = vld [vmem:[%s3555 + $0x1c] sm:$0xf]
        %v3564 = vld [vmem:[%s3555 + $0x20] sm:$0xf]
        %s3565 = scalar_lea.vmem [#allocation14], 2
        %v3566 = vld [vmem:[%s3565] sm:$0x1]
        %s3567 = scalar_lea.vmem [#allocation12], 108
        %v3568 = vld [vmem:[%s3567] sm:$0xf]
        %v3569 = vld [vmem:[%s3567 + $0x4] sm:$0xf]
        %v3570 = vld [vmem:[%s3567 + $0x8] sm:$0xf]
        %v3571 = vld [vmem:[%s3567 + $0xc] sm:$0xf]
        %v3572 = vld [vmem:[%s3567 + $0x10] sm:$0xf]
        %v3573 = vld [vmem:[%s3567 + $0x14] sm:$0xf]
        %v3574 = vld [vmem:[%s3567 + $0x18] sm:$0xf]
        %v3575 = vld [vmem:[%s3567 + $0x1c] sm:$0xf]
        %v3576 = vld [vmem:[%s3567 + $0x20] sm:$0xf]
        %s3577 = scalar_lea.vmem [#allocation14], 3
        %v3578 = vld [vmem:[%s3577] sm:$0x1]
        %v3579 = vmax.f32 %v3547, 0.0
        %v3580 = vmax.f32 %v3548, 0.0
        %v3581 = vmax.f32 %v3549, 0.0
        %v3582 = vmax.f32 %v3550, 0.0
        %v3583 = vmax.f32 %v3551, 0.0
        %v3584 = vmax.f32 %v3552, 0.0
        %v3585 = vmax.f32 %v3553, 0.0
        %v3586 = vmax.f32 %v3554, 0.0
        %3587 = vst.msk [vmem:[%s2449 + $0x1] sm:$0xff] %vm2238, %v3579
        %3588 = vst.msk [vmem:[%s2449 + $0x11] sm:$0xff] %vm2238, %v3580
        %3589 = vst.msk [vmem:[%s2449 + $0x21] sm:$0xff] %vm2238, %v3581
        %3590 = vst.msk [vmem:[%s2449 + $0x31] sm:$0xff] %vm2238, %v3582
        %3591 = vst.msk [vmem:[%s2449 + $0x41] sm:$0xff] %vm2238, %v3583
        %3592 = vst.msk [vmem:[%s2449 + $0x51] sm:$0xff] %vm2238, %v3584
        %3593 = vst.msk [vmem:[%s2449 + $0x61] sm:$0xff] %vm2238, %v3585
        %3594 = vst.msk [vmem:[%s2449 + $0x71] sm:$0xff] %vm2238, %v3586
        %v3595 = vld [vmem:[#allocation5] sm:$0xff]
        %v3596 = vld [vmem:[#allocation5 + $0x10] sm:$0xff]
        %v3597 = vld [vmem:[#allocation5 + $0x20] sm:$0xff]
        %v3598 = vld [vmem:[#allocation5 + $0x30] sm:$0xff]
        %v3599 = vld [vmem:[#allocation5 + $0x40] sm:$0xff]
        %v3600 = vld [vmem:[#allocation5 + $0x50] sm:$0xff]
        %v3601 = vld [vmem:[#allocation5 + $0x60] sm:$0xff]
        %v3602 = vld [vmem:[#allocation5 + $0x70] sm:$0xff]
        %v3603 = vld [vmem:[#allocation5 + $0x1] sm:$0xff]
        %v3604 = vld [vmem:[#allocation5 + $0x11] sm:$0xff]
        %v3605 = vld [vmem:[#allocation5 + $0x21] sm:$0xff]
        %v3606 = vld [vmem:[#allocation5 + $0x31] sm:$0xff]
        %v3607 = vld [vmem:[#allocation5 + $0x41] sm:$0xff]
        %v3608 = vld [vmem:[#allocation5 + $0x51] sm:$0xff]
        %v3609 = vld [vmem:[#allocation5 + $0x61] sm:$0xff]
        %v3610 = vld [vmem:[#allocation5 + $0x71] sm:$0xff]
        %v3611 = vld [vmem:[#allocation5 + $0x2] sm:$0xff]
        %v3612 = vld [vmem:[#allocation5 + $0x12] sm:$0xff]
        %v3613 = vld [vmem:[#allocation5 + $0x22] sm:$0xff]
        %v3614 = vld [vmem:[#allocation5 + $0x32] sm:$0xff]
        %v3615 = vld [vmem:[#allocation5 + $0x42] sm:$0xff]
        %v3616 = vld [vmem:[#allocation5 + $0x52] sm:$0xff]
        %v3617 = vld [vmem:[#allocation5 + $0x62] sm:$0xff]
        %v3618 = vld [vmem:[#allocation5 + $0x72] sm:$0xff]
        %v3619 = vld [vmem:[%s2449] sm:$0xff]
        %v3620 = vld [vmem:[%s2449 + $0x10] sm:$0xff]
        %v3621 = vld [vmem:[%s2449 + $0x20] sm:$0xff]
        %v3622 = vld [vmem:[%s2449 + $0x30] sm:$0xff]
        %v3623 = vld [vmem:[%s2449 + $0x40] sm:$0xff]
        %v3624 = vld [vmem:[%s2449 + $0x50] sm:$0xff]
        %v3625 = vld [vmem:[%s2449 + $0x60] sm:$0xff]
        %v3626 = vld [vmem:[%s2449 + $0x70] sm:$0xff]
        %v3627 = vld [vmem:[%s2449 + $0x1] sm:$0xff]
        %v3628 = vld [vmem:[%s2449 + $0x11] sm:$0xff]
        %v3629 = vld [vmem:[%s2449 + $0x21] sm:$0xff]
        %v3630 = vld [vmem:[%s2449 + $0x31] sm:$0xff]
        %v3631 = vld [vmem:[%s2449 + $0x41] sm:$0xff]
        %v3632 = vld [vmem:[%s2449 + $0x51] sm:$0xff]
        %v3633 = vld [vmem:[%s2449 + $0x61] sm:$0xff]
        %v3634 = vld [vmem:[%s2449 + $0x71] sm:$0xff]
        %v3635 = vld [vmem:[%s2449 + $0x2] sm:$0xff]
        %v3636 = vld [vmem:[%s2449 + $0x12] sm:$0xff]
        %v3637 = vld [vmem:[%s2449 + $0x22] sm:$0xff]
        %v3638 = vld [vmem:[%s2449 + $0x32] sm:$0xff]
        %v3639 = vld [vmem:[%s2449 + $0x42] sm:$0xff]
        %v3640 = vld [vmem:[%s2449 + $0x52] sm:$0xff]
        %v3641 = vld [vmem:[%s2449 + $0x62] sm:$0xff]
        %v3642 = vld [vmem:[%s2449 + $0x72] sm:$0xff]
        %v3643 = vld [vmem:[%s2552] sm:$0xff]
        %v3644 = vld [vmem:[%s2552 + $0x10] sm:$0xff]
        %v3645 = vld [vmem:[%s2552 + $0x20] sm:$0xff]
        %v3646 = vld [vmem:[%s2552 + $0x30] sm:$0xff]
        %v3647 = vld [vmem:[%s2552 + $0x40] sm:$0xff]
        %v3648 = vld [vmem:[%s2552 + $0x50] sm:$0xff]
        %v3649 = vld [vmem:[%s2552 + $0x60] sm:$0xff]
        %v3650 = vld [vmem:[%s2552 + $0x70] sm:$0xff]
        %v3651 = vld [vmem:[%s2552 + $0x1] sm:$0xff]
        %v3652 = vld [vmem:[%s2552 + $0x11] sm:$0xff]
        %v3653 = vld [vmem:[%s2552 + $0x21] sm:$0xff]
        %v3654 = vld [vmem:[%s2552 + $0x31] sm:$0xff]
        %v3655 = vld [vmem:[%s2552 + $0x41] sm:$0xff]
        %v3656 = vld [vmem:[%s2552 + $0x51] sm:$0xff]
        %v3657 = vld [vmem:[%s2552 + $0x61] sm:$0xff]
        %v3658 = vld [vmem:[%s2552 + $0x71] sm:$0xff]
        %v3659 = vld [vmem:[%s2552 + $0x2] sm:$0xff]
        %v3660 = vld [vmem:[%s2552 + $0x12] sm:$0xff]
        %v3661 = vld [vmem:[%s2552 + $0x22] sm:$0xff]
        %v3662 = vld [vmem:[%s2552 + $0x32] sm:$0xff]
        %v3663 = vld [vmem:[%s2552 + $0x42] sm:$0xff]
        %v3664 = vld [vmem:[%s2552 + $0x52] sm:$0xff]
        %v3665 = vld [vmem:[%s2552 + $0x62] sm:$0xff]
        %v3666 = vld [vmem:[%s2552 + $0x72] sm:$0xff]
        %3675 = vrot.lane.b32.xlu0 %v3603, 8
        %v3676 = vpop.permute.xlu0 %3675
        %3677 = vrot.lane.b32.xlu0 %v3604, 8
        %v3678 = vpop.permute.xlu0 %3677
        %3679 = vrot.lane.b32.xlu0 %v3605, 8
        %v3680 = vpop.permute.xlu0 %3679
        %3681 = vrot.lane.b32.xlu0 %v3606, 8
        %v3682 = vpop.permute.xlu0 %3681
        %3683 = vrot.lane.b32.xlu0 %v3607, 8
        %v3684 = vpop.permute.xlu0 %3683
        %3685 = vrot.lane.b32.xlu0 %v3608, 8
        %v3686 = vpop.permute.xlu0 %3685
        %3687 = vrot.lane.b32.xlu0 %v3609, 8
        %v3688 = vpop.permute.xlu0 %3687
        %3689 = vrot.lane.b32.xlu0 %v3610, 8
        %v3690 = vpop.permute.xlu0 %3689
        %3707 = vrot.lane.b32.xlu0 %v3611, 16
        %v3708 = vpop.permute.xlu0 %3707
        %3709 = vrot.lane.b32.xlu0 %v3612, 16
        %v3710 = vpop.permute.xlu0 %3709
        %3711 = vrot.lane.b32.xlu0 %v3613, 16
        %v3712 = vpop.permute.xlu0 %3711
        %3713 = vrot.lane.b32.xlu0 %v3614, 16
        %v3714 = vpop.permute.xlu0 %3713
        %3715 = vrot.lane.b32.xlu0 %v3615, 16
        %v3716 = vpop.permute.xlu0 %3715
        %3717 = vrot.lane.b32.xlu0 %v3616, 16
        %v3718 = vpop.permute.xlu0 %3717
        %3719 = vrot.lane.b32.xlu0 %v3617, 16
        %v3720 = vpop.permute.xlu0 %3719
        %3721 = vrot.lane.b32.xlu0 %v3618, 16
        %v3722 = vpop.permute.xlu0 %3721
        %3739 = vrot.lane.b32.xlu0 %v3619, 24
        %v3740 = vpop.permute.xlu0 %3739
        %3741 = vrot.lane.b32.xlu0 %v3620, 24
        %v3742 = vpop.permute.xlu0 %3741
        %3743 = vrot.lane.b32.xlu0 %v3621, 24
        %v3744 = vpop.permute.xlu0 %3743
        %3745 = vrot.lane.b32.xlu0 %v3622, 24
        %v3746 = vpop.permute.xlu0 %3745
        %3747 = vrot.lane.b32.xlu0 %v3623, 24
        %v3748 = vpop.permute.xlu0 %3747
        %3749 = vrot.lane.b32.xlu0 %v3624, 24
        %v3750 = vpop.permute.xlu0 %3749
        %3751 = vrot.lane.b32.xlu0 %v3625, 24
        %v3752 = vpop.permute.xlu0 %3751
        %3753 = vrot.lane.b32.xlu0 %v3626, 24
        %v3754 = vpop.permute.xlu0 %3753
        %3771 = vrot.lane.b32.xlu0 %v3627, 32
        %v3772 = vpop.permute.xlu0 %3771
        %3773 = vrot.lane.b32.xlu0 %v3628, 32
        %v3774 = vpop.permute.xlu0 %3773
        %3775 = vrot.lane.b32.xlu0 %v3629, 32
        %v3776 = vpop.permute.xlu0 %3775
        %3777 = vrot.lane.b32.xlu0 %v3630, 32
        %v3778 = vpop.permute.xlu0 %3777
        %3779 = vrot.lane.b32.xlu0 %v3631, 32
        %v3780 = vpop.permute.xlu0 %3779
        %3781 = vrot.lane.b32.xlu0 %v3632, 32
        %v3782 = vpop.permute.xlu0 %3781
        %3783 = vrot.lane.b32.xlu0 %v3633, 32
        %v3784 = vpop.permute.xlu0 %3783
        %3785 = vrot.lane.b32.xlu0 %v3634, 32
        %v3786 = vpop.permute.xlu0 %3785
        %3803 = vrot.lane.b32.xlu0 %v3635, 40
        %v3804 = vpop.permute.xlu0 %3803
        %3805 = vrot.lane.b32.xlu0 %v3636, 40
        %v3806 = vpop.permute.xlu0 %3805
        %3807 = vrot.lane.b32.xlu0 %v3637, 40
        %v3808 = vpop.permute.xlu0 %3807
        %3809 = vrot.lane.b32.xlu0 %v3638, 40
        %v3810 = vpop.permute.xlu0 %3809
        %3811 = vrot.lane.b32.xlu0 %v3639, 40
        %v3812 = vpop.permute.xlu0 %3811
        %3813 = vrot.lane.b32.xlu0 %v3640, 40
        %v3814 = vpop.permute.xlu0 %3813
        %3815 = vrot.lane.b32.xlu0 %v3641, 40
        %v3816 = vpop.permute.xlu0 %3815
        %3817 = vrot.lane.b32.xlu0 %v3642, 40
        %v3818 = vpop.permute.xlu0 %3817
        %3835 = vrot.lane.b32.xlu0 %v3643, 48
        %v3836 = vpop.permute.xlu0 %3835
        %3837 = vrot.lane.b32.xlu0 %v3644, 48
        %v3838 = vpop.permute.xlu0 %3837
        %3839 = vrot.lane.b32.xlu0 %v3645, 48
        %v3840 = vpop.permute.xlu0 %3839
        %3841 = vrot.lane.b32.xlu0 %v3646, 48
        %v3842 = vpop.permute.xlu0 %3841
        %3843 = vrot.lane.b32.xlu0 %v3647, 48
        %v3844 = vpop.permute.xlu0 %3843
        %3845 = vrot.lane.b32.xlu0 %v3648, 48
        %v3846 = vpop.permute.xlu0 %3845
        %3847 = vrot.lane.b32.xlu0 %v3649, 48
        %v3848 = vpop.permute.xlu0 %3847
        %3849 = vrot.lane.b32.xlu0 %v3650, 48
        %v3850 = vpop.permute.xlu0 %3849
        %3867 = vrot.lane.b32.xlu0 %v3651, 56
        %v3868 = vpop.permute.xlu0 %3867
        %3869 = vrot.lane.b32.xlu0 %v3652, 56
        %v3870 = vpop.permute.xlu0 %3869
        %3871 = vrot.lane.b32.xlu0 %v3653, 56
        %v3872 = vpop.permute.xlu0 %3871
        %3873 = vrot.lane.b32.xlu0 %v3654, 56
        %v3874 = vpop.permute.xlu0 %3873
        %3875 = vrot.lane.b32.xlu0 %v3655, 56
        %v3876 = vpop.permute.xlu0 %3875
        %3877 = vrot.lane.b32.xlu0 %v3656, 56
        %v3878 = vpop.permute.xlu0 %3877
        %3879 = vrot.lane.b32.xlu0 %v3657, 56
        %v3880 = vpop.permute.xlu0 %3879
        %3881 = vrot.lane.b32.xlu0 %v3658, 56
        %v3882 = vpop.permute.xlu0 %3881
        %3899 = vrot.lane.b32.xlu0 %v3659, 64
        %v3900 = vpop.permute.xlu0 %3899
        %3901 = vrot.lane.b32.xlu0 %v3660, 64
        %v3902 = vpop.permute.xlu0 %3901
        %3903 = vrot.lane.b32.xlu0 %v3661, 64
        %v3904 = vpop.permute.xlu0 %3903
        %3905 = vrot.lane.b32.xlu0 %v3662, 64
        %v3906 = vpop.permute.xlu0 %3905
        %3907 = vrot.lane.b32.xlu0 %v3663, 64
        %v3908 = vpop.permute.xlu0 %3907
        %3909 = vrot.lane.b32.xlu0 %v3664, 64
        %v3910 = vpop.permute.xlu0 %3909
        %3911 = vrot.lane.b32.xlu0 %v3665, 64
        %v3912 = vpop.permute.xlu0 %3911
        %3913 = vrot.lane.b32.xlu0 %v3666, 64
        %v3914 = vpop.permute.xlu0 %3913
        %v3923 = vsel %vm2238, %v3595, %v3676
        %v3924 = vsel %vm2238, %v3596, %v3678
        %v3925 = vsel %vm2238, %v3597, %v3680
        %v3926 = vsel %vm2238, %v3598, %v3682
        %v3927 = vsel %vm2238, %v3599, %v3684
        %v3928 = vsel %vm2238, %v3600, %v3686
        %v3929 = vsel %vm2238, %v3601, %v3688
        %v3930 = vsel %vm2238, %v3602, %v3690
        %v3931 = vsel %vm2841, %v3923, %v3708
        %v3932 = vsel %vm2841, %v3924, %v3710
        %v3933 = vsel %vm2841, %v3925, %v3712
        %v3934 = vsel %vm2841, %v3926, %v3714
        %v3935 = vsel %vm2841, %v3927, %v3716
        %v3936 = vsel %vm2841, %v3928, %v3718
        %v3937 = vsel %vm2841, %v3929, %v3720
        %v3938 = vsel %vm2841, %v3930, %v3722
        %v3939 = vsel %vm1955, %v3931, %v3740
        %v3940 = vsel %vm1955, %v3932, %v3742
        %v3941 = vsel %vm1955, %v3933, %v3744
        %v3942 = vsel %vm1955, %v3934, %v3746
        %v3943 = vsel %vm1955, %v3935, %v3748
        %v3944 = vsel %vm1955, %v3936, %v3750
        %v3945 = vsel %vm1955, %v3937, %v3752
        %v3946 = vsel %vm1955, %v3938, %v3754
        %v3947 = vsel %vm2858, %v3939, %v3772
        %v3948 = vsel %vm2858, %v3940, %v3774
        %v3949 = vsel %vm2858, %v3941, %v3776
        %v3950 = vsel %vm2858, %v3942, %v3778
        %v3951 = vsel %vm2858, %v3943, %v3780
        %v3952 = vsel %vm2858, %v3944, %v3782
        %v3953 = vsel %vm2858, %v3945, %v3784
        %v3954 = vsel %vm2858, %v3946, %v3786
        %v3955 = vsel %vm2867, %v3947, %v3804
        %v3956 = vsel %vm2867, %v3948, %v3806
        %v3957 = vsel %vm2867, %v3949, %v3808
        %v3958 = vsel %vm2867, %v3950, %v3810
        %v3959 = vsel %vm2867, %v3951, %v3812
        %v3960 = vsel %vm2867, %v3952, %v3814
        %v3961 = vsel %vm2867, %v3953, %v3816
        %v3962 = vsel %vm2867, %v3954, %v3818
        %v3963 = vsel %vm2876, %v3955, %v3836
        %v3964 = vsel %vm2876, %v3956, %v3838
        %v3965 = vsel %vm2876, %v3957, %v3840
        %v3966 = vsel %vm2876, %v3958, %v3842
        %v3967 = vsel %vm2876, %v3959, %v3844
        %v3968 = vsel %vm2876, %v3960, %v3846
        %v3969 = vsel %vm2876, %v3961, %v3848
        %v3970 = vsel %vm2876, %v3962, %v3850
        %v3971 = vsel %vm2885, %v3963, %v3868
        %v3972 = vsel %vm2885, %v3964, %v3870
        %v3973 = vsel %vm2885, %v3965, %v3872
        %v3974 = vsel %vm2885, %v3966, %v3874
        %v3975 = vsel %vm2885, %v3967, %v3876
        %v3976 = vsel %vm2885, %v3968, %v3878
        %v3977 = vsel %vm2885, %v3969, %v3880
        %v3978 = vsel %vm2885, %v3970, %v3882
        %v3979 = vsel %vm2894, %v3971, %v3900
        %v3980 = vsel %vm2894, %v3972, %v3902
        %v3981 = vsel %vm2894, %v3973, %v3904
        %v3982 = vsel %vm2894, %v3974, %v3906
        %v3983 = vsel %vm2894, %v3975, %v3908
        %v3984 = vsel %vm2894, %v3976, %v3910
        %v3985 = vsel %vm2894, %v3977, %v3912
        %v3986 = vsel %vm2894, %v3978, %v3914
        %v3987 = vpack.c.bf16 %v3980, %v3979
        %v3988 = vpack.c.bf16 %v3982, %v3981
        %v3989 = vpack.c.bf16 %v3984, %v3983
        %v3990 = vpack.c.bf16 %v3986, %v3985
        %v3992 = vlaneseq
        %v3993 = vshrl.u32 %v3992, 7
        %v3994 = vsub.s32 0, %v3993
        %v3995 = vrot.slane %v3566, %v3994
        %v4006 = vunpack.c.l.b16 %v3556
        %v4007 = vunpack.c.l.b16 %v3557
        %v4008 = vunpack.c.l.b16 %v3558
        %v4009 = vunpack.c.l.b16 %v3559
        %v4010 = vunpack.c.l.b16 %v3560
        %v4011 = vunpack.c.l.b16 %v3561
        %v4012 = vunpack.c.l.b16 %v3562
        %v4013 = vunpack.c.l.b16 %v3563
        %v4014 = vunpack.c.l.b16 %v3564
        %v4015 = vpack.c.b16 %v4007, %v4006
        %v4016 = vpack.c.b16 %v4009, %v4008
        %v4017 = vpack.c.b16 %v4011, %v4010
        %v4018 = vpack.c.b16 %v4013, %v4012
        %v4019 = vpack.c.b16 %v4014, %v4014
        %v4025 = vsel %vm2940, %v3987, 0
        %v4028 = vsel %vm2940, %v3988, 0
        %v4031 = vsel %vm2940, %v3989, 0
        %v4034 = vsel %vm2940, %v3990, 0
        %v4037 = vsel %vm2953, %v4019, 0
        %4039 = vmatprep.subr.bf16.mxu0 0
        %4040 = vmatpush1.bf16.msra.mxu0 %v4015
        %4041 = vmatprep.subr.bf16.mxu0 0
        %4042 = vmatpush1.bf16.msra.mxu0 %v4016
        %4043 = vmatprep.subr.bf16.mxu0 0
        %4044 = vmatpush1.bf16.msra.mxu0 %v4017
        %4045 = vmatprep.subr.bf16.mxu0 0
        %4046 = vmatpush1.bf16.msra.mxu0 %v4018
        %4047 = vmatprep.subr.bf16.mxu0 0
        %4048 = vmatpush1.bf16.msra.mxu0 %v4037
        %4049 = vmatprep.subr.bf16.mxu0 0
        %4050 = vmatpush1.bf16.msra.mxu0 0
        %4051 = vmatprep.subr.bf16.mxu0 0
        %4052 = vmatpush1.bf16.msra.mxu0 0
        %4053 = vmatprep.subr.bf16.mxu0 0
        %4054 = vmatpush1.bf16.msra.mxu0 0
        %4055 = vmatprep.subr.bf16.mxu0 0
        %4056 = vmatpush1.bf16.msra.mxu0 0
        %4057 = vmatprep.subr.bf16.mxu0 0
        %4058 = vmatpush1.bf16.msra.mxu0 0
        %4059 = vmatprep.subr.bf16.mxu0 0
        %4060 = vmatpush1.bf16.msra.mxu0 0
        %4061 = vmatprep.subr.bf16.mxu0 0
        %4062 = vmatpush1.bf16.msra.mxu0 0
        %4063 = vmatprep.subr.bf16.mxu0 0
        %4064 = vmatpush1.bf16.msra.mxu0 0
        %4065 = vmatprep.subr.bf16.mxu0 0
        %4066 = vmatpush1.bf16.msra.mxu0 0
        %4067 = vmatprep.subr.bf16.mxu0 0
        %4068 = vmatpush1.bf16.msra.mxu0 0
        %4069 = vmatprep.subr.bf16.mxu0 0
        %4070 = vmatpush1.bf16.msra.mxu0 0
        %4071 = vmatprep.mubr.bf16.mxu0 0
        %4072 = vmatmul.mubr.bf16.gmra.mrb[0].mxu0 %v4025
        %v4073 = vpop.f32.mrb[0].mxu0
        %v4074 = vadd.f32 %v3995, %v4073
        %v4075 = vpop.f32.mrb[0].mxu0
        %v4076 = vpop.f32.mrb[0].mxu0
        %v4077 = vadd.f32 %v3995, %v4076
        %v4078 = vpop.f32.mrb[0].mxu0
        %4079 = vmatprep.mubr.bf16.mxu0 0
        %4080 = vmatmul.mubr.bf16.gmra.mrb[0].mxu0 %v4028
        %v4081 = vpop.f32.mrb[0].mxu0
        %v4082 = vadd.f32 %v3995, %v4081
        %v4083 = vpop.f32.mrb[0].mxu0
        %v4084 = vpop.f32.mrb[0].mxu0
        %v4085 = vadd.f32 %v3995, %v4084
        %v4086 = vpop.f32.mrb[0].mxu0
        %4087 = vmatprep.mubr.bf16.mxu0 0
        %4088 = vmatmul.mubr.bf16.gmra.mrb[0].mxu0 %v4031
        %v4089 = vpop.f32.mrb[0].mxu0
        %v4090 = vadd.f32 %v3995, %v4089
        %v4091 = vpop.f32.mrb[0].mxu0
        %v4092 = vpop.f32.mrb[0].mxu0
        %v4093 = vadd.f32 %v3995, %v4092
        %v4094 = vpop.f32.mrb[0].mxu0
        %4095 = vmatprep.mubr.bf16.mxu0 0
        %4096 = vmatmul.mubr.bf16.gmra.mrb[0].mxu0 %v4034
        %v4097 = vpop.f32.mrb[0].mxu0
        %v4098 = vadd.f32 %v3995, %v4097
        %v4099 = vpop.f32.mrb[0].mxu0
        %v4100 = vpop.f32.mrb[0].mxu0
        %v4101 = vadd.f32 %v3995, %v4100
        %v4102 = vpop.f32.mrb[0].mxu0
        %4103 = vdwg.mxu0
        %v4104 = vmax.f32 %v4074, 0.0
        %v4105 = vmax.f32 %v4077, 0.0
        %v4106 = vmax.f32 %v4082, 0.0
        %v4107 = vmax.f32 %v4085, 0.0
        %v4108 = vmax.f32 %v4090, 0.0
        %v4109 = vmax.f32 %v4093, 0.0
        %v4110 = vmax.f32 %v4098, 0.0
        %v4111 = vmax.f32 %v4101, 0.0
        %4112 = vst.msk [vmem:[%s2449 + $0x1] sm:$0xff] %vm2238, %v4104
        %4113 = vst.msk [vmem:[%s2449 + $0x11] sm:$0xff] %vm2238, %v4105
        %4114 = vst.msk [vmem:[%s2449 + $0x21] sm:$0xff] %vm2238, %v4106
        %4115 = vst.msk [vmem:[%s2449 + $0x31] sm:$0xff] %vm2238, %v4107
        %4116 = vst.msk [vmem:[%s2449 + $0x41] sm:$0xff] %vm2238, %v4108
        %4117 = vst.msk [vmem:[%s2449 + $0x51] sm:$0xff] %vm2238, %v4109
        %4118 = vst.msk [vmem:[%s2449 + $0x61] sm:$0xff] %vm2238, %v4110
        %4119 = vst.msk [vmem:[%s2449 + $0x71] sm:$0xff] %vm2238, %v4111
        %v4120 = vld [vmem:[#allocation5] sm:$0xff]
        %v4121 = vld [vmem:[#allocation5 + $0x10] sm:$0xff]
        %v4122 = vld [vmem:[#allocation5 + $0x20] sm:$0xff]
        %v4123 = vld [vmem:[#allocation5 + $0x30] sm:$0xff]
        %v4124 = vld [vmem:[#allocation5 + $0x40] sm:$0xff]
        %v4125 = vld [vmem:[#allocation5 + $0x50] sm:$0xff]
        %v4126 = vld [vmem:[#allocation5 + $0x60] sm:$0xff]
        %v4127 = vld [vmem:[#allocation5 + $0x70] sm:$0xff]
        %v4128 = vld [vmem:[#allocation5 + $0x1] sm:$0xff]
        %v4129 = vld [vmem:[#allocation5 + $0x11] sm:$0xff]
        %v4130 = vld [vmem:[#allocation5 + $0x21] sm:$0xff]
        %v4131 = vld [vmem:[#allocation5 + $0x31] sm:$0xff]
        %v4132 = vld [vmem:[#allocation5 + $0x41] sm:$0xff]
        %v4133 = vld [vmem:[#allocation5 + $0x51] sm:$0xff]
        %v4134 = vld [vmem:[#allocation5 + $0x61] sm:$0xff]
        %v4135 = vld [vmem:[#allocation5 + $0x71] sm:$0xff]
        %v4136 = vld [vmem:[#allocation5 + $0x2] sm:$0xff]
        %v4137 = vld [vmem:[#allocation5 + $0x12] sm:$0xff]
        %v4138 = vld [vmem:[#allocation5 + $0x22] sm:$0xff]
        %v4139 = vld [vmem:[#allocation5 + $0x32] sm:$0xff]
        %v4140 = vld [vmem:[#allocation5 + $0x42] sm:$0xff]
        %v4141 = vld [vmem:[#allocation5 + $0x52] sm:$0xff]
        %v4142 = vld [vmem:[#allocation5 + $0x62] sm:$0xff]
        %v4143 = vld [vmem:[#allocation5 + $0x72] sm:$0xff]
        %v4144 = vld [vmem:[%s2449] sm:$0xff]
        %v4145 = vld [vmem:[%s2449 + $0x10] sm:$0xff]
        %v4146 = vld [vmem:[%s2449 + $0x20] sm:$0xff]
        %v4147 = vld [vmem:[%s2449 + $0x30] sm:$0xff]
        %v4148 = vld [vmem:[%s2449 + $0x40] sm:$0xff]
        %v4149 = vld [vmem:[%s2449 + $0x50] sm:$0xff]
        %v4150 = vld [vmem:[%s2449 + $0x60] sm:$0xff]
        %v4151 = vld [vmem:[%s2449 + $0x70] sm:$0xff]
        %v4152 = vld [vmem:[%s2449 + $0x1] sm:$0xff]
        %v4153 = vld [vmem:[%s2449 + $0x11] sm:$0xff]
        %v4154 = vld [vmem:[%s2449 + $0x21] sm:$0xff]
        %v4155 = vld [vmem:[%s2449 + $0x31] sm:$0xff]
        %v4156 = vld [vmem:[%s2449 + $0x41] sm:$0xff]
        %v4157 = vld [vmem:[%s2449 + $0x51] sm:$0xff]
        %v4158 = vld [vmem:[%s2449 + $0x61] sm:$0xff]
        %v4159 = vld [vmem:[%s2449 + $0x71] sm:$0xff]
        %v4160 = vld [vmem:[%s2449 + $0x2] sm:$0xff]
        %v4161 = vld [vmem:[%s2449 + $0x12] sm:$0xff]
        %v4162 = vld [vmem:[%s2449 + $0x22] sm:$0xff]
        %v4163 = vld [vmem:[%s2449 + $0x32] sm:$0xff]
        %v4164 = vld [vmem:[%s2449 + $0x42] sm:$0xff]
        %v4165 = vld [vmem:[%s2449 + $0x52] sm:$0xff]
        %v4166 = vld [vmem:[%s2449 + $0x62] sm:$0xff]
        %v4167 = vld [vmem:[%s2449 + $0x72] sm:$0xff]
        %v4168 = vld [vmem:[%s2552] sm:$0xff]
        %v4169 = vld [vmem:[%s2552 + $0x10] sm:$0xff]
        %v4170 = vld [vmem:[%s2552 + $0x20] sm:$0xff]
        %v4171 = vld [vmem:[%s2552 + $0x30] sm:$0xff]
        %v4172 = vld [vmem:[%s2552 + $0x40] sm:$0xff]
        %v4173 = vld [vmem:[%s2552 + $0x50] sm:$0xff]
        %v4174 = vld [vmem:[%s2552 + $0x60] sm:$0xff]
        %v4175 = vld [vmem:[%s2552 + $0x70] sm:$0xff]
        %v4176 = vld [vmem:[%s2552 + $0x1] sm:$0xff]
        %v4177 = vld [vmem:[%s2552 + $0x11] sm:$0xff]
        %v4178 = vld [vmem:[%s2552 + $0x21] sm:$0xff]
        %v4179 = vld [vmem:[%s2552 + $0x31] sm:$0xff]
        %v4180 = vld [vmem:[%s2552 + $0x41] sm:$0xff]
        %v4181 = vld [vmem:[%s2552 + $0x51] sm:$0xff]
        %v4182 = vld [vmem:[%s2552 + $0x61] sm:$0xff]
        %v4183 = vld [vmem:[%s2552 + $0x71] sm:$0xff]
        %v4184 = vld [vmem:[%s2552 + $0x2] sm:$0xff]
        %v4185 = vld [vmem:[%s2552 + $0x12] sm:$0xff]
        %v4186 = vld [vmem:[%s2552 + $0x22] sm:$0xff]
        %v4187 = vld [vmem:[%s2552 + $0x32] sm:$0xff]
        %v4188 = vld [vmem:[%s2552 + $0x42] sm:$0xff]
        %v4189 = vld [vmem:[%s2552 + $0x52] sm:$0xff]
        %v4190 = vld [vmem:[%s2552 + $0x62] sm:$0xff]
        %v4191 = vld [vmem:[%s2552 + $0x72] sm:$0xff]
        %4200 = vrot.lane.b32.xlu0 %v4128, 8
        %v4201 = vpop.permute.xlu0 %4200
        %4202 = vrot.lane.b32.xlu0 %v4129, 8
        %v4203 = vpop.permute.xlu0 %4202
        %4204 = vrot.lane.b32.xlu0 %v4130, 8
        %v4205 = vpop.permute.xlu0 %4204
        %4206 = vrot.lane.b32.xlu0 %v4131, 8
        %v4207 = vpop.permute.xlu0 %4206
        %4208 = vrot.lane.b32.xlu0 %v4132, 8
        %v4209 = vpop.permute.xlu0 %4208
        %4210 = vrot.lane.b32.xlu0 %v4133, 8
        %v4211 = vpop.permute.xlu0 %4210
        %4212 = vrot.lane.b32.xlu0 %v4134, 8
        %v4213 = vpop.permute.xlu0 %4212
        %4214 = vrot.lane.b32.xlu0 %v4135, 8
        %v4215 = vpop.permute.xlu0 %4214
        %4232 = vrot.lane.b32.xlu0 %v4136, 16
        %v4233 = vpop.permute.xlu0 %4232
        %4234 = vrot.lane.b32.xlu0 %v4137, 16
        %v4235 = vpop.permute.xlu0 %4234
        %4236 = vrot.lane.b32.xlu0 %v4138, 16
        %v4237 = vpop.permute.xlu0 %4236
        %4238 = vrot.lane.b32.xlu0 %v4139, 16
        %v4239 = vpop.permute.xlu0 %4238
        %4240 = vrot.lane.b32.xlu0 %v4140, 16
        %v4241 = vpop.permute.xlu0 %4240
        %4242 = vrot.lane.b32.xlu0 %v4141, 16
        %v4243 = vpop.permute.xlu0 %4242
        %4244 = vrot.lane.b32.xlu0 %v4142, 16
        %v4245 = vpop.permute.xlu0 %4244
        %4246 = vrot.lane.b32.xlu0 %v4143, 16
        %v4247 = vpop.permute.xlu0 %4246
        %4264 = vrot.lane.b32.xlu0 %v4144, 24
        %v4265 = vpop.permute.xlu0 %4264
        %4266 = vrot.lane.b32.xlu0 %v4145, 24
        %v4267 = vpop.permute.xlu0 %4266
        %4268 = vrot.lane.b32.xlu0 %v4146, 24
        %v4269 = vpop.permute.xlu0 %4268
        %4270 = vrot.lane.b32.xlu0 %v4147, 24
        %v4271 = vpop.permute.xlu0 %4270
        %4272 = vrot.lane.b32.xlu0 %v4148, 24
        %v4273 = vpop.permute.xlu0 %4272
        %4274 = vrot.lane.b32.xlu0 %v4149, 24
        %v4275 = vpop.permute.xlu0 %4274
        %4276 = vrot.lane.b32.xlu0 %v4150, 24
        %v4277 = vpop.permute.xlu0 %4276
        %4278 = vrot.lane.b32.xlu0 %v4151, 24
        %v4279 = vpop.permute.xlu0 %4278
        %4296 = vrot.lane.b32.xlu0 %v4152, 32
        %v4297 = vpop.permute.xlu0 %4296
        %4298 = vrot.lane.b32.xlu0 %v4153, 32
        %v4299 = vpop.permute.xlu0 %4298
        %4300 = vrot.lane.b32.xlu0 %v4154, 32
        %v4301 = vpop.permute.xlu0 %4300
        %4302 = vrot.lane.b32.xlu0 %v4155, 32
        %v4303 = vpop.permute.xlu0 %4302
        %4304 = vrot.lane.b32.xlu0 %v4156, 32
        %v4305 = vpop.permute.xlu0 %4304
        %4306 = vrot.lane.b32.xlu0 %v4157, 32
        %v4307 = vpop.permute.xlu0 %4306
        %4308 = vrot.lane.b32.xlu0 %v4158, 32
        %v4309 = vpop.permute.xlu0 %4308
        %4310 = vrot.lane.b32.xlu0 %v4159, 32
        %v4311 = vpop.permute.xlu0 %4310
        %4328 = vrot.lane.b32.xlu0 %v4160, 40
        %v4329 = vpop.permute.xlu0 %4328
        %4330 = vrot.lane.b32.xlu0 %v4161, 40
        %v4331 = vpop.permute.xlu0 %4330
        %4332 = vrot.lane.b32.xlu0 %v4162, 40
        %v4333 = vpop.permute.xlu0 %4332
        %4334 = vrot.lane.b32.xlu0 %v4163, 40
        %v4335 = vpop.permute.xlu0 %4334
        %4336 = vrot.lane.b32.xlu0 %v4164, 40
        %v4337 = vpop.permute.xlu0 %4336
        %4338 = vrot.lane.b32.xlu0 %v4165, 40
        %v4339 = vpop.permute.xlu0 %4338
        %4340 = vrot.lane.b32.xlu0 %v4166, 40
        %v4341 = vpop.permute.xlu0 %4340
        %4342 = vrot.lane.b32.xlu0 %v4167, 40
        %v4343 = vpop.permute.xlu0 %4342
        %4360 = vrot.lane.b32.xlu0 %v4168, 48
        %v4361 = vpop.permute.xlu0 %4360
        %4362 = vrot.lane.b32.xlu0 %v4169, 48
        %v4363 = vpop.permute.xlu0 %4362
        %4364 = vrot.lane.b32.xlu0 %v4170, 48
        %v4365 = vpop.permute.xlu0 %4364
        %4366 = vrot.lane.b32.xlu0 %v4171, 48
        %v4367 = vpop.permute.xlu0 %4366
        %4368 = vrot.lane.b32.xlu0 %v4172, 48
        %v4369 = vpop.permute.xlu0 %4368
        %4370 = vrot.lane.b32.xlu0 %v4173, 48
        %v4371 = vpop.permute.xlu0 %4370
        %4372 = vrot.lane.b32.xlu0 %v4174, 48
        %v4373 = vpop.permute.xlu0 %4372
        %4374 = vrot.lane.b32.xlu0 %v4175, 48
        %v4375 = vpop.permute.xlu0 %4374
        %4392 = vrot.lane.b32.xlu0 %v4176, 56
        %v4393 = vpop.permute.xlu0 %4392
        %4394 = vrot.lane.b32.xlu0 %v4177, 56
        %v4395 = vpop.permute.xlu0 %4394
        %4396 = vrot.lane.b32.xlu0 %v4178, 56
        %v4397 = vpop.permute.xlu0 %4396
        %4398 = vrot.lane.b32.xlu0 %v4179, 56
        %v4399 = vpop.permute.xlu0 %4398
        %4400 = vrot.lane.b32.xlu0 %v4180, 56
        %v4401 = vpop.permute.xlu0 %4400
        %4402 = vrot.lane.b32.xlu0 %v4181, 56
        %v4403 = vpop.permute.xlu0 %4402
        %4404 = vrot.lane.b32.xlu0 %v4182, 56
        %v4405 = vpop.permute.xlu0 %4404
        %4406 = vrot.lane.b32.xlu0 %v4183, 56
        %v4407 = vpop.permute.xlu0 %4406
        %4424 = vrot.lane.b32.xlu0 %v4184, 64
        %v4425 = vpop.permute.xlu0 %4424
        %4426 = vrot.lane.b32.xlu0 %v4185, 64
        %v4427 = vpop.permute.xlu0 %4426
        %4428 = vrot.lane.b32.xlu0 %v4186, 64
        %v4429 = vpop.permute.xlu0 %4428
        %4430 = vrot.lane.b32.xlu0 %v4187, 64
        %v4431 = vpop.permute.xlu0 %4430
        %4432 = vrot.lane.b32.xlu0 %v4188, 64
        %v4433 = vpop.permute.xlu0 %4432
        %4434 = vrot.lane.b32.xlu0 %v4189, 64
        %v4435 = vpop.permute.xlu0 %4434
        %4436 = vrot.lane.b32.xlu0 %v4190, 64
        %v4437 = vpop.permute.xlu0 %4436
        %4438 = vrot.lane.b32.xlu0 %v4191, 64
        %v4439 = vpop.permute.xlu0 %4438
        %v4448 = vsel %vm2238, %v4120, %v4201
        %v4449 = vsel %vm2238, %v4121, %v4203
        %v4450 = vsel %vm2238, %v4122, %v4205
        %v4451 = vsel %vm2238, %v4123, %v4207
        %v4452 = vsel %vm2238, %v4124, %v4209
        %v4453 = vsel %vm2238, %v4125, %v4211
        %v4454 = vsel %vm2238, %v4126, %v4213
        %v4455 = vsel %vm2238, %v4127, %v4215
        %v4456 = vsel %vm2841, %v4448, %v4233
        %v4457 = vsel %vm2841, %v4449, %v4235
        %v4458 = vsel %vm2841, %v4450, %v4237
        %v4459 = vsel %vm2841, %v4451, %v4239
        %v4460 = vsel %vm2841, %v4452, %v4241
        %v4461 = vsel %vm2841, %v4453, %v4243
        %v4462 = vsel %vm2841, %v4454, %v4245
        %v4463 = vsel %vm2841, %v4455, %v4247
        %v4464 = vsel %vm1955, %v4456, %v4265
        %v4465 = vsel %vm1955, %v4457, %v4267
        %v4466 = vsel %vm1955, %v4458, %v4269
        %v4467 = vsel %vm1955, %v4459, %v4271
        %v4468 = vsel %vm1955, %v4460, %v4273
        %v4469 = vsel %vm1955, %v4461, %v4275
        %v4470 = vsel %vm1955, %v4462, %v4277
        %v4471 = vsel %vm1955, %v4463, %v4279
        %v4472 = vsel %vm2858, %v4464, %v4297
        %v4473 = vsel %vm2858, %v4465, %v4299
        %v4474 = vsel %vm2858, %v4466, %v4301
        %v4475 = vsel %vm2858, %v4467, %v4303
        %v4476 = vsel %vm2858, %v4468, %v4305
        %v4477 = vsel %vm2858, %v4469, %v4307
        %v4478 = vsel %vm2858, %v4470, %v4309
        %v4479 = vsel %vm2858, %v4471, %v4311
        %v4480 = vsel %vm2867, %v4472, %v4329
        %v4481 = vsel %vm2867, %v4473, %v4331
        %v4482 = vsel %vm2867, %v4474, %v4333
        %v4483 = vsel %vm2867, %v4475, %v4335
        %v4484 = vsel %vm2867, %v4476, %v4337
        %v4485 = vsel %vm2867, %v4477, %v4339
        %v4486 = vsel %vm2867, %v4478, %v4341
        %v4487 = vsel %vm2867, %v4479, %v4343
        %v4488 = vsel %vm2876, %v4480, %v4361
        %v4489 = vsel %vm2876, %v4481, %v4363
        %v4490 = vsel %vm2876, %v4482, %v4365
        %v4491 = vsel %vm2876, %v4483, %v4367
        %v4492 = vsel %vm2876, %v4484, %v4369
        %v4493 = vsel %vm2876, %v4485, %v4371
        %v4494 = vsel %vm2876, %v4486, %v4373
        %v4495 = vsel %vm2876, %v4487, %v4375
        %v4496 = vsel %vm2885, %v4488, %v4393
        %v4497 = vsel %vm2885, %v4489, %v4395
        %v4498 = vsel %vm2885, %v4490, %v4397
        %v4499 = vsel %vm2885, %v4491, %v4399
        %v4500 = vsel %vm2885, %v4492, %v4401
        %v4501 = vsel %vm2885, %v4493, %v4403
        %v4502 = vsel %vm2885, %v4494, %v4405
        %v4503 = vsel %vm2885, %v4495, %v4407
        %v4504 = vsel %vm2894, %v4496, %v4425
        %v4505 = vsel %vm2894, %v4497, %v4427
        %v4506 = vsel %vm2894, %v4498, %v4429
        %v4507 = vsel %vm2894, %v4499, %v4431
        %v4508 = vsel %vm2894, %v4500, %v4433
        %v4509 = vsel %vm2894, %v4501, %v4435
        %v4510 = vsel %vm2894, %v4502, %v4437
        %v4511 = vsel %vm2894, %v4503, %v4439
        %v4512 = vpack.c.bf16 %v4505, %v4504
        %v4513 = vpack.c.bf16 %v4507, %v4506
        %v4514 = vpack.c.bf16 %v4509, %v4508
        %v4515 = vpack.c.bf16 %v4511, %v4510
        %v4517 = vlaneseq
        %v4518 = vshrl.u32 %v4517, 7
        %v4519 = vsub.s32 0, %v4518
        %v4520 = vrot.slane %v3578, %v4519
        %v4531 = vunpack.c.l.b16 %v3568
        %v4532 = vunpack.c.l.b16 %v3569
        %v4533 = vunpack.c.l.b16 %v3570
        %v4534 = vunpack.c.l.b16 %v3571
        %v4535 = vunpack.c.l.b16 %v3572
        %v4536 = vunpack.c.l.b16 %v3573
        %v4537 = vunpack.c.l.b16 %v3574
        %v4538 = vunpack.c.l.b16 %v3575
        %v4539 = vunpack.c.l.b16 %v3576
        %v4540 = vpack.c.b16 %v4532, %v4531
        %v4541 = vpack.c.b16 %v4534, %v4533
        %v4542 = vpack.c.b16 %v4536, %v4535
        %v4543 = vpack.c.b16 %v4538, %v4537
        %v4544 = vpack.c.b16 %v4539, %v4539
        %v4550 = vsel %vm2940, %v4512, 0
        %v4553 = vsel %vm2940, %v4513, 0
        %v4556 = vsel %vm2940, %v4514, 0
        %v4559 = vsel %vm2940, %v4515, 0
        %v4562 = vsel %vm2953, %v4544, 0
        %4564 = vmatprep.subr.bf16.mxu0 0
        %4565 = vmatpush1.bf16.msra.mxu0 %v4540
        %4566 = vmatprep.subr.bf16.mxu0 0
        %4567 = vmatpush1.bf16.msra.mxu0 %v4541
        %4568 = vmatprep.subr.bf16.mxu0 0
        %4569 = vmatpush1.bf16.msra.mxu0 %v4542
        %4570 = vmatprep.subr.bf16.mxu0 0
        %4571 = vmatpush1.bf16.msra.mxu0 %v4543
        %4572 = vmatprep.subr.bf16.mxu0 0
        %4573 = vmatpush1.bf16.msra.mxu0 %v4562
        %4574 = vmatprep.subr.bf16.mxu0 0
        %4575 = vmatpush1.bf16.msra.mxu0 0
        %4576 = vmatprep.subr.bf16.mxu0 0
        %4577 = vmatpush1.bf16.msra.mxu0 0
        %4578 = vmatprep.subr.bf16.mxu0 0
        %4579 = vmatpush1.bf16.msra.mxu0 0
        %4580 = vmatprep.subr.bf16.mxu0 0
        %4581 = vmatpush1.bf16.msra.mxu0 0
        %4582 = vmatprep.subr.bf16.mxu0 0
        %4583 = vmatpush1.bf16.msra.mxu0 0
        %4584 = vmatprep.subr.bf16.mxu0 0
        %4585 = vmatpush1.bf16.msra.mxu0 0
        %4586 = vmatprep.subr.bf16.mxu0 0
        %4587 = vmatpush1.bf16.msra.mxu0 0
        %4588 = vmatprep.subr.bf16.mxu0 0
        %4589 = vmatpush1.bf16.msra.mxu0 0
        %4590 = vmatprep.subr.bf16.mxu0 0
        %4591 = vmatpush1.bf16.msra.mxu0 0
        %4592 = vmatprep.subr.bf16.mxu0 0
        %4593 = vmatpush1.bf16.msra.mxu0 0
        %4594 = vmatprep.subr.bf16.mxu0 0
        %4595 = vmatpush1.bf16.msra.mxu0 0
        %4596 = vmatprep.mubr.bf16.mxu0 0
        %4597 = vmatmul.mubr.bf16.gmra.mrb[0].mxu0 %v4550
        %v4598 = vpop.f32.mrb[0].mxu0
        %v4599 = vadd.f32 %v4520, %v4598
        %v4600 = vpop.f32.mrb[0].mxu0
        %v4601 = vpop.f32.mrb[0].mxu0
        %v4602 = vadd.f32 %v4520, %v4601
        %v4603 = vpop.f32.mrb[0].mxu0
        %4604 = vmatprep.mubr.bf16.mxu0 0
        %4605 = vmatmul.mubr.bf16.gmra.mrb[0].mxu0 %v4553
        %v4606 = vpop.f32.mrb[0].mxu0
        %v4607 = vadd.f32 %v4520, %v4606
        %v4608 = vpop.f32.mrb[0].mxu0
        %v4609 = vpop.f32.mrb[0].mxu0
        %v4610 = vadd.f32 %v4520, %v4609
        %v4611 = vpop.f32.mrb[0].mxu0
        %4612 = vmatprep.mubr.bf16.mxu0 0
        %4613 = vmatmul.mubr.bf16.gmra.mrb[0].mxu0 %v4556
        %v4614 = vpop.f32.mrb[0].mxu0
        %v4615 = vadd.f32 %v4520, %v4614
        %v4616 = vpop.f32.mrb[0].mxu0
        %v4617 = vpop.f32.mrb[0].mxu0
        %v4618 = vadd.f32 %v4520, %v4617
        %v4619 = vpop.f32.mrb[0].mxu0
        %4620 = vmatprep.mubr.bf16.mxu0 0
        %4621 = vmatmul.mubr.bf16.gmra.mrb[0].mxu0 %v4559
        %v4622 = vpop.f32.mrb[0].mxu0
        %v4623 = vadd.f32 %v4520, %v4622
        %v4624 = vpop.f32.mrb[0].mxu0
        %v4625 = vpop.f32.mrb[0].mxu0
        %v4626 = vadd.f32 %v4520, %v4625
        %v4627 = vpop.f32.mrb[0].mxu0
        %4628 = vdwg.mxu0
        %v4629 = vadd.f32 %v4599, %v3547
        %v4630 = vadd.f32 %v4602, %v3548
        %v4631 = vadd.f32 %v4607, %v3549
        %v4632 = vadd.f32 %v4610, %v3550
        %v4633 = vadd.f32 %v4615, %v3551
        %v4634 = vadd.f32 %v4618, %v3552
        %v4635 = vadd.f32 %v4623, %v3553
        %v4636 = vadd.f32 %v4626, %v3554
        %4637 = vst.msk [vmem:[%s298] sm:$0xff] %vm2238, %v4629
        %4638 = vst.msk [vmem:[%s298 + $0x8] sm:$0xff] %vm2238, %v4630
        %4639 = vst.msk [vmem:[%s298 + $0x10] sm:$0xff] %vm2238, %v4631
        %4640 = vst.msk [vmem:[%s298 + $0x18] sm:$0xff] %vm2238, %v4632
        %4641 = vst.msk [vmem:[%s298 + $0x20] sm:$0xff] %vm2238, %v4633
        %4642 = vst.msk [vmem:[%s298 + $0x28] sm:$0xff] %vm2238, %v4634
        %4643 = vst.msk [vmem:[%s298 + $0x30] sm:$0xff] %vm2238, %v4635
        %4644 = vst.msk [vmem:[%s298 + $0x38] sm:$0xff] %vm2238, %v4636
        %s4645 = sand.u32 %s142, 1
        %s4646 = scalar_lea.sflag [#allocation8], %s4645
        %s4647 = sand.u32 %s142, 1
        %s4648 = smul.addr %s4647, 64
        %s4649 = scalar_lea.vmem [#allocation15], %s4648
        // Predicated region
        $region61: #{resnet_stack_forward.1} parent=39 // pred_check
          %p4650 = pneg %p152
        $region62: #{resnet_stack_forward.1} parent=39 // pred_check_branch
          %4652 = sbr.rel (%p4650) target = $region64
        $region63: #{resnet_stack_forward.1} parent=39 // pred_region
          %s4654 = ssub.s32 1024, 1024
          %4655 = vsyncadd %s4646, %s4654
          %s4656 = smul.addr %s24, 8
          %s4657 = smul.addr %s4656, 128
          %s4658 = scalar_lea.hbm %s5, %s4657
          %s4659 = sshll.u32 %s4649, 4
          %s4660 = int_to_ptr.vmem [resolvable:$true] %s4659
          %4665 = dma.vmem_to_hbm [thread:$0]  %s4660, 1024, %s4658, %s4646, 128, 128, 8
        $region64: #{resnet_stack_forward.1} parent=39 // pred_fallthru
          _
      $region40: #{resnet_stack_forward.1} parent=5 // pred_fallthru
        _
      %p4666 = scmp.le.s32.totalorder 2, %s19
      // Predicated region
      $region65: #{resnet_stack_forward.1} parent=5 // pred_check
        %p4667 = pneg %p4666
      $region66: #{resnet_stack_forward.1} parent=5 // pred_check_branch
        %4669 = sbr.rel (%p4667) target = $region68
      $region67: #{resnet_stack_forward.1} parent=5 // pred_region
        %s4670 = ssub.s32 %s19, 2
        // Predicated region
        $region69: #{resnet_stack_forward.1} parent=67 // pred_check
          %p4671 = pneg %p158
        $region70: #{resnet_stack_forward.1} parent=67 // pred_check_branch
          %4673 = sbr.rel (%p4671) target = $region72
        $region71: #{resnet_stack_forward.1} parent=67 // pred_region
          %s4674 = sand.u32 %s143, 1
          %s4675 = scalar_lea.sflag [#allocation8], %s4674
          %s4676 = sand.u32 %s143, 1
          %s4677 = smul.addr %s4676, 64
          %s4678 = scalar_lea.vmem [#allocation15], %s4677
          %4679 = dma.done %s4675, 1024
        $region72: #{resnet_stack_forward.1} parent=67 // pred_fallthru
          _
      $region68: #{resnet_stack_forward.1} parent=5 // pred_fallthru
        _
    $region6: #{resnet_stack_forward.1} parent=1 // loop_footer
      %s23 = sadd.s32 1, %s19
    $region7: #{resnet_stack_forward.1} parent=1 // loop_footer_branch
      %18 = sbr.rel target = $region3
    $region8: #{resnet_stack_forward.1} parent=1 // loop_exit
      _
    %4680 = vsyncpa [#allocation7], 1
    %s4681 = scalar_lea.sflag [#allocation7], 1
    %4682 = vsyncpa %s4681, 1
    %4683 = vsyncpa [#allocation10], 1
    %4684 = vsyncpa [#allocation13], 1
    %4685 = vsyncpa [#allocation8], 1
    %s4686 = scalar_lea.sflag [#allocation8], 1
    %4687 = vsyncpa %s4686, 1

</llo_original>
